<compile_context>
chip_gen: v6e
topology: v6e:2x2x1
jax: 0.10.0
libtpu: 0.0.40
codegen_flags: <defaults>
</compile_context>

<pallas_src>
import math

import jax
import jax.numpy as jnp
from jax import lax
from jax.experimental import pallas as pl
from jax.experimental.pallas import tpu as pltpu

# ----------------------------------------------------------------------------
# Synthetic "config" (small shapes consistent with the module)
# ----------------------------------------------------------------------------
B = 2              # batch
H = 32             # config.hidden_dim
E = 16             # config.emb_dim
L = 12             # encoder source length
LP = 3             # number of previous decoder states (prev_s length)
K = 4              # number of key embeddings
VOCAB = 50         # config.vocab_size
N_EXTRA = 6        # OOV slots (extra_zeros)
VEXT = VOCAB + N_EXTRA
NH = 4             # attention heads in both attention modules
DK_ENC = (2 * H) // NH      # 16
DK_DEC = H // NH            # 8
NEG_INF = -1.0e9
LANES = 128


# ----------------------------------------------------------------------------
# Slab layouts: every operand lives at an 8-row-aligned segment of a
# (rows, 128) f32 slab, so the kernel gets 2 input DMAs and 1 output DMA.
# ----------------------------------------------------------------------------
def _round8(n):
    return (n + 7) // 8 * 8


def _make_layout(entries):
    layout, off = {}, 0
    for name, rows, cols in entries:
        assert cols <= LANES, name
        layout[name] = (off, rows, cols)
        off += _round8(rows)
    return layout, off


IN_ENTRIES = [
    ("x_t", B, E), ("dec_h", B, H), ("dec_c", B, H), ("ct_e", B, 2 * H),
    ("extra_zeros", B, N_EXTRA), ("mask_bias", B, L),
    ("ext_ids", B * L, 1),                 # enc_batch_extend_vocab as f32 column
    ("key_x", B * K, E), ("key_mask", B * K, 1),
    ("enc_out", B * L, 2 * H), ("prev_s", B * LP, H),
]

PAR_ENTRIES = [
    ("enc_qk_w", 2 * H + E, 2 * H), ("enc_qk_b", 1, 2 * H),   # key_linear ∘ q
    ("enc_kv_w", 2 * H, 4 * H), ("enc_kv_b", 1, 4 * H),       # K|V fused
    ("enc_o_w", 2 * H, 2 * H), ("enc_o_b", 1, 2 * H),
    ("dec_key_w", H + E, H), ("dec_key_b", 1, H),
    ("dec_q_w", H, H), ("dec_q_b", 1, H),
    ("dec_kv_w", H, 2 * H), ("dec_kv_b", 1, 2 * H),           # K|V fused
    ("dec_o_w", H, H), ("dec_o_b", 1, H),
    ("xc_w", 2 * H + E, E), ("xc_b", 1, E),
    ("lstm_wih", E, 4 * H), ("lstm_whh", H, 4 * H), ("lstm_b", 1, 4 * H),
    ("pgw_cte", 1, 2 * H), ("pgw_ctd", 1, H), ("pgw_h", 1, H),
    ("pgw_c", 1, H), ("pgw_x", 1, E), ("pg_b", 1, 1),
    ("vv1_w", 4 * H, VOCAB), ("vv1_b", 1, VOCAB),             # V1 ∘ V
    ("hpool_enc", 2 * H, NH), ("hexp_enc", NH, 2 * H),        # head pool/expand
    ("hpool_dec", H, NH), ("hexp_dec", NH, H),
    ("bsel", B, B * L),                                       # batch row selector
]

OUT_ENTRIES = [
    ("final_dist", B, VEXT), ("dec_h", B, H), ("dec_c", B, H),
    ("ct_e", B, 2 * H), ("q_d0", B, H),
    ("enc_attn", B * L, NH), ("dec_attn", B * LP, NH),
]

IN_LAYOUT, IN_ROWS = _make_layout(IN_ENTRIES)
PAR_LAYOUT, PAR_ROWS = _make_layout(PAR_ENTRIES)
OUT_LAYOUT, OUT_ROWS = _make_layout(OUT_ENTRIES)


# ----------------------------------------------------------------------------
# Small math helpers (usable both inside and outside the kernel)
# ----------------------------------------------------------------------------
def _mm(a, w):
    return jnp.dot(a, w, preferred_element_type=jnp.float32)


def _sigmoid(x):
    return 1.0 / (1.0 + jnp.exp(-x))


def _softmax_last(s):
    m = jnp.max(s, axis=-1, keepdims=True)
    e = jnp.exp(s - m)
    return e / jnp.sum(e, axis=-1, keepdims=True)


# ----------------------------------------------------------------------------
# Pallas kernel
# ----------------------------------------------------------------------------
def _attn_heads(q, kv, lk, dm, mask_bias, hpool, hexp):
    """Head-batched single-query attention.

    q: (B, dm); kv: (B*lk, 2*dm) laid out as [K | V]; mask_bias: (B, lk) or None.
    hpool: (dm, NH) head-block indicator scaled by 1/sqrt(dk); hexp: (NH, dm).
    Returns context (B, dm) and attention probs (B, lk, NH).
    """
    k3 = kv[:, 0:dm].reshape(B, lk, dm)
    v3 = kv[:, dm:2 * dm].reshape(B, lk, dm)
    qk = q[:, None, :] * k3                                      # (B, lk, dm)
    s = _mm(qk.reshape(B * lk, dm), hpool).reshape(B, lk, NH)    # scaled scores
    if mask_bias is not None:
        s = s + mask_bias[:, :, None]                            # additive mask
    m = jnp.max(s, axis=1, keepdims=True)                        # softmax over lk,
    e = jnp.exp(s - m)                                           # all heads at once
    p = e / jnp.sum(e, axis=1, keepdims=True)                    # (B, lk, NH)
    pe = _mm(p.reshape(B * lk, NH), hexp).reshape(B, lk, dm)     # broadcast heads
    ctx = jnp.sum(pe * v3, axis=1)                               # (B, dm)
    return ctx, p


def _decoder_kernel(in_ref, par_ref, out_ref):
    def iseg(name):
        off, r, c = IN_LAYOUT[name]
        return in_ref[off:off + r, 0:c]

    def pseg(name):
        off, r, c = PAR_LAYOUT[name]
        return par_ref[off:off + r, 0:c]

    def oset(name, val):
        off, r, c = OUT_LAYOUT[name]
        out_ref[off:off + r, 0:c] = val

    out_ref[...] = jnp.zeros(out_ref.shape, jnp.float32)

    x_t = iseg("x_t")                      # (B, E)
    h0 = iseg("dec_h")                     # (B, H)
    c0 = iseg("dec_c")                     # (B, H)
    ct_e0 = iseg("ct_e")                   # (B, 2H)
    extra = iseg("extra_zeros")            # (B, N_EXTRA)
    mbias = iseg("mask_bias")              # (B, L) additive, (mask-1)*1e9
    key_x = iseg("key_x")                  # (B*K, E)
    key_m = iseg("key_mask")               # (B*K, 1)
    enc_f = iseg("enc_out")                # (B*L, 2H)
    prev_f = iseg("prev_s")                # (B*LP, H)

    # sum of masked key embeddings
    sum_k = jnp.sum((key_x * key_m).reshape(B, K, E), axis=1)     # (B, E)

    # x = x_context([x_t, ct_e])  (concat eliminated: split-weight matmuls)
    xc_w = pseg("xc_w")
    x = _mm(x_t, xc_w[0:E]) + _mm(ct_e0, xc_w[E:E + 2 * H]) + pseg("xc_b")

    # LSTMCell (PyTorch gate order i, f, g, o); fused bias, no input concat
    gates = _mm(x, pseg("lstm_wih")) + _mm(h0, pseg("lstm_whh")) + pseg("lstm_b")
    i_g = _sigmoid(gates[:, 0:H])
    f_g = _sigmoid(gates[:, H:2 * H])
    g_g = jnp.tanh(gates[:, 2 * H:3 * H])
    o_g = _sigmoid(gates[:, 3 * H:4 * H])
    dec_c = f_g * c0 + i_g * g_g
    dec_h = o_g * jnp.tanh(dec_c)                                 # (B, H)

    # ---- encoder multi-head attention (key_linear ∘ q_linear composed) ----
    eqk_w = pseg("enc_qk_w")
    q_e = (_mm(dec_h, eqk_w[0:H]) + _mm(dec_c, eqk_w[H:2 * H])
           + _mm(sum_k, eqk_w[2 * H:2 * H + E]) + pseg("enc_qk_b"))   # (B, 2H)
    kv_e = _mm(enc_f, pseg("enc_kv_w")) + pseg("enc_kv_b")            # (B*L, 4H)
    ctx_e, p_enc = _attn_heads(q_e, kv_e, L, 2 * H, mbias,
                               pseg("hpool_enc"), pseg("hexp_enc"))
    ct_e = _mm(ctx_e, pseg("enc_o_w")) + pseg("enc_o_b")              # (B, 2H)

    # ---- intra-decoder multi-head attention over prev_s ----
    dkey_w = pseg("dec_key_w")
    q_d0 = (_mm(dec_h, dkey_w[0:H]) + _mm(sum_k, dkey_w[H:H + E])
            + pseg("dec_key_b"))                                      # (B, H)
    q_d = _mm(q_d0, pseg("dec_q_w")) + pseg("dec_q_b")
    kv_d = _mm(prev_f, pseg("dec_kv_w")) + pseg("dec_kv_b")           # (B*LP, 2H)
    ctx_d, p_dec = _attn_heads(q_d, kv_d, LP, H, None,
                               pseg("hpool_dec"), pseg("hexp_dec"))
    ct_d = _mm(ctx_d, pseg("dec_o_w")) + pseg("dec_o_b")              # (B, H)

    # TODO(synk): attention dropout (p=0.1) and p_gen dropout (p=0.2) are
    # identity here (eval mode).

    # ---- pointer-generator gate (width-1 output: row weights + lane reduce) --
    def rdot(a, wname):
        return jnp.sum(a * pseg(wname), axis=-1, keepdims=True)

    pg_logit = (rdot(ct_e, "pgw_cte") + rdot(ct_d, "pgw_ctd")
                + rdot(dec_h, "pgw_h") + rdot(dec_c, "pgw_c")
                + rdot(x, "pgw_x") + pseg("pg_b"))                    # (B, 1)
    p_gen = _sigmoid(pg_logit)

    # ---- vocabulary distribution (V1 ∘ V composed into one weight) ----
    vw = pseg("vv1_w")
    logits = (_mm(dec_h, vw[0:H]) + _mm(ct_e, vw[H:3 * H])
              + _mm(ct_d, vw[3 * H:4 * H]) + pseg("vv1_b"))           # (B, VOCAB)
    vocab_dist = p_gen * _softmax_last(logits)
    vocab_ext = jnp.concatenate([vocab_dist, extra], axis=1)          # (B, VEXT)

    # ---- copy distribution: scatter_add as one-hot + MXU contraction ----
    p_enc_flat = p_enc.reshape(B * L, NH)                             # (B*L, NH)
    ids_i = iseg("ext_ids").astype(jnp.int32)                         # (B*L, 1)
    iota_v = lax.broadcasted_iota(jnp.int32, (1, VEXT), 1)
    onehot = (ids_i == iota_v).astype(jnp.float32)                    # (B*L, VEXT)
    copy_dist = _mm(pseg("bsel"), p_enc_flat[:, 0:1] * onehot)        # (B, VEXT)
    final_dist = vocab_ext + (1.0 - p_gen) * copy_dist

    oset("final_dist", final_dist)
    oset("dec_h", dec_h)
    oset("dec_c", dec_c)
    oset("ct_e", ct_e)
    oset("q_d0", q_d0)                     # new prev_s row (appended in wrapper)
    oset("enc_attn", p_enc_flat)
    oset("dec_attn", p_dec.reshape(B * LP, NH))


_kernel_call = pl.pallas_call(
    _decoder_kernel,
    out_shape=jax.ShapeDtypeStruct((OUT_ROWS, LANES), jnp.float32),
    in_specs=[pl.BlockSpec(memory_space=pltpu.MemorySpace.VMEM),
              pl.BlockSpec(memory_space=pltpu.MemorySpace.VMEM)],
    out_specs=pl.BlockSpec(memory_space=pltpu.MemorySpace.VMEM),
    compiler_params=pltpu.CompilerParams(vmem_limit_bytes=4 * 1024 * 1024),
)


# ----------------------------------------------------------------------------
# Wrapper: parameter fusion / slab packing / unpacking
# ----------------------------------------------------------------------------
def _pack_slab(layout, total_rows, arrays):
    slab = jnp.zeros((total_rows, LANES), jnp.float32)
    for name, (off, r, c) in layout.items():
        a = jnp.asarray(arrays[name], jnp.float32).reshape(r, c)
        slab = slab.at[off:off + r, 0:c].set(a)
    return slab


def _head_block(d_model, dk):
    j = jnp.arange(d_model)[:, None]
    h = jnp.arange(NH)[None, :]
    return (j // dk == h).astype(jnp.float32)        # (d_model, NH)


def build_param_slab(p):
    """Fuse/compose raw Linear weights (done once per model) and pack them.

    Raw weights are (in_features, out_features); biases (1, out_features).
    """
    f = {}
    # enc attention: compose key_linear ∘ q_linear; fuse K|V
    f["enc_qk_w"] = p["enc_key_w"] @ p["enc_q_w"]
    f["enc_qk_b"] = p["enc_key_b"] @ p["enc_q_w"] + p["enc_q_b"]
    f["enc_kv_w"] = jnp.concatenate([p["enc_k_w"], p["enc_v_w"]], axis=1)
    f["enc_kv_b"] = jnp.concatenate([p["enc_k_b"], p["enc_v_b"]], axis=1)
    f["enc_o_w"], f["enc_o_b"] = p["enc_o_w"], p["enc_o_b"]
    # dec attention (key_linear output is needed -> not composed); fuse K|V
    f["dec_key_w"], f["dec_key_b"] = p["dec_key_w"], p["dec_key_b"]
    f["dec_q_w"], f["dec_q_b"] = p["dec_q_w"], p["dec_q_b"]
    f["dec_kv_w"] = jnp.concatenate([p["dec_k_w"], p["dec_v_w"]], axis=1)
    f["dec_kv_b"] = jnp.concatenate([p["dec_k_b"], p["dec_v_b"]], axis=1)
    f["dec_o_w"], f["dec_o_b"] = p["dec_o_w"], p["dec_o_b"]
    # x_context, LSTM (fused bias)
    f["xc_w"], f["xc_b"] = p["xc_w"], p["xc_b"]
    f["lstm_wih"], f["lstm_whh"] = p["lstm_wih"], p["lstm_whh"]
    f["lstm_b"] = p["lstm_bih"] + p["lstm_bhh"]
    # p_gen: split the (5H+E, 1) weight into transposed rows per input chunk
    w = p["pg_w"][:, 0]
    f["pgw_cte"] = w[0:2 * H].reshape(1, 2 * H)
    f["pgw_ctd"] = w[2 * H:3 * H].reshape(1, H)
    f["pgw_h"] = w[3 * H:4 * H].reshape(1, H)
    f["pgw_c"] = w[4 * H:5 * H].reshape(1, H)
    f["pgw_x"] = w[5 * H:5 * H + E].reshape(1, E)
    f["pg_b"] = p["pg_b"]
    # output projection: compose V1 ∘ V
    f["vv1_w"] = p["v_w"] @ p["v1_w"]
    f["vv1_b"] = p["v_b"] @ p["v1_w"] + p["v1_b"]
    # constant head pooling / expansion matrices and batch selector
    blk_e = _head_block(2 * H, DK_ENC)
    f["hpool_enc"] = blk_e / math.sqrt(DK_ENC)
    f["hexp_enc"] = blk_e.T
    blk_d = _head_block(H, DK_DEC)
    f["hpool_dec"] = blk_d / math.sqrt(DK_DEC)
    f["hexp_dec"] = blk_d.T
    f["bsel"] = (jnp.arange(B * L)[None, :] // L
                 == jnp.arange(B)[:, None]).astype(jnp.float32)
    return _pack_slab(PAR_LAYOUT, PAR_ROWS, f)


def _prepare_inputs(i):
    return {
        "x_t": i["x_t"],
        "dec_h": i["dec_h0"],
        "dec_c": i["dec_c0"],
        "ct_e": i["ct_e"],
        "extra_zeros": i["extra_zeros"],
        "mask_bias": (i["enc_padding_mask"] - 1.0) * 1.0e9,
        "ext_ids": i["enc_batch_extend_vocab"].astype(jnp.float32).reshape(B * L, 1),
        "key_x": i["key_x"].reshape(B * K, E),
        "key_mask": i["key_mask"].reshape(B * K, 1),
        "enc_out": i["enc_out"].reshape(B * L, 2 * H),
        "prev_s": i["prev_s"].reshape(B * LP, H),
    }


@jax.jit
def _decoder_step(inputs, param_slab):
    in_slab = _pack_slab(IN_LAYOUT, IN_ROWS, _prepare_inputs(inputs))
    out_slab = _kernel_call(in_slab, param_slab)

    def g(name):
        off, r, c = OUT_LAYOUT[name]
        return out_slab[off:off + r, 0:c]

    final_dist = g("final_dist")
    dec_h, dec_c, ct_e, q_d0 = g("dec_h"), g("dec_c"), g("ct_e"), g("q_d0")
    enc_attn = jnp.swapaxes(g("enc_attn").reshape(B, L, NH), 1, 2)   # (B, NH, L)
    dec_attn = jnp.swapaxes(g("dec_attn").reshape(B, LP, NH), 1, 2)  # (B, NH, LP)
    prev_s = jnp.concatenate([inputs["prev_s"], q_d0[:, None, :]], axis=1)
    return final_dist, dec_h, dec_c, ct_e, prev_s, enc_attn, dec_attn


def decoder_forward(inputs, param_slab, sum_temporal_srcs=None):
    (final_dist, dec_h, dec_c, ct_e,
     prev_s, enc_attn, dec_attn) = _decoder_step(inputs, param_slab)
    return (final_dist, (dec_h, dec_c), ct_e, sum_temporal_srcs, prev_s,
            enc_attn, dec_attn)


# ----------------------------------------------------------------------------
# Pure-JAX reference (faithful to the original module: concats, sequential
# linears, per-head attention) — used only for correctness checking.
# ----------------------------------------------------------------------------
def _ref_linear(x, w, b):
    return jnp.dot(x, w, preferred_element_type=jnp.float32) + b


def _ref_linear3(x, w, b):
    b_, l_, d_ = x.shape
    y = jnp.dot(x.reshape(b_ * l_, d_), w, preferred_element_type=jnp.float32) + b
    return y.reshape(b_, l_, w.shape[1])


def _ref_mha_single_query(q, k3, v3, nheads, dk, mask2):
    scale = 1.0 / math.sqrt(dk)
    ctxs, attns = [], []
    for hh in range(nheads):
        sl = slice(hh * dk, (hh + 1) * dk)
        qh, kh, vh = q[:, sl], k3[:, :, sl], v3[:, :, sl]
        s = jnp.sum(qh[:, None, :] * kh, axis=-1) * scale
        if mask2 is not None:
            s = jnp.where(mask2 > 0, s, NEG_INF)
        p = _softmax_last(s)
        ctxs.append(jnp.sum(p[:, :, None] * vh, axis=1))
        attns.append(p)
    return jnp.concatenate(ctxs, axis=-1), jnp.stack(attns, axis=1)


def _decoder_reference(i, p):
    key_x = i["key_x"] * i["key_mask"][:, :, None]
    sum_k_emb = jnp.sum(key_x, axis=1)

    x = _ref_linear(jnp.concatenate([i["x_t"], i["ct_e"]], axis=1),
                    p["xc_w"], p["xc_b"])

    gates = (jnp.dot(x, p["lstm_wih"], preferred_element_type=jnp.float32)
             + p["lstm_bih"]
             + jnp.dot(i["dec_h0"], p["lstm_whh"],
                       preferred_element_type=jnp.float32)
             + p["lstm_bhh"])
    ig = _sigmoid(gates[:, 0:H])
    fg = _sigmoid(gates[:, H:2 * H])
    gg = jnp.tanh(gates[:, 2 * H:3 * H])
    og = _sigmoid(gates[:, 3 * H:4 * H])
    dec_c = fg * i["dec_c0"] + ig * gg
    dec_h = og * jnp.tanh(dec_c)
    st_hat = jnp.concatenate([dec_h, dec_c], axis=1)

    q_e0 = _ref_linear(jnp.concatenate([st_hat, sum_k_emb], axis=1),
                       p["enc_key_w"], p["enc_key_b"])
    q_e = _ref_linear(q_e0, p["enc_q_w"], p["enc_q_b"])
    k_e = _ref_linear3(i["enc_out"], p["enc_k_w"], p["enc_k_b"])
    v_e = _ref_linear3(i["enc_out"], p["enc_v_w"], p["enc_v_b"])
    ctx_e, enc_attn = _ref_mha_single_query(q_e, k_e, v_e, NH, DK_ENC,
                                            i["enc_padding_mask"])
    ct_e = _ref_linear(ctx_e, p["enc_o_w"], p["enc_o_b"])

    q_d0 = _ref_linear(jnp.concatenate([dec_h, sum_k_emb], axis=1),
                       p["dec_key_w"], p["dec_key_b"])
    prev_s_new = jnp.concatenate([i["prev_s"], q_d0[:, None, :]], axis=1)
    q_d = _ref_linear(q_d0, p["dec_q_w"], p["dec_q_b"])
    k_d = _ref_linear3(i["prev_s"], p["dec_k_w"], p["dec_k_b"])
    v_d = _ref_linear3(i["prev_s"], p["dec_v_w"], p["dec_v_b"])
    ctx_d, dec_attn = _ref_mha_single_query(q_d, k_d, v_d, NH, DK_DEC, None)
    ct_d = _ref_linear(ctx_d, p["dec_o_w"], p["dec_o_b"])

    p_gen = _sigmoid(_ref_linear(
        jnp.concatenate([ct_e, ct_d, st_hat, x], axis=1), p["pg_w"], p["pg_b"]))

    out = _ref_linear(jnp.concatenate([dec_h, ct_e, ct_d], axis=1),
                      p["v_w"], p["v_b"])
    out = _ref_linear(out, p["v1_w"], p["v1_b"])
    vocab_dist = p_gen * _softmax_last(out)
    attn_dist_ = (1.0 - p_gen) * enc_attn[:, 0, :]

    vocab_ext = jnp.concatenate([vocab_dist, i["extra_zeros"]], axis=1)
    ids = i["enc_batch_extend_vocab"]
    iota_v = lax.broadcasted_iota(jnp.int32, (1, 1, VEXT), 2)
    onehot = (ids[:, :, None] == iota_v).astype(jnp.float32)
    final_dist = vocab_ext + jnp.sum(attn_dist_[:, :, None] * onehot, axis=1)

    return (final_dist, dec_h, dec_c, ct_e, prev_s_new, enc_attn, dec_attn)


# ----------------------------------------------------------------------------
# Deterministic parameter / input construction
# ----------------------------------------------------------------------------
def _dense(key, fan_in, fan_out):
    kw, kb = jax.random.split(key)
    w = jax.random.normal(kw, (fan_in, fan_out), jnp.float32) / math.sqrt(fan_in)
    b = jax.random.normal(kb, (1, fan_out), jnp.float32) * 0.01
    return w, b


def init_params(key):
    ks = jax.random.split(key, 20)
    prm = {}
    prm["enc_key_w"], prm["enc_key_b"] = _dense(ks[0], 2 * H + E, 2 * H)
    prm["enc_q_w"], prm["enc_q_b"] = _dense(ks[1], 2 * H, 2 * H)
    prm["enc_k_w"], prm["enc_k_b"] = _dense(ks[2], 2 * H, 2 * H)
    prm["enc_v_w"], prm["enc_v_b"] = _dense(ks[3], 2 * H, 2 * H)
    prm["enc_o_w"], prm["enc_o_b"] = _dense(ks[4], 2 * H, 2 * H)
    prm["dec_key_w"], prm["dec_key_b"] = _dense(ks[5], H + E, H)
    prm["dec_q_w"], prm["dec_q_b"] = _dense(ks[6], H, H)
    prm["dec_k_w"], prm["dec_k_b"] = _dense(ks[7], H, H)
    prm["dec_v_w"], prm["dec_v_b"] = _dense(ks[8], H, H)
    prm["dec_o_w"], prm["dec_o_b"] = _dense(ks[9], H, H)
    prm["xc_w"], prm["xc_b"] = _dense(ks[10], 2 * H + E, E)
    kih, khh, kbi, kbh = jax.random.split(ks[11], 4)
    prm["lstm_wih"] = jax.random.normal(kih, (E, 4 * H), jnp.float32) / math.sqrt(E)
    prm["lstm_whh"] = jax.random.normal(khh, (H, 4 * H), jnp.float32) / math.sqrt(H)
    prm["lstm_bih"] = jax.random.normal(kbi, (1, 4 * H), jnp.float32) * 0.01
    prm["lstm_bhh"] = jax.random.normal(kbh, (1, 4 * H), jnp.float32) * 0.01
    prm["pg_w"], prm["pg_b"] = _dense(ks[12], 5 * H + E, 1)
    prm["v_w"], prm["v_b"] = _dense(ks[13], 4 * H, H)
    prm["v1_w"], prm["v1_b"] = _dense(ks[14], H, VOCAB)
    return prm


def make_inputs(key):
    ks = jax.random.split(key, 10)
    inputs = {
        "x_t": jax.random.normal(ks[0], (B, E), jnp.float32),
        "dec_h0": jax.random.normal(ks[1], (B, H), jnp.float32) * 0.1,
        "dec_c0": jax.random.normal(ks[2], (B, H), jnp.float32) * 0.1,
        "enc_out": jax.random.normal(ks[3], (B, L, 2 * H), jnp.float32),
        "ct_e": jax.random.normal(ks[4], (B, 2 * H), jnp.float32),
        "extra_zeros": jnp.zeros((B, N_EXTRA), jnp.float32),
        "enc_batch_extend_vocab": jax.random.randint(
            ks[5], (B, L), 0, VEXT, jnp.int32),
        "prev_s": jax.random.normal(ks[6], (B, LP, H), jnp.float32),
        "key_x": jax.random.normal(ks[7], (B, K, E), jnp.float32),
    }
    pos = jnp.arange(L, dtype=jnp.float32)[None, :]
    lengths = jnp.array([[L], [L - 3]], jnp.float32)
    inputs["enc_padding_mask"] = (pos < lengths).astype(jnp.float32)
    kpos = jnp.arange(K, dtype=jnp.float32)[None, :]
    klen = jnp.array([[K], [K - 1]], jnp.float32)
    inputs["key_mask"] = (kpos < klen).astype(jnp.float32)
    return inputs


if __name__ == "__main__":
    root = jax.random.PRNGKey(0)
    kp, ki = jax.random.split(root)
    raw_params = init_params(kp)
    inputs = make_inputs(ki)

    param_slab = build_param_slab(raw_params)       # built once per checkpoint
    outs = decoder_forward(inputs, param_slab, sum_temporal_srcs=None)
    outs = jax.block_until_ready(outs)
    final_dist, s_t, ct_e, sum_temporal_srcs, prev_s, enc_attn, dec_attn = outs

    # Pure-JAX reference (original module math with un-fused weights).
    ref = jax.jit(_decoder_reference)(inputs, raw_params)
    got = (final_dist, s_t[0], s_t[1], ct_e, prev_s, enc_attn, dec_attn)
    names = ("final_dist", "dec_h", "dec_c", "ct_e", "prev_s",
             "enc_attn", "dec_attn")
    # Tolerances account for MXU f32 pass rounding and the (mathematically
    # exact) weight composition / reassociation differences vs. the reference.
    for n, a, b in zip(names, got, ref):
        assert a.shape == b.shape, (n, a.shape, b.shape)
        assert jnp.allclose(a, b, rtol=2e-2, atol=2e-3), f"mismatch: {n}"
    # final_dist is a proper distribution over the extended vocabulary.
    assert jnp.allclose(jnp.sum(final_dist, axis=1), 1.0, atol=2e-3)

    print("KERNEL_OK")
</pallas_src>

<mosaic_0001>
module attributes {stable_mosaic.version = 11 : i64} {
  func.func @_decoder_kernel(%arg0: memref<120x128xf32, #tpu.memory_space<vmem>>, %arg1: memref<856x128xf32, #tpu.memory_space<vmem>>, %arg2: memref<72x128xf32, #tpu.memory_space<vmem>>) attributes {dimension_semantics = [], scalar_prefetch = 0 : i64, scratch_operands = 0 : i64, tpu.core_type = #tpu.core_type<tc>} {
    %cst = arith.constant 0.000000e+00 : f32
    %0 = vector.broadcast %cst : f32 to vector<72x128xf32>
    %c0 = arith.constant 0 : index
    %c0_0 = arith.constant 0 : index
    %1 = vector.load %arg2[%c0, %c0_0] : memref<72x128xf32, #tpu.memory_space<vmem>>, vector<72x128xf32>
    tpu.vector_store %arg2[%c0, %c0_0], %0 {strides = array<i32>} : memref<72x128xf32, #tpu.memory_space<vmem>>, vector<72x128xf32>,
    %c0_1 = arith.constant 0 : index
    %c0_2 = arith.constant 0 : index
    %2 = vector.load %arg0[%c0_1, %c0_2] : memref<120x128xf32, #tpu.memory_space<vmem>>, vector<2x16xf32>
    %c8 = arith.constant 8 : index
    %c0_3 = arith.constant 0 : index
    %3 = vector.load %arg0[%c8, %c0_3] : memref<120x128xf32, #tpu.memory_space<vmem>>, vector<2x32xf32>
    %c16 = arith.constant 16 : index
    %c0_4 = arith.constant 0 : index
    %4 = vector.load %arg0[%c16, %c0_4] : memref<120x128xf32, #tpu.memory_space<vmem>>, vector<2x32xf32>
    %c24 = arith.constant 24 : index
    %c0_5 = arith.constant 0 : index
    %5 = vector.load %arg0[%c24, %c0_5] : memref<120x128xf32, #tpu.memory_space<vmem>>, vector<2x64xf32>
    %c32 = arith.constant 32 : index
    %c0_6 = arith.constant 0 : index
    %6 = vector.load %arg0[%c32, %c0_6] : memref<120x128xf32, #tpu.memory_space<vmem>>, vector<2x6xf32>
    %c40 = arith.constant 40 : index
    %c0_7 = arith.constant 0 : index
    %7 = vector.load %arg0[%c40, %c0_7] : memref<120x128xf32, #tpu.memory_space<vmem>>, vector<2x12xf32>
    %c72 = arith.constant 72 : index
    %c0_8 = arith.constant 0 : index
    %8 = vector.load %arg0[%c72, %c0_8] : memref<120x128xf32, #tpu.memory_space<vmem>>, vector<8x16xf32>
    %c80 = arith.constant 80 : index
    %c0_9 = arith.constant 0 : index
    %9 = vector.load %arg0[%c80, %c0_9] : memref<120x128xf32, #tpu.memory_space<vmem>>, vector<8x1xf32>
    %c88 = arith.constant 88 : index
    %c0_10 = arith.constant 0 : index
    %10 = vector.load %arg0[%c88, %c0_10] : memref<120x128xf32, #tpu.memory_space<vmem>>, vector<24x64xf32>
    %c112 = arith.constant 112 : index
    %c0_11 = arith.constant 0 : index
    %11 = vector.load %arg0[%c112, %c0_11] : memref<120x128xf32, #tpu.memory_space<vmem>>, vector<6x32xf32>
    %12 = vector.broadcast %9 : vector<8x1xf32> to vector<8x16xf32>
    %13 = arith.mulf %8, %12 : vector<8x16xf32>
    %14 = vector.shape_cast %13 : vector<8x16xf32> to vector<2x4x16xf32>
    %cst_12 = arith.constant dense<0.000000e+00> : vector<2x16xf32>
    %15 = vector.multi_reduction <add>, %14, %cst_12 [1] : vector<2x4x16xf32> to vector<2x16xf32>
    %c408 = arith.constant 408 : index
    %c0_13 = arith.constant 0 : index
    %16 = vector.load %arg1[%c408, %c0_13] : memref<856x128xf32, #tpu.memory_space<vmem>>, vector<80x16xf32>
    %17 = vector.extract_strided_slice %16 {offsets = [0, 0], sizes = [16, 16], strides = [1, 1]} : vector<80x16xf32> to vector<16x16xf32>
    %cst_14 = arith.constant dense<0.000000e+00> : vector<2x16xf32>
    %18 = tpu.matmul %2, %17, %cst_14 {dimension_numbers = #tpu.dot_dimension_numbers<[1], [0], [0], [1], [0, 0, 1, 1], [], []>} : vector<2x16xf32>, vector<16x16xf32>, vector<2x16xf32> -> vector<2x16xf32>
    %19 = vector.extract_strided_slice %16 {offsets = [16, 0], sizes = [64, 16], strides = [1, 1]} : vector<80x16xf32> to vector<64x16xf32>
    %cst_15 = arith.constant dense<0.000000e+00> : vector<2x16xf32>
    %20 = tpu.matmul %5, %19, %cst_15 {dimension_numbers = #tpu.dot_dimension_numbers<[1], [0], [0], [1], [0, 0, 1, 1], [], []>} : vector<2x64xf32>, vector<64x16xf32>, vector<2x16xf32> -> vector<2x16xf32>
    %21 = arith.addf %18, %20 : vector<2x16xf32>
    %c488 = arith.constant 488 : index
    %c0_16 = arith.constant 0 : index
    %22 = vector.load %arg1[%c488, %c0_16] : memref<856x128xf32, #tpu.memory_space<vmem>>, vector<1x16xf32>
    %23 = vector.broadcast %22 : vector<1x16xf32> to vector<2x16xf32>
    %24 = arith.addf %21, %23 : vector<2x16xf32>
    %c496 = arith.constant 496 : index
    %c0_17 = arith.constant 0 : index
    %25 = vector.load %arg1[%c496, %c0_17] : memref<856x128xf32, #tpu.memory_space<vmem>>, vector<16x128xf32>
    %cst_18 = arith.constant dense<0.000000e+00> : vector<2x128xf32>
    %26 = tpu.matmul %24, %25, %cst_18 {dimension_numbers = #tpu.dot_dimension_numbers<[1], [0], [0], [1], [0, 0, 1, 1], [], []>} : vector<2x16xf32>, vector<16x128xf32>, vector<2x128xf32> -> vector<2x128xf32>
    %c512 = arith.constant 512 : index
    %c0_19 = arith.constant 0 : index
    %27 = vector.load %arg1[%c512, %c0_19] : memref<856x128xf32, #tpu.memory_space<vmem>>, vector<32x128xf32>
    %cst_20 = arith.constant dense<0.000000e+00> : vector<2x128xf32>
    %28 = tpu.matmul %3, %27, %cst_20 {dimension_numbers = #tpu.dot_dimension_numbers<[1], [0], [0], [1], [0, 0, 1, 1], [], []>} : vector<2x32xf32>, vector<32x128xf32>, vector<2x128xf32> -> vector<2x128xf32>
    %29 = arith.addf %26, %28 : vector<2x128xf32>
    %c544 = arith.constant 544 : index
    %c0_21 = arith.constant 0 : index
    %30 = vector.load %arg1[%c544, %c0_21] : memref<856x128xf32, #tpu.memory_space<vmem>>, vector<1x128xf32>
    %31 = vector.broadcast %30 : vector<1x128xf32> to vector<2x128xf32>
    %32 = arith.addf %29, %31 : vector<2x128xf32>
    %33 = vector.extract_strided_slice %32 {offsets = [0, 0], sizes = [2, 32], strides = [1, 1]} : vector<2x128xf32> to vector<2x32xf32>
    %cst_22 = arith.constant 0.000000e+00 : f32
    %34 = vector.broadcast %cst_22 : f32 to vector<2x32xf32>
    %35 = arith.subf %34, %33 : vector<2x32xf32>
    %36 = math.exp %35 : vector<2x32xf32>
    %cst_23 = arith.constant 1.000000e+00 : f32
    %37 = vector.broadcast %cst_23 : f32 to vector<2x32xf32>
    %38 = arith.addf %37, %36 : vector<2x32xf32>
    %cst_24 = arith.constant 1.000000e+00 : f32
    %39 = vector.broadcast %cst_24 : f32 to vector<2x32xf32>
    %40 = arith.divf %39, %38 : vector<2x32xf32>
    %41 = vector.extract_strided_slice %32 {offsets = [0, 32], sizes = [2, 32], strides = [1, 1]} : vector<2x128xf32> to vector<2x32xf32>
    %cst_25 = arith.constant 0.000000e+00 : f32
    %42 = vector.broadcast %cst_25 : f32 to vector<2x32xf32>
    %43 = arith.subf %42, %41 : vector<2x32xf32>
    %44 = math.exp %43 : vector<2x32xf32>
    %cst_26 = arith.constant 1.000000e+00 : f32
    %45 = vector.broadcast %cst_26 : f32 to vector<2x32xf32>
    %46 = arith.addf %45, %44 : vector<2x32xf32>
    %cst_27 = arith.constant 1.000000e+00 : f32
    %47 = vector.broadcast %cst_27 : f32 to vector<2x32xf32>
    %48 = arith.divf %47, %46 : vector<2x32xf32>
    %49 = vector.extract_strided_slice %32 {offsets = [0, 64], sizes = [2, 32], strides = [1, 1]} : vector<2x128xf32> to vector<2x32xf32>
    %50 = math.tanh %49 : vector<2x32xf32>
    %51 = vector.extract_strided_slice %32 {offsets = [0, 96], sizes = [2, 32], strides = [1, 1]} : vector<2x128xf32> to vector<2x32xf32>
    %cst_28 = arith.constant 0.000000e+00 : f32
    %52 = vector.broadcast %cst_28 : f32 to vector<2x32xf32>
    %53 = arith.subf %52, %51 : vector<2x32xf32>
    %54 = math.exp %53 : vector<2x32xf32>
    %cst_29 = arith.constant 1.000000e+00 : f32
    %55 = vector.broadcast %cst_29 : f32 to vector<2x32xf32>
    %56 = arith.addf %55, %54 : vector<2x32xf32>
    %cst_30 = arith.constant 1.000000e+00 : f32
    %57 = vector.broadcast %cst_30 : f32 to vector<2x32xf32>
    %58 = arith.divf %57, %56 : vector<2x32xf32>
    %59 = arith.mulf %48, %4 : vector<2x32xf32>
    %60 = arith.mulf %40, %50 : vector<2x32xf32>
    %61 = arith.addf %59, %60 : vector<2x32xf32>
    %62 = math.tanh %61 : vector<2x32xf32>
    %63 = arith.mulf %58, %62 : vector<2x32xf32>
    %c0_31 = arith.constant 0 : index
    %c0_32 = arith.constant 0 : index
    %64 = vector.load %arg1[%c0_31, %c0_32] : memref<856x128xf32, #tpu.memory_space<vmem>>, vector<80x64xf32>
    %65 = vector.extract_strided_slice %64 {offsets = [0, 0], sizes = [32, 64], strides = [1, 1]} : vector<80x64xf32> to vector<32x64xf32>
    %cst_33 = arith.constant dense<0.000000e+00> : vector<2x64xf32>
    %66 = tpu.matmul %63, %65, %cst_33 {dimension_numbers = #tpu.dot_dimension_numbers<[1], [0], [0], [1], [0, 0, 1, 1], [], []>} : vector<2x32xf32>, vector<32x64xf32>, vector<2x64xf32> -> vector<2x64xf32>
    %67 = vector.extract_strided_slice %64 {offsets = [32, 0], sizes = [32, 64], strides = [1, 1]} : vector<80x64xf32> to vector<32x64xf32>
    %cst_34 = arith.constant dense<0.000000e+00> : vector<2x64xf32>
    %68 = tpu.matmul %61, %67, %cst_34 {dimension_numbers = #tpu.dot_dimension_numbers<[1], [0], [0], [1], [0, 0, 1, 1], [], []>} : vector<2x32xf32>, vector<32x64xf32>, vector<2x64xf32> -> vector<2x64xf32>
    %69 = arith.addf %66, %68 : vector<2x64xf32>
    %70 = vector.extract_strided_slice %64 {offsets = [64, 0], sizes = [16, 64], strides = [1, 1]} : vector<80x64xf32> to vector<16x64xf32>
    %cst_35 = arith.constant dense<0.000000e+00> : vector<2x64xf32>
    %71 = tpu.matmul %15, %70, %cst_35 {dimension_numbers = #tpu.dot_dimension_numbers<[1], [0], [0], [1], [0, 0, 1, 1], [], []>} : vector<2x16xf32>, vector<16x64xf32>, vector<2x64xf32> -> vector<2x64xf32>
    %72 = arith.addf %69, %71 : vector<2x64xf32>
    %c80_36 = arith.constant 80 : index
    %c0_37 = arith.constant 0 : index
    %73 = vector.load %arg1[%c80_36, %c0_37] : memref<856x128xf32, #tpu.memory_space<vmem>>, vector<1x64xf32>
    %74 = vector.broadcast %73 : vector<1x64xf32> to vector<2x64xf32>
    %75 = arith.addf %72, %74 : vector<2x64xf32>
    %c88_38 = arith.constant 88 : index
    %c0_39 = arith.constant 0 : index
    %76 = vector.load %arg1[%c88_38, %c0_39] : memref<856x128xf32, #tpu.memory_space<vmem>>, vector<64x128xf32>
    %cst_40 = arith.constant dense<0.000000e+00> : vector<24x128xf32>
    %77 = tpu.matmul %10, %76, %cst_40 {dimension_numbers = #tpu.dot_dimension_numbers<[1], [0], [0], [1], [0, 0, 1, 1], [], []>} : vector<24x64xf32>, vector<64x128xf32>, vector<24x128xf32> -> vector<24x128xf32>
    %c152 = arith.constant 152 : index
    %c0_41 = arith.constant 0 : index
    %78 = vector.load %arg1[%c152, %c0_41] : memref<856x128xf32, #tpu.memory_space<vmem>>, vector<1x128xf32>
    %79 = vector.broadcast %78 : vector<1x128xf32> to vector<24x128xf32>
    %80 = arith.addf %77, %79 : vector<24x128xf32>
    %c736 = arith.constant 736 : index
    %c0_42 = arith.constant 0 : index
    %81 = vector.load %arg1[%c736, %c0_42] : memref<856x128xf32, #tpu.memory_space<vmem>>, vector<64x4xf32>
    %c800 = arith.constant 800 : index
    %c0_43 = arith.constant 0 : index
    %82 = vector.load %arg1[%c800, %c0_43] : memref<856x128xf32, #tpu.memory_space<vmem>>, vector<4x64xf32>
    %83 = vector.extract_strided_slice %80 {offsets = [0, 0], sizes = [24, 64], strides = [1, 1]} : vector<24x128xf32> to vector<24x64xf32>
    %84 = vector.shape_cast %83 : vector<24x64xf32> to vector<2x12x64xf32>
    %85 = vector.extract_strided_slice %80 {offsets = [0, 64], sizes = [24, 64], strides = [1, 1]} : vector<24x128xf32> to vector<24x64xf32>
    %86 = vector.shape_cast %85 : vector<24x64xf32> to vector<2x12x64xf32>
    %87 = vector.shape_cast %75 : vector<2x64xf32> to vector<2x1x64xf32>
    %88 = vector.broadcast %87 : vector<2x1x64xf32> to vector<2x12x64xf32>
    %89 = arith.mulf %88, %84 : vector<2x12x64xf32>
    %90 = vector.shape_cast %89 : vector<2x12x64xf32> to vector<24x64xf32>
    %cst_44 = arith.constant dense<0.000000e+00> : vector<24x4xf32>
    %91 = tpu.matmul %90, %81, %cst_44 {dimension_numbers = #tpu.dot_dimension_numbers<[1], [0], [0], [1], [0, 0, 1, 1], [], []>} : vector<24x64xf32>, vector<64x4xf32>, vector<24x4xf32> -> vector<24x4xf32>
    %92 = vector.shape_cast %91 : vector<24x4xf32> to vector<2x12x4xf32>
    %93 = vector.shape_cast %7 : vector<2x12xf32> to vector<2x12x1xf32>
    %94 = vector.broadcast %93 : vector<2x12x1xf32> to vector<2x12x4xf32>
    %95 = arith.addf %92, %94 : vector<2x12x4xf32>
    %cst_45 = arith.constant dense<0xFF800000> : vector<2x4xf32>
    %96 = vector.multi_reduction <maximumf>, %95, %cst_45 [1] : vector<2x12x4xf32> to vector<2x4xf32>
    %97 = vector.shape_cast %96 : vector<2x4xf32> to vector<2x1x4xf32>
    %98 = vector.broadcast %97 : vector<2x1x4xf32> to vector<2x12x4xf32>
    %99 = arith.subf %95, %98 : vector<2x12x4xf32>
    %100 = math.exp %99 : vector<2x12x4xf32>
    %cst_46 = arith.constant dense<0.000000e+00> : vector<2x4xf32>
    %101 = vector.multi_reduction <add>, %100, %cst_46 [1] : vector<2x12x4xf32> to vector<2x4xf32>
    %102 = vector.shape_cast %101 : vector<2x4xf32> to vector<2x1x4xf32>
    %103 = vector.broadcast %102 : vector<2x1x4xf32> to vector<2x12x4xf32>
    %104 = arith.divf %100, %103 : vector<2x12x4xf32>
    %105 = vector.shape_cast %104 : vector<2x12x4xf32> to vector<24x4xf32>
    %cst_47 = arith.constant dense<0.000000e+00> : vector<24x64xf32>
    %106 = tpu.matmul %105, %82, %cst_47 {dimension_numbers = #tpu.dot_dimension_numbers<[1], [0], [0], [1], [0, 0, 1, 1], [], []>} : vector<24x4xf32>, vector<4x64xf32>, vector<24x64xf32> -> vector<24x64xf32>
    %107 = vector.shape_cast %106 : vector<24x64xf32> to vector<2x12x64xf32>
    %108 = arith.mulf %107, %86 : vector<2x12x64xf32>
    %cst_48 = arith.constant dense<0.000000e+00> : vector<2x64xf32>
    %109 = vector.multi_reduction <add>, %108, %cst_48 [1] : vector<2x12x64xf32> to vector<2x64xf32>
    %c160 = arith.constant 160 : index
    %c0_49 = arith.constant 0 : index
    %110 = vector.load %arg1[%c160, %c0_49] : memref<856x128xf32, #tpu.memory_space<vmem>>, vector<64x64xf32>
    %cst_50 = arith.constant dense<0.000000e+00> : vector<2x64xf32>
    %111 = tpu.matmul %109, %110, %cst_50 {dimension_numbers = #tpu.dot_dimension_numbers<[1], [0], [0], [1], [0, 0, 1, 1], [], []>} : vector<2x64xf32>, vector<64x64xf32>, vector<2x64xf32> -> vector<2x64xf32>
    %c224 = arith.constant 224 : index
    %c0_51 = arith.constant 0 : index
    %112 = vector.load %arg1[%c224, %c0_51] : memref<856x128xf32, #tpu.memory_space<vmem>>, vector<1x64xf32>
    %113 = vector.broadcast %112 : vector<1x64xf32> to vector<2x64xf32>
    %114 = arith.addf %111, %113 : vector<2x64xf32>
    %c232 = arith.constant 232 : index
    %c0_52 = arith.constant 0 : index
    %115 = vector.load %arg1[%c232, %c0_52] : memref<856x128xf32, #tpu.memory_space<vmem>>, vector<48x32xf32>
    %116 = vector.extract_strided_slice %115 {offsets = [0, 0], sizes = [32, 32], strides = [1, 1]} : vector<48x32xf32> to vector<32x32xf32>
    %cst_53 = arith.constant dense<0.000000e+00> : vector<2x32xf32>
    %117 = tpu.matmul %63, %116, %cst_53 {dimension_numbers = #tpu.dot_dimension_numbers<[1], [0], [0], [1], [0, 0, 1, 1], [], []>} : vector<2x32xf32>, vector<32x32xf32>, vector<2x32xf32> -> vector<2x32xf32>
    %118 = vector.extract_strided_slice %115 {offsets = [32, 0], sizes = [16, 32], strides = [1, 1]} : vector<48x32xf32> to vector<16x32xf32>
    %cst_54 = arith.constant dense<0.000000e+00> : vector<2x32xf32>
    %119 = tpu.matmul %15, %118, %cst_54 {dimension_numbers = #tpu.dot_dimension_numbers<[1], [0], [0], [1], [0, 0, 1, 1], [], []>} : vector<2x16xf32>, vector<16x32xf32>, vector<2x32xf32> -> vector<2x32xf32>
    %120 = arith.addf %117, %119 : vector<2x32xf32>
    %c280 = arith.constant 280 : index
    %c0_55 = arith.constant 0 : index
    %121 = vector.load %arg1[%c280, %c0_55] : memref<856x128xf32, #tpu.memory_space<vmem>>, vector<1x32xf32>
    %122 = vector.broadcast %121 : vector<1x32xf32> to vector<2x32xf32>
    %123 = arith.addf %120, %122 : vector<2x32xf32>
    %c288 = arith.constant 288 : index
    %c0_56 = arith.constant 0 : index
    %124 = vector.load %arg1[%c288, %c0_56] : memref<856x128xf32, #tpu.memory_space<vmem>>, vector<32x32xf32>
    %cst_57 = arith.constant dense<0.000000e+00> : vector<2x32xf32>
    %125 = tpu.matmul %123, %124, %cst_57 {dimension_numbers = #tpu.dot_dimension_numbers<[1], [0], [0], [1], [0, 0, 1, 1], [], []>} : vector<2x32xf32>, vector<32x32xf32>, vector<2x32xf32> -> vector<2x32xf32>
    %c320 = arith.constant 320 : index
    %c0_58 = arith.constant 0 : index
    %126 = vector.load %arg1[%c320, %c0_58] : memref<856x128xf32, #tpu.memory_space<vmem>>, vector<1x32xf32>
    %127 = vector.broadcast %126 : vector<1x32xf32> to vector<2x32xf32>
    %128 = arith.addf %125, %127 : vector<2x32xf32>
    %c328 = arith.constant 328 : index
    %c0_59 = arith.constant 0 : index
    %129 = vector.load %arg1[%c328, %c0_59] : memref<856x128xf32, #tpu.memory_space<vmem>>, vector<32x64xf32>
    %cst_60 = arith.constant dense<0.000000e+00> : vector<6x64xf32>
    %130 = tpu.matmul %11, %129, %cst_60 {dimension_numbers = #tpu.dot_dimension_numbers<[1], [0], [0], [1], [0, 0, 1, 1], [], []>} : vector<6x32xf32>, vector<32x64xf32>, vector<6x64xf32> -> vector<6x64xf32>
    %c360 = arith.constant 360 : index
    %c0_61 = arith.constant 0 : index
    %131 = vector.load %arg1[%c360, %c0_61] : memref<856x128xf32, #tpu.memory_space<vmem>>, vector<1x64xf32>
    %132 = vector.broadcast %131 : vector<1x64xf32> to vector<6x64xf32>
    %133 = arith.addf %130, %132 : vector<6x64xf32>
    %c808 = arith.constant 808 : index
    %c0_62 = arith.constant 0 : index
    %134 = vector.load %arg1[%c808, %c0_62] : memref<856x128xf32, #tpu.memory_space<vmem>>, vector<32x4xf32>
    %c840 = arith.constant 840 : index
    %c0_63 = arith.constant 0 : index
    %135 = vector.load %arg1[%c840, %c0_63] : memref<856x128xf32, #tpu.memory_space<vmem>>, vector<4x32xf32>
    %136 = vector.extract_strided_slice %133 {offsets = [0, 0], sizes = [6, 32], strides = [1, 1]} : vector<6x64xf32> to vector<6x32xf32>
    %137 = vector.shape_cast %136 : vector<6x32xf32> to vector<2x3x32xf32>
    %138 = vector.extract_strided_slice %133 {offsets = [0, 32], sizes = [6, 32], strides = [1, 1]} : vector<6x64xf32> to vector<6x32xf32>
    %139 = vector.shape_cast %138 : vector<6x32xf32> to vector<2x3x32xf32>
    %140 = vector.shape_cast %128 : vector<2x32xf32> to vector<2x1x32xf32>
    %141 = vector.broadcast %140 : vector<2x1x32xf32> to vector<2x3x32xf32>
    %142 = arith.mulf %141, %137 : vector<2x3x32xf32>
    %143 = vector.shape_cast %142 : vector<2x3x32xf32> to vector<6x32xf32>
    %cst_64 = arith.constant dense<0.000000e+00> : vector<6x4xf32>
    %144 = tpu.matmul %143, %134, %cst_64 {dimension_numbers = #tpu.dot_dimension_numbers<[1], [0], [0], [1], [0, 0, 1, 1], [], []>} : vector<6x32xf32>, vector<32x4xf32>, vector<6x4xf32> -> vector<6x4xf32>
    %145 = vector.shape_cast %144 : vector<6x4xf32> to vector<2x3x4xf32>
    %cst_65 = arith.constant dense<0xFF800000> : vector<2x4xf32>
    %146 = vector.multi_reduction <maximumf>, %145, %cst_65 [1] : vector<2x3x4xf32> to vector<2x4xf32>
    %147 = vector.shape_cast %146 : vector<2x4xf32> to vector<2x1x4xf32>
    %148 = vector.broadcast %147 : vector<2x1x4xf32> to vector<2x3x4xf32>
    %149 = arith.subf %145, %148 : vector<2x3x4xf32>
    %150 = math.exp %149 : vector<2x3x4xf32>
    %cst_66 = arith.constant dense<0.000000e+00> : vector<2x4xf32>
    %151 = vector.multi_reduction <add>, %150, %cst_66 [1] : vector<2x3x4xf32> to vector<2x4xf32>
    %152 = vector.shape_cast %151 : vector<2x4xf32> to vector<2x1x4xf32>
    %153 = vector.broadcast %152 : vector<2x1x4xf32> to vector<2x3x4xf32>
    %154 = arith.divf %150, %153 : vector<2x3x4xf32>
    %155 = vector.shape_cast %154 : vector<2x3x4xf32> to vector<6x4xf32>
    %cst_67 = arith.constant dense<0.000000e+00> : vector<6x32xf32>
    %156 = tpu.matmul %155, %135, %cst_67 {dimension_numbers = #tpu.dot_dimension_numbers<[1], [0], [0], [1], [0, 0, 1, 1], [], []>} : vector<6x4xf32>, vector<4x32xf32>, vector<6x32xf32> -> vector<6x32xf32>
    %157 = vector.shape_cast %156 : vector<6x32xf32> to vector<2x3x32xf32>
    %158 = arith.mulf %157, %139 : vector<2x3x32xf32>
    %cst_68 = arith.constant dense<0.000000e+00> : vector<2x32xf32>
    %159 = vector.multi_reduction <add>, %158, %cst_68 [1] : vector<2x3x32xf32> to vector<2x32xf32>
    %c368 = arith.constant 368 : index
    %c0_69 = arith.constant 0 : index
    %160 = vector.load %arg1[%c368, %c0_69] : memref<856x128xf32, #tpu.memory_space<vmem>>, vector<32x32xf32>
    %cst_70 = arith.constant dense<0.000000e+00> : vector<2x32xf32>
    %161 = tpu.matmul %159, %160, %cst_70 {dimension_numbers = #tpu.dot_dimension_numbers<[1], [0], [0], [1], [0, 0, 1, 1], [], []>} : vector<2x32xf32>, vector<32x32xf32>, vector<2x32xf32> -> vector<2x32xf32>
    %c400 = arith.constant 400 : index
    %c0_71 = arith.constant 0 : index
    %162 = vector.load %arg1[%c400, %c0_71] : memref<856x128xf32, #tpu.memory_space<vmem>>, vector<1x32xf32>
    %163 = vector.broadcast %162 : vector<1x32xf32> to vector<2x32xf32>
    %164 = arith.addf %161, %163 : vector<2x32xf32>
    %c552 = arith.constant 552 : index
    %c0_72 = arith.constant 0 : index
    %165 = vector.load %arg1[%c552, %c0_72] : memref<856x128xf32, #tpu.memory_space<vmem>>, vector<1x64xf32>
    %166 = vector.broadcast %165 : vector<1x64xf32> to vector<2x64xf32>
    %167 = arith.mulf %114, %166 : vector<2x64xf32>
    %cst_73 = arith.constant dense<0.000000e+00> : vector<2xf32>
    %168 = vector.multi_reduction <add>, %167, %cst_73 [1] : vector<2x64xf32> to vector<2xf32>
    %169 = vector.shape_cast %168 : vector<2xf32> to vector<2x1xf32>
    %c560 = arith.constant 560 : index
    %c0_74 = arith.constant 0 : index
    %170 = vector.load %arg1[%c560, %c0_74] : memref<856x128xf32, #tpu.memory_space<vmem>>, vector<1x32xf32>
    %171 = vector.broadcast %170 : vector<1x32xf32> to vector<2x32xf32>
    %172 = arith.mulf %164, %171 : vector<2x32xf32>
    %cst_75 = arith.constant dense<0.000000e+00> : vector<2xf32>
    %173 = vector.multi_reduction <add>, %172, %cst_75 [1] : vector<2x32xf32> to vector<2xf32>
    %174 = vector.shape_cast %173 : vector<2xf32> to vector<2x1xf32>
    %175 = arith.addf %169, %174 : vector<2x1xf32>
    %c568 = arith.constant 568 : index
    %c0_76 = arith.constant 0 : index
    %176 = vector.load %arg1[%c568, %c0_76] : memref<856x128xf32, #tpu.memory_space<vmem>>, vector<1x32xf32>
    %177 = vector.broadcast %176 : vector<1x32xf32> to vector<2x32xf32>
    %178 = arith.mulf %63, %177 : vector<2x32xf32>
    %cst_77 = arith.constant dense<0.000000e+00> : vector<2xf32>
    %179 = vector.multi_reduction <add>, %178, %cst_77 [1] : vector<2x32xf32> to vector<2xf32>
    %180 = vector.shape_cast %179 : vector<2xf32> to vector<2x1xf32>
    %181 = arith.addf %175, %180 : vector<2x1xf32>
    %c576 = arith.constant 576 : index
    %c0_78 = arith.constant 0 : index
    %182 = vector.load %arg1[%c576, %c0_78] : memref<856x128xf32, #tpu.memory_space<vmem>>, vector<1x32xf32>
    %183 = vector.broadcast %182 : vector<1x32xf32> to vector<2x32xf32>
    %184 = arith.mulf %61, %183 : vector<2x32xf32>
    %cst_79 = arith.constant dense<0.000000e+00> : vector<2xf32>
    %185 = vector.multi_reduction <add>, %184, %cst_79 [1] : vector<2x32xf32> to vector<2xf32>
    %186 = vector.shape_cast %185 : vector<2xf32> to vector<2x1xf32>
    %187 = arith.addf %181, %186 : vector<2x1xf32>
    %c584 = arith.constant 584 : index
    %c0_80 = arith.constant 0 : index
    %188 = vector.load %arg1[%c584, %c0_80] : memref<856x128xf32, #tpu.memory_space<vmem>>, vector<1x16xf32>
    %189 = vector.broadcast %188 : vector<1x16xf32> to vector<2x16xf32>
    %190 = arith.mulf %24, %189 : vector<2x16xf32>
    %cst_81 = arith.constant dense<0.000000e+00> : vector<2xf32>
    %191 = vector.multi_reduction <add>, %190, %cst_81 [1] : vector<2x16xf32> to vector<2xf32>
    %192 = vector.shape_cast %191 : vector<2xf32> to vector<2x1xf32>
    %193 = arith.addf %187, %192 : vector<2x1xf32>
    %c592 = arith.constant 592 : index
    %c0_82 = arith.constant 0 : index
    %194 = vector.load %arg1[%c592, %c0_82] : memref<856x128xf32, #tpu.memory_space<vmem>>, vector<1x1xf32>
    %195 = vector.broadcast %194 : vector<1x1xf32> to vector<2x1xf32>
    %196 = arith.addf %193, %195 : vector<2x1xf32>
    %cst_83 = arith.constant 0.000000e+00 : f32
    %197 = vector.broadcast %cst_83 : f32 to vector<2x1xf32>
    %198 = arith.subf %197, %196 : vector<2x1xf32>
    %199 = math.exp %198 : vector<2x1xf32>
    %cst_84 = arith.constant 1.000000e+00 : f32
    %200 = vector.broadcast %cst_84 : f32 to vector<2x1xf32>
    %201 = arith.addf %200, %199 : vector<2x1xf32>
    %cst_85 = arith.constant 1.000000e+00 : f32
    %202 = vector.broadcast %cst_85 : f32 to vector<2x1xf32>
    %203 = arith.divf %202, %201 : vector<2x1xf32>
    %c600 = arith.constant 600 : index
    %c0_86 = arith.constant 0 : index
    %204 = vector.load %arg1[%c600, %c0_86] : memref<856x128xf32, #tpu.memory_space<vmem>>, vector<128x50xf32>
    %205 = vector.extract_strided_slice %204 {offsets = [0, 0], sizes = [32, 50], strides = [1, 1]} : vector<128x50xf32> to vector<32x50xf32>
    %cst_87 = arith.constant dense<0.000000e+00> : vector<2x50xf32>
    %206 = tpu.matmul %63, %205, %cst_87 {dimension_numbers = #tpu.dot_dimension_numbers<[1], [0], [0], [1], [0, 0, 1, 1], [], []>} : vector<2x32xf32>, vector<32x50xf32>, vector<2x50xf32> -> vector<2x50xf32>
    %207 = vector.extract_strided_slice %204 {offsets = [32, 0], sizes = [64, 50], strides = [1, 1]} : vector<128x50xf32> to vector<64x50xf32>
    %cst_88 = arith.constant dense<0.000000e+00> : vector<2x50xf32>
    %208 = tpu.matmul %114, %207, %cst_88 {dimension_numbers = #tpu.dot_dimension_numbers<[1], [0], [0], [1], [0, 0, 1, 1], [], []>} : vector<2x64xf32>, vector<64x50xf32>, vector<2x50xf32> -> vector<2x50xf32>
    %209 = arith.addf %206, %208 : vector<2x50xf32>
    %210 = vector.extract_strided_slice %204 {offsets = [96, 0], sizes = [32, 50], strides = [1, 1]} : vector<128x50xf32> to vector<32x50xf32>
    %cst_89 = arith.constant dense<0.000000e+00> : vector<2x50xf32>
    %211 = tpu.matmul %164, %210, %cst_89 {dimension_numbers = #tpu.dot_dimension_numbers<[1], [0], [0], [1], [0, 0, 1, 1], [], []>} : vector<2x32xf32>, vector<32x50xf32>, vector<2x50xf32> -> vector<2x50xf32>
    %212 = arith.addf %209, %211 : vector<2x50xf32>
    %c728 = arith.constant 728 : index
    %c0_90 = arith.constant 0 : index
    %213 = vector.load %arg1[%c728, %c0_90] : memref<856x128xf32, #tpu.memory_space<vmem>>, vector<1x50xf32>
    %214 = vector.broadcast %213 : vector<1x50xf32> to vector<2x50xf32>
    %215 = arith.addf %212, %214 : vector<2x50xf32>
    %cst_91 = arith.constant dense<0xFF800000> : vector<2xf32>
    %216 = vector.multi_reduction <maximumf>, %215, %cst_91 [1] : vector<2x50xf32> to vector<2xf32>
    %217 = vector.shape_cast %216 : vector<2xf32> to vector<2x1xf32>
    %218 = vector.broadcast %217 : vector<2x1xf32> to vector<2x50xf32>
    %219 = arith.subf %215, %218 : vector<2x50xf32>
    %220 = math.exp %219 : vector<2x50xf32>
    %cst_92 = arith.constant dense<0.000000e+00> : vector<2xf32>
    %221 = vector.multi_reduction <add>, %220, %cst_92 [1] : vector<2x50xf32> to vector<2xf32>
    %222 = vector.shape_cast %221 : vector<2xf32> to vector<2x1xf32>
    %223 = vector.broadcast %222 : vector<2x1xf32> to vector<2x50xf32>
    %224 = arith.divf %220, %223 : vector<2x50xf32>
    %225 = vector.broadcast %203 : vector<2x1xf32> to vector<2x50xf32>
    %226 = arith.mulf %225, %224 : vector<2x50xf32>
    %227 = tpu.concatenate %226, %6 in 1 : vector<2x50xf32>, vector<2x6xf32> -> vector<2x56xf32>
    %228 = vector.shape_cast %104 : vector<2x12x4xf32> to vector<24x4xf32>
    %c48 = arith.constant 48 : index
    %c0_93 = arith.constant 0 : index
    %229 = vector.load %arg0[%c48, %c0_93] : memref<120x128xf32, #tpu.memory_space<vmem>>, vector<24x1xf32>
    %230 = arith.fptosi %229 : vector<24x1xf32> to vector<24x1xi32>
    %231 = tpu.iota {dimensions = array<i32: 1>} : vector<1x56xi32>
    %232 = vector.broadcast %230 : vector<24x1xi32> to vector<24x56xi32>
    %233 = vector.broadcast %231 : vector<1x56xi32> to vector<24x56xi32>
    %234 = arith.cmpi eq, %232, %233 : vector<24x56xi32>
    %235 = arith.extui %234 : vector<24x56xi1> to vector<24x56xi32>
    %236 = arith.sitofp %235 : vector<24x56xi32> to vector<24x56xf32>
    %c848 = arith.constant 848 : index
    %c0_94 = arith.constant 0 : index
    %237 = vector.load %arg1[%c848, %c0_94] : memref<856x128xf32, #tpu.memory_space<vmem>>, vector<2x24xf32>
    %238 = vector.extract_strided_slice %228 {offsets = [0, 0], sizes = [24, 1], strides = [1, 1]} : vector<24x4xf32> to vector<24x1xf32>
    %239 = vector.broadcast %238 : vector<24x1xf32> to vector<24x56xf32>
    %240 = arith.mulf %239, %236 : vector<24x56xf32>
    %cst_95 = arith.constant dense<0.000000e+00> : vector<2x56xf32>
    %241 = tpu.matmul %237, %240, %cst_95 {dimension_numbers = #tpu.dot_dimension_numbers<[1], [0], [0], [1], [0, 0, 1, 1], [], []>} : vector<2x24xf32>, vector<24x56xf32>, vector<2x56xf32> -> vector<2x56xf32>
    %cst_96 = arith.constant 1.000000e+00 : f32
    %242 = vector.broadcast %cst_96 : f32 to vector<2x1xf32>
    %243 = arith.subf %242, %203 : vector<2x1xf32>
    %244 = vector.broadcast %243 : vector<2x1xf32> to vector<2x56xf32>
    %245 = arith.mulf %244, %241 : vector<2x56xf32>
    %246 = arith.addf %227, %245 : vector<2x56xf32>
    %c0_97 = arith.constant 0 : index
    %c0_98 = arith.constant 0 : index
    %247 = vector.load %arg2[%c0_97, %c0_98] : memref<72x128xf32, #tpu.memory_space<vmem>>, vector<2x56xf32>
    tpu.vector_store %arg2[%c0_97, %c0_98], %246 {strides = array<i32>} : memref<72x128xf32, #tpu.memory_space<vmem>>, vector<2x56xf32>,
    %c8_99 = arith.constant 8 : index
    %c0_100 = arith.constant 0 : index
    %248 = vector.load %arg2[%c8_99, %c0_100] : memref<72x128xf32, #tpu.memory_space<vmem>>, vector<2x32xf32>
    tpu.vector_store %arg2[%c8_99, %c0_100], %63 {strides = array<i32>} : memref<72x128xf32, #tpu.memory_space<vmem>>, vector<2x32xf32>,
    %c16_101 = arith.constant 16 : index
    %c0_102 = arith.constant 0 : index
    %249 = vector.load %arg2[%c16_101, %c0_102] : memref<72x128xf32, #tpu.memory_space<vmem>>, vector<2x32xf32>
    tpu.vector_store %arg2[%c16_101, %c0_102], %61 {strides = array<i32>} : memref<72x128xf32, #tpu.memory_space<vmem>>, vector<2x32xf32>,
    %c24_103 = arith.constant 24 : index
    %c0_104 = arith.constant 0 : index
    %250 = vector.load %arg2[%c24_103, %c0_104] : memref<72x128xf32, #tpu.memory_space<vmem>>, vector<2x64xf32>
    tpu.vector_store %arg2[%c24_103, %c0_104], %114 {strides = array<i32>} : memref<72x128xf32, #tpu.memory_space<vmem>>, vector<2x64xf32>,
    %c32_105 = arith.constant 32 : index
    %c0_106 = arith.constant 0 : index
    %251 = vector.load %arg2[%c32_105, %c0_106] : memref<72x128xf32, #tpu.memory_space<vmem>>, vector<2x32xf32>
    tpu.vector_store %arg2[%c32_105, %c0_106], %123 {strides = array<i32>} : memref<72x128xf32, #tpu.memory_space<vmem>>, vector<2x32xf32>,
    %c40_107 = arith.constant 40 : index
    %c0_108 = arith.constant 0 : index
    %252 = vector.load %arg2[%c40_107, %c0_108] : memref<72x128xf32, #tpu.memory_space<vmem>>, vector<24x4xf32>
    tpu.vector_store %arg2[%c40_107, %c0_108], %228 {strides = array<i32>} : memref<72x128xf32, #tpu.memory_space<vmem>>, vector<24x4xf32>,
    %253 = vector.shape_cast %154 : vector<2x3x4xf32> to vector<6x4xf32>
    %c64 = arith.constant 64 : index
    %c0_109 = arith.constant 0 : index
    %254 = vector.load %arg2[%c64, %c0_109] : memref<72x128xf32, #tpu.memory_space<vmem>>, vector<6x4xf32>
    tpu.vector_store %arg2[%c64, %c0_109], %253 {strides = array<i32>} : memref<72x128xf32, #tpu.memory_space<vmem>>, vector<6x4xf32>,
    return
  }
}

</mosaic_0001>

<llo_original>
// kernel: _decoder_step.1
$region0: #{_decoder_step.1}
  #allocation0 [shape = 'u32[]', space=smem, size = 0x4, offset = 0x4, fixed_abs, tag = 'smem constant byte address 0x4 - core index']
  #allocation1 [shape = 'u32[144,128]{1,0:T(1,128)}', space=vmem, size = 0x12000, scoped, tag = 'internal scratch']
  %s0 = inlined_call_operand.vmem [shape: f32[120,128], index: 0, kind: input, shape index: {}]
  %s1 = inlined_call_operand.hbm [shape: f32[856,128], index: 1, kind: input, shape index: {}]
  %s2 = inlined_call_operand.vmem [shape: f32[72,128], index: 2, kind: output, shape index: {}]
  %s3 = sld [smem:[#allocation0]]
  $region22: #{_decoder_step.1} parent=0
    _
  %s5 = ssub.s32 1, %s3
  %s6 = scalar_select 0, %s5, %s3
  $region1: #{_decoder_step.1} parent=0
    #allocation2 [shape = 'u8[438272]{0}', space=vmem, size = 0x6b000, scoped, tag = 'input window, operand 1, single buffered']
    #allocation3 [shape = 's32[1]{0}', space=sflag, size = 0x4, scoped, tag = 'scoped memory for _decoder_step.1']
    %7 = vsyncpa [#allocation3], 0
    // Predicated region
    $region2: #{_decoder_step.1} parent=1 // pred_check
      _
    $region3: #{_decoder_step.1} parent=1 // pred_check_branch
      %9 = sbr.rel (0) target = $region5
    $region4: #{_decoder_step.1} parent=1 // pred_region
      _
    $region5: #{_decoder_step.1} parent=1 // pred_fallthru
      _
    // Predicated region
    $region6: #{_decoder_step.1} parent=1 // pred_check
      _
    $region7: #{_decoder_step.1} parent=1 // pred_check_branch
      %11 = sbr.rel (0) target = $region9
    $region8: #{_decoder_step.1} parent=1 // pred_region
      %s13 = ssub.s32 13696, 13696
      %14 = vsyncadd [#allocation3], %s13
      %s15 = sshll.u32 [#allocation2], 4
      %s16 = int_to_ptr.vmem [resolvable:$true] %s15
      %21 = dma.hbm_to_vmem [thread:$0]  %s1, 13696, %s16, [#allocation3], 128, 128, 8
    $region9: #{_decoder_step.1} parent=1 // pred_fallthru
      _
    // Predicated region
    $region10: #{_decoder_step.1} parent=1 // pred_check
      _
    $region11: #{_decoder_step.1} parent=1 // pred_check_branch
      %23 = sbr.rel (0) target = $region13
    $region12: #{_decoder_step.1} parent=1 // pred_region
      %24 = dma.done [#allocation3], 13696
    $region13: #{_decoder_step.1} parent=1 // pred_fallthru
      _
    %25 = vst [vmem:[%s2] sm:$0xff] 0.0
    %26 = vst [vmem:[%s2 + $0x8] sm:$0xff] 0.0
    %27 = vst [vmem:[%s2 + $0x10] sm:$0xff] 0.0
    %28 = vst [vmem:[%s2 + $0x18] sm:$0xff] 0.0
    %29 = vst [vmem:[%s2 + $0x20] sm:$0xff] 0.0
    %30 = vst [vmem:[%s2 + $0x28] sm:$0xff] 0.0
    %31 = vst [vmem:[%s2 + $0x30] sm:$0xff] 0.0
    %32 = vst [vmem:[%s2 + $0x38] sm:$0xff] 0.0
    %33 = vst [vmem:[%s2 + $0x40] sm:$0xff] 0.0
    %v34 = vld [vmem:[%s0] sm:$0x3]
    %v35 = vld [vmem:[%s0 + $0x8] sm:$0x3]
    %v36 = vld [vmem:[%s0 + $0x10] sm:$0x3]
    %v37 = vld [vmem:[%s0 + $0x18] sm:$0x3]
    %v38 = vld [vmem:[%s0 + $0x20] sm:$0x3]
    %v39 = vld [vmem:[%s0 + $0x28] sm:$0x3]
    %v40 = vld [vmem:[%s0 + $0x48] sm:$0xff]
    %v41 = vld [vmem:[%s0 + $0x50] sm:$0xff]
    %v42 = vld [vmem:[%s0 + $0x58] sm:$0xff]
    %v43 = vld [vmem:[%s0 + $0x60] sm:$0xff]
    %v44 = vld [vmem:[%s0 + $0x68] sm:$0xff]
    %v45 = vld [vmem:[%s0 + $0x70] sm:$0x3f]
    %47 = vset.pattern.permute.xlu0 0
    %48 = vperm.xlu0 %47, %v41
    %v49 = vpop.permute.xlu0 %48
    %v51 = vmul.f32 %v40, %v49
    %v53 = vcombine.high %v51, %v51
    %vm55 = vcmask 125952
    %v56 = vsel %vm55, %v51, 0.0
    %v57 = vrot.slane %v56, 4
    %v58 = vadd.f32 %v56, %v57
    %v59 = vrot.slane %v58, 2
    %v60 = vadd.f32 %v58, %v59
    %v61 = vrot.slane %v60, 1
    %v62 = vadd.f32 %v60, %v61
    %v63 = vsel %vm55, %v53, 0.0
    %v64 = vrot.slane %v63, 4
    %v65 = vadd.f32 %v63, %v64
    %v66 = vrot.slane %v65, 2
    %v67 = vadd.f32 %v65, %v66
    %v68 = vrot.slane %v67, 1
    %v69 = vadd.f32 %v67, %v68
    %v70 = vld [vmem:[#allocation2 + $0x198] sm:$0xff]
    %v71 = vld [vmem:[#allocation2 + $0x1a0] sm:$0xff]
    %v72 = vld [vmem:[#allocation2 + $0x1a8] sm:$0xff]
    %v73 = vld [vmem:[#allocation2 + $0x1b0] sm:$0xff]
    %v74 = vld [vmem:[#allocation2 + $0x1b8] sm:$0xff]
    %v75 = vld [vmem:[#allocation2 + $0x1c0] sm:$0xff]
    %v76 = vld [vmem:[#allocation2 + $0x1c8] sm:$0xff]
    %v77 = vld [vmem:[#allocation2 + $0x1d0] sm:$0xff]
    %v78 = vld [vmem:[#allocation2 + $0x1d8] sm:$0xff]
    %v79 = vld [vmem:[#allocation2 + $0x1e0] sm:$0xff]
    %vm80 = vcmask 523264
    %v82 = vsel %vm80, %v37, 0
    %84 = vmatprep.subr.mxu0 0.0
    %85 = vmatpush1.msra.mxu0 0.0
    %86 = vmatprep.subr.mxu0 0.0
    %87 = vmatpush1.msra.mxu0 0.0
    %88 = vmatprep.subr.mxu0 0.0
    %89 = vmatpush1.msra.mxu0 0.0
    %90 = vmatprep.subr.mxu0 0.0
    %91 = vmatpush1.msra.mxu0 0.0
    %92 = vmatprep.subr.mxu0 0.0
    %93 = vmatpush1.msra.mxu0 0.0
    %94 = vmatprep.subr.mxu0 0.0
    %95 = vmatpush1.msra.mxu0 0.0
    %96 = vmatprep.subr.mxu0 0.0
    %97 = vmatpush1.msra.mxu0 0.0
    %98 = vmatprep.subr.mxu0 0.0
    %99 = vmatpush1.msra.mxu0 0.0
    %100 = vmatprep.subr.mxu0 0.0
    %101 = vmatpush1.msra.mxu0 %v79
    %102 = vmatprep.subr.mxu0 0.0
    %103 = vmatpush1.msra.mxu0 %v78
    %104 = vmatprep.subr.mxu0 0.0
    %105 = vmatpush1.msra.mxu0 %v77
    %106 = vmatprep.subr.mxu0 0.0
    %107 = vmatpush1.msra.mxu0 %v76
    %108 = vmatprep.subr.mxu0 0.0
    %109 = vmatpush1.msra.mxu0 %v75
    %110 = vmatprep.subr.mxu0 0.0
    %111 = vmatpush1.msra.mxu0 %v74
    %112 = vmatprep.subr.mxu0 0.0
    %113 = vmatpush1.msra.mxu0 %v73
    %114 = vmatprep.subr.mxu0 0.0
    %115 = vmatpush1.msra.mxu0 %v72
    %116 = vmatprep.subr.mxu0 0.0
    %117 = vmatpush2.msra.mxu0 0.0
    %118 = vmatprep.subr.mxu0 0.0
    %119 = vmatpush2.msra.mxu0 0.0
    %120 = vmatprep.subr.mxu0 0.0
    %121 = vmatpush2.msra.mxu0 0.0
    %122 = vmatprep.subr.mxu0 0.0
    %123 = vmatpush2.msra.mxu0 0.0
    %124 = vmatprep.subr.mxu0 0.0
    %125 = vmatpush2.msra.mxu0 0.0
    %126 = vmatprep.subr.mxu0 0.0
    %127 = vmatpush2.msra.mxu0 0.0
    %128 = vmatprep.subr.mxu0 0.0
    %129 = vmatpush2.msra.mxu0 0.0
    %130 = vmatprep.subr.mxu0 0.0
    %131 = vmatpush2.msra.mxu0 0.0
    %132 = vmatprep.subr.mxu0 0.0
    %133 = vmatpush2.msra.mxu0 0.0
    %134 = vmatprep.subr.mxu0 0.0
    %135 = vmatpush2.msra.mxu0 0.0
    %136 = vmatprep.subr.mxu0 0.0
    %137 = vmatpush2.msra.mxu0 0.0
    %138 = vmatprep.subr.mxu0 0.0
    %139 = vmatpush2.msra.mxu0 0.0
    %140 = vmatprep.subr.mxu0 0.0
    %141 = vmatpush2.msra.mxu0 0.0
    %142 = vmatprep.subr.mxu0 0.0
    %143 = vmatpush2.msra.mxu0 0.0
    %144 = vmatprep.subr.mxu0 0.0
    %145 = vmatpush2.msra.mxu0 0.0
    %146 = vmatprep.subr.mxu0 0.0
    %147 = vmatpush2.msra.mxu0 0.0
    %148 = vmatprep.mubr.f32.mxu0 0.0
    %149 = vmatmul.mubr.f32.gmra.mxu0 %v82
    %v150 = vpop.f32.mrf.mxu0
    %v151 = vadd.f32 0.0, %v150
    %v152 = vpop.f32.mrf.mxu0
    %153 = vdwg.mxu0
    %vm154 = vcmask 130048
    %v156 = vsel %vm154, %v34, 0
    %158 = vmatprep.subr.mxu0 0.0
    %159 = vmatpush1.msra.mxu0 0.0
    %160 = vmatprep.subr.mxu0 0.0
    %161 = vmatpush1.msra.mxu0 0.0
    %162 = vmatprep.subr.mxu0 0.0
    %163 = vmatpush1.msra.mxu0 0.0
    %164 = vmatprep.subr.mxu0 0.0
    %165 = vmatpush1.msra.mxu0 0.0
    %166 = vmatprep.subr.mxu0 0.0
    %167 = vmatpush1.msra.mxu0 0.0
    %168 = vmatprep.subr.mxu0 0.0
    %169 = vmatpush1.msra.mxu0 0.0
    %170 = vmatprep.subr.mxu0 0.0
    %171 = vmatpush1.msra.mxu0 0.0
    %172 = vmatprep.subr.mxu0 0.0
    %173 = vmatpush1.msra.mxu0 0.0
    %174 = vmatprep.subr.mxu0 0.0
    %175 = vmatpush1.msra.mxu0 0.0
    %176 = vmatprep.subr.mxu0 0.0
    %177 = vmatpush1.msra.mxu0 0.0
    %178 = vmatprep.subr.mxu0 0.0
    %179 = vmatpush1.msra.mxu0 0.0
    %180 = vmatprep.subr.mxu0 0.0
    %181 = vmatpush1.msra.mxu0 0.0
    %182 = vmatprep.subr.mxu0 0.0
    %183 = vmatpush1.msra.mxu0 0.0
    %184 = vmatprep.subr.mxu0 0.0
    %185 = vmatpush1.msra.mxu0 0.0
    %186 = vmatprep.subr.mxu0 0.0
    %187 = vmatpush1.msra.mxu0 %v71
    %188 = vmatprep.subr.mxu0 0.0
    %189 = vmatpush1.msra.mxu0 %v70
    %190 = vmatprep.subr.mxu0 0.0
    %191 = vmatpush2.msra.mxu0 0.0
    %192 = vmatprep.subr.mxu0 0.0
    %193 = vmatpush2.msra.mxu0 0.0
    %194 = vmatprep.subr.mxu0 0.0
    %195 = vmatpush2.msra.mxu0 0.0
    %196 = vmatprep.subr.mxu0 0.0
    %197 = vmatpush2.msra.mxu0 0.0
    %198 = vmatprep.subr.mxu0 0.0
    %199 = vmatpush2.msra.mxu0 0.0
    %200 = vmatprep.subr.mxu0 0.0
    %201 = vmatpush2.msra.mxu0 0.0
    %202 = vmatprep.subr.mxu0 0.0
    %203 = vmatpush2.msra.mxu0 0.0
    %204 = vmatprep.subr.mxu0 0.0
    %205 = vmatpush2.msra.mxu0 0.0
    %206 = vmatprep.subr.mxu0 0.0
    %207 = vmatpush2.msra.mxu0 0.0
    %208 = vmatprep.subr.mxu0 0.0
    %209 = vmatpush2.msra.mxu0 0.0
    %210 = vmatprep.subr.mxu0 0.0
    %211 = vmatpush2.msra.mxu0 0.0
    %212 = vmatprep.subr.mxu0 0.0
    %213 = vmatpush2.msra.mxu0 0.0
    %214 = vmatprep.subr.mxu0 0.0
    %215 = vmatpush2.msra.mxu0 0.0
    %216 = vmatprep.subr.mxu0 0.0
    %217 = vmatpush2.msra.mxu0 0.0
    %218 = vmatprep.subr.mxu0 0.0
    %219 = vmatpush2.msra.mxu0 0.0
    %220 = vmatprep.subr.mxu0 0.0
    %221 = vmatpush2.msra.mxu0 0.0
    %222 = vmatprep.mubr.f32.mxu0 0.0
    %223 = vmatmul.mubr.f32.gmra.mxu0 %v156
    %v224 = vpop.f32.mrf.mxu0
    %v225 = vadd.f32 %v151, %v224
    %v226 = vpop.f32.mrf.mxu0
    %227 = vdwg.mxu0
    %v228 = vld [vmem:[#allocation2 + $0x1e8] sm:$0x1]
    %v229 = vlaneseq
    %v230 = vshrl.u32 %v229, 7
    %v231 = vsub.s32 0, %v230
    %v232 = vrot.slane %v228, %v231
    %v233 = vadd.f32 %v225, %v232
    %v234 = vld [vmem:[#allocation2 + $0x1f0] sm:$0xff]
    %v235 = vld [vmem:[#allocation2 + $0x1f8] sm:$0xff]
    %v236 = vld [vmem:[#allocation2 + $0x200] sm:$0xff]
    %v237 = vld [vmem:[#allocation2 + $0x208] sm:$0xff]
    %v238 = vld [vmem:[#allocation2 + $0x210] sm:$0xff]
    %v239 = vld [vmem:[#allocation2 + $0x218] sm:$0xff]
    %vm240 = vcmask 261120
    %v242 = vsel %vm240, %v35, 0
    %244 = vmatprep.subr.mxu0 0.0
    %245 = vmatpush1.msra.mxu0 0.0
    %246 = vmatprep.subr.mxu0 0.0
    %247 = vmatpush1.msra.mxu0 0.0
    %248 = vmatprep.subr.mxu0 0.0
    %249 = vmatpush1.msra.mxu0 0.0
    %250 = vmatprep.subr.mxu0 0.0
    %251 = vmatpush1.msra.mxu0 0.0
    %252 = vmatprep.subr.mxu0 0.0
    %253 = vmatpush1.msra.mxu0 0.0
    %254 = vmatprep.subr.mxu0 0.0
    %255 = vmatpush1.msra.mxu0 0.0
    %256 = vmatprep.subr.mxu0 0.0
    %257 = vmatpush1.msra.mxu0 0.0
    %258 = vmatprep.subr.mxu0 0.0
    %259 = vmatpush1.msra.mxu0 0.0
    %260 = vmatprep.subr.mxu0 0.0
    %261 = vmatpush1.msra.mxu0 0.0
    %262 = vmatprep.subr.mxu0 0.0
    %263 = vmatpush1.msra.mxu0 0.0
    %264 = vmatprep.subr.mxu0 0.0
    %265 = vmatpush1.msra.mxu0 0.0
    %266 = vmatprep.subr.mxu0 0.0
    %267 = vmatpush1.msra.mxu0 0.0
    %268 = vmatprep.subr.mxu0 0.0
    %269 = vmatpush1.msra.mxu0 %v239
    %270 = vmatprep.subr.mxu0 0.0
    %271 = vmatpush1.msra.mxu0 %v238
    %272 = vmatprep.subr.mxu0 0.0
    %273 = vmatpush1.msra.mxu0 %v237
    %274 = vmatprep.subr.mxu0 0.0
    %275 = vmatpush1.msra.mxu0 %v236
    %276 = vmatprep.subr.mxu0 0.0
    %277 = vmatpush2.msra.mxu0 0.0
    %278 = vmatprep.subr.mxu0 0.0
    %279 = vmatpush2.msra.mxu0 0.0
    %280 = vmatprep.subr.mxu0 0.0
    %281 = vmatpush2.msra.mxu0 0.0
    %282 = vmatprep.subr.mxu0 0.0
    %283 = vmatpush2.msra.mxu0 0.0
    %284 = vmatprep.subr.mxu0 0.0
    %285 = vmatpush2.msra.mxu0 0.0
    %286 = vmatprep.subr.mxu0 0.0
    %287 = vmatpush2.msra.mxu0 0.0
    %288 = vmatprep.subr.mxu0 0.0
    %289 = vmatpush2.msra.mxu0 0.0
    %290 = vmatprep.subr.mxu0 0.0
    %291 = vmatpush2.msra.mxu0 0.0
    %292 = vmatprep.subr.mxu0 0.0
    %293 = vmatpush2.msra.mxu0 0.0
    %294 = vmatprep.subr.mxu0 0.0
    %295 = vmatpush2.msra.mxu0 0.0
    %296 = vmatprep.subr.mxu0 0.0
    %297 = vmatpush2.msra.mxu0 0.0
    %298 = vmatprep.subr.mxu0 0.0
    %299 = vmatpush2.msra.mxu0 0.0
    %300 = vmatprep.subr.mxu0 0.0
    %301 = vmatpush2.msra.mxu0 0.0
    %302 = vmatprep.subr.mxu0 0.0
    %303 = vmatpush2.msra.mxu0 0.0
    %304 = vmatprep.subr.mxu0 0.0
    %305 = vmatpush2.msra.mxu0 0.0
    %306 = vmatprep.subr.mxu0 0.0
    %307 = vmatpush2.msra.mxu0 0.0
    %308 = vmatprep.mubr.f32.mxu0 0.0
    %309 = vmatmul.mubr.f32.gmra.mxu0 %v242
    %v310 = vpop.f32.mrf.mxu0
    %v311 = vadd.f32 0.0, %v310
    %v312 = vpop.f32.mrf.mxu0
    %313 = vdwg.mxu0
    %v315 = vsel %vm154, %v233, 0
    %317 = vmatprep.subr.mxu0 0.0
    %318 = vmatpush1.msra.mxu0 0.0
    %319 = vmatprep.subr.mxu0 0.0
    %320 = vmatpush1.msra.mxu0 0.0
    %321 = vmatprep.subr.mxu0 0.0
    %322 = vmatpush1.msra.mxu0 0.0
    %323 = vmatprep.subr.mxu0 0.0
    %324 = vmatpush1.msra.mxu0 0.0
    %325 = vmatprep.subr.mxu0 0.0
    %326 = vmatpush1.msra.mxu0 0.0
    %327 = vmatprep.subr.mxu0 0.0
    %328 = vmatpush1.msra.mxu0 0.0
    %329 = vmatprep.subr.mxu0 0.0
    %330 = vmatpush1.msra.mxu0 0.0
    %331 = vmatprep.subr.mxu0 0.0
    %332 = vmatpush1.msra.mxu0 0.0
    %333 = vmatprep.subr.mxu0 0.0
    %334 = vmatpush1.msra.mxu0 0.0
    %335 = vmatprep.subr.mxu0 0.0
    %336 = vmatpush1.msra.mxu0 0.0
    %337 = vmatprep.subr.mxu0 0.0
    %338 = vmatpush1.msra.mxu0 0.0
    %339 = vmatprep.subr.mxu0 0.0
    %340 = vmatpush1.msra.mxu0 0.0
    %341 = vmatprep.subr.mxu0 0.0
    %342 = vmatpush1.msra.mxu0 0.0
    %343 = vmatprep.subr.mxu0 0.0
    %344 = vmatpush1.msra.mxu0 0.0
    %345 = vmatprep.subr.mxu0 0.0
    %346 = vmatpush1.msra.mxu0 %v235
    %347 = vmatprep.subr.mxu0 0.0
    %348 = vmatpush1.msra.mxu0 %v234
    %349 = vmatprep.subr.mxu0 0.0
    %350 = vmatpush2.msra.mxu0 0.0
    %351 = vmatprep.subr.mxu0 0.0
    %352 = vmatpush2.msra.mxu0 0.0
    %353 = vmatprep.subr.mxu0 0.0
    %354 = vmatpush2.msra.mxu0 0.0
    %355 = vmatprep.subr.mxu0 0.0
    %356 = vmatpush2.msra.mxu0 0.0
    %357 = vmatprep.subr.mxu0 0.0
    %358 = vmatpush2.msra.mxu0 0.0
    %359 = vmatprep.subr.mxu0 0.0
    %360 = vmatpush2.msra.mxu0 0.0
    %361 = vmatprep.subr.mxu0 0.0
    %362 = vmatpush2.msra.mxu0 0.0
    %363 = vmatprep.subr.mxu0 0.0
    %364 = vmatpush2.msra.mxu0 0.0
    %365 = vmatprep.subr.mxu0 0.0
    %366 = vmatpush2.msra.mxu0 0.0
    %367 = vmatprep.subr.mxu0 0.0
    %368 = vmatpush2.msra.mxu0 0.0
    %369 = vmatprep.subr.mxu0 0.0
    %370 = vmatpush2.msra.mxu0 0.0
    %371 = vmatprep.subr.mxu0 0.0
    %372 = vmatpush2.msra.mxu0 0.0
    %373 = vmatprep.subr.mxu0 0.0
    %374 = vmatpush2.msra.mxu0 0.0
    %375 = vmatprep.subr.mxu0 0.0
    %376 = vmatpush2.msra.mxu0 0.0
    %377 = vmatprep.subr.mxu0 0.0
    %378 = vmatpush2.msra.mxu0 0.0
    %379 = vmatprep.subr.mxu0 0.0
    %380 = vmatpush2.msra.mxu0 0.0
    %381 = vmatprep.mubr.f32.mxu0 0.0
    %382 = vmatmul.mubr.f32.gmra.mxu0 %v315
    %v383 = vpop.f32.mrf.mxu0
    %v384 = vadd.f32 %v311, %v383
    %v385 = vpop.f32.mrf.mxu0
    %386 = vdwg.mxu0
    %v387 = vld [vmem:[#allocation2 + $0x220] sm:$0x1]
    %v388 = vlaneseq
    %v389 = vshrl.u32 %v388, 7
    %v390 = vsub.s32 0, %v389
    %v391 = vrot.slane %v387, %v390
    %v392 = vadd.f32 %v384, %v391
    %v393 = vsub.f32 0.0, %v392
    %v394 = vmul.f32 %v393, 1.442695
    %v395 = vpow.pop %v394
    %v396 = vadd.f32 %v395, 1.0
    %v397 = vrcp.pop %v396
    %v398 = vmul.f32 1.0, %v397
    %v399 = vtanh.pop %v392
    %401 = vrot.lane.b32.xlu0 %v36, 32
    %v402 = vpop.permute.xlu0 %401
    %v404 = vmul.f32 %v398, %v402
    %406 = vrot.lane.b32.xlu0 %v399, 64
    %v407 = vpop.permute.xlu0 %406
    %v409 = vmul.f32 %v398, %v407
    %411 = vrot.lane.b32.xlu0 %v409, 32
    %v412 = vpop.permute.xlu0 %411
    %v414 = vadd.f32 %v404, %v412
    %v415 = vtanh.pop %v414
    %417 = vrot.lane.b32.xlu0 %v415, 64
    %v418 = vpop.permute.xlu0 %417
    %v420 = vmul.f32 %v398, %v418
    %v421 = vld [vmem:[#allocation2] sm:$0xff]
    %v422 = vld [vmem:[#allocation2 + $0x8] sm:$0xff]
    %v423 = vld [vmem:[#allocation2 + $0x10] sm:$0xff]
    %v424 = vld [vmem:[#allocation2 + $0x18] sm:$0xff]
    %v425 = vld [vmem:[#allocation2 + $0x20] sm:$0xff]
    %v426 = vld [vmem:[#allocation2 + $0x28] sm:$0xff]
    %v427 = vld [vmem:[#allocation2 + $0x30] sm:$0xff]
    %v428 = vld [vmem:[#allocation2 + $0x38] sm:$0xff]
    %v429 = vld [vmem:[#allocation2 + $0x40] sm:$0xff]
    %v430 = vld [vmem:[#allocation2 + $0x48] sm:$0xff]
    %432 = vrot.lane.b32.xlu0 %v414, 96
    %v433 = vpop.permute.xlu0 %432
    %v434 = vsel %vm240, %v433, 0
    %436 = vmatprep.subr.mxu0 0.0
    %437 = vmatpush1.msra.mxu0 0.0
    %438 = vmatprep.subr.mxu0 0.0
    %439 = vmatpush1.msra.mxu0 0.0
    %440 = vmatprep.subr.mxu0 0.0
    %441 = vmatpush1.msra.mxu0 0.0
    %442 = vmatprep.subr.mxu0 0.0
    %443 = vmatpush1.msra.mxu0 0.0
    %444 = vmatprep.subr.mxu0 0.0
    %445 = vmatpush1.msra.mxu0 0.0
    %446 = vmatprep.subr.mxu0 0.0
    %447 = vmatpush1.msra.mxu0 0.0
    %448 = vmatprep.subr.mxu0 0.0
    %449 = vmatpush1.msra.mxu0 0.0
    %450 = vmatprep.subr.mxu0 0.0
    %451 = vmatpush1.msra.mxu0 0.0
    %452 = vmatprep.subr.mxu0 0.0
    %453 = vmatpush1.msra.mxu0 0.0
    %454 = vmatprep.subr.mxu0 0.0
    %455 = vmatpush1.msra.mxu0 0.0
    %456 = vmatprep.subr.mxu0 0.0
    %457 = vmatpush1.msra.mxu0 0.0
    %458 = vmatprep.subr.mxu0 0.0
    %459 = vmatpush1.msra.mxu0 0.0
    %460 = vmatprep.subr.mxu0 0.0
    %461 = vmatpush1.msra.mxu0 %v428
    %462 = vmatprep.subr.mxu0 0.0
    %463 = vmatpush1.msra.mxu0 %v427
    %464 = vmatprep.subr.mxu0 0.0
    %465 = vmatpush1.msra.mxu0 %v426
    %466 = vmatprep.subr.mxu0 0.0
    %467 = vmatpush1.msra.mxu0 %v425
    %468 = vmatprep.subr.mxu0 0.0
    %469 = vmatpush2.msra.mxu0 0.0
    %470 = vmatprep.subr.mxu0 0.0
    %471 = vmatpush2.msra.mxu0 0.0
    %472 = vmatprep.subr.mxu0 0.0
    %473 = vmatpush2.msra.mxu0 0.0
    %474 = vmatprep.subr.mxu0 0.0
    %475 = vmatpush2.msra.mxu0 0.0
    %476 = vmatprep.subr.mxu0 0.0
    %477 = vmatpush2.msra.mxu0 0.0
    %478 = vmatprep.subr.mxu0 0.0
    %479 = vmatpush2.msra.mxu0 0.0
    %480 = vmatprep.subr.mxu0 0.0
    %481 = vmatpush2.msra.mxu0 0.0
    %482 = vmatprep.subr.mxu0 0.0
    %483 = vmatpush2.msra.mxu0 0.0
    %484 = vmatprep.subr.mxu0 0.0
    %485 = vmatpush2.msra.mxu0 0.0
    %486 = vmatprep.subr.mxu0 0.0
    %487 = vmatpush2.msra.mxu0 0.0
    %488 = vmatprep.subr.mxu0 0.0
    %489 = vmatpush2.msra.mxu0 0.0
    %490 = vmatprep.subr.mxu0 0.0
    %491 = vmatpush2.msra.mxu0 0.0
    %492 = vmatprep.subr.mxu0 0.0
    %493 = vmatpush2.msra.mxu0 0.0
    %494 = vmatprep.subr.mxu0 0.0
    %495 = vmatpush2.msra.mxu0 0.0
    %496 = vmatprep.subr.mxu0 0.0
    %497 = vmatpush2.msra.mxu0 0.0
    %498 = vmatprep.subr.mxu0 0.0
    %499 = vmatpush2.msra.mxu0 0.0
    %500 = vmatprep.mubr.f32.mxu0 0.0
    %501 = vmatmul.mubr.f32.gmra.mxu0 %v434
    %v502 = vpop.f32.mrf.mxu0
    %v503 = vadd.f32 0.0, %v502
    %v504 = vpop.f32.mrf.mxu0
    %505 = vdwg.mxu0
    %507 = vrot.lane.b32.xlu0 %v420, 32
    %v508 = vpop.permute.xlu0 %507
    %v509 = vsel %vm240, %v508, 0
    %511 = vmatprep.subr.mxu0 0.0
    %512 = vmatpush1.msra.mxu0 0.0
    %513 = vmatprep.subr.mxu0 0.0
    %514 = vmatpush1.msra.mxu0 0.0
    %515 = vmatprep.subr.mxu0 0.0
    %516 = vmatpush1.msra.mxu0 0.0
    %517 = vmatprep.subr.mxu0 0.0
    %518 = vmatpush1.msra.mxu0 0.0
    %519 = vmatprep.subr.mxu0 0.0
    %520 = vmatpush1.msra.mxu0 0.0
    %521 = vmatprep.subr.mxu0 0.0
    %522 = vmatpush1.msra.mxu0 0.0
    %523 = vmatprep.subr.mxu0 0.0
    %524 = vmatpush1.msra.mxu0 0.0
    %525 = vmatprep.subr.mxu0 0.0
    %526 = vmatpush1.msra.mxu0 0.0
    %527 = vmatprep.subr.mxu0 0.0
    %528 = vmatpush1.msra.mxu0 0.0
    %529 = vmatprep.subr.mxu0 0.0
    %530 = vmatpush1.msra.mxu0 0.0
    %531 = vmatprep.subr.mxu0 0.0
    %532 = vmatpush1.msra.mxu0 0.0
    %533 = vmatprep.subr.mxu0 0.0
    %534 = vmatpush1.msra.mxu0 0.0
    %535 = vmatprep.subr.mxu0 0.0
    %536 = vmatpush1.msra.mxu0 %v424
    %537 = vmatprep.subr.mxu0 0.0
    %538 = vmatpush1.msra.mxu0 %v423
    %539 = vmatprep.subr.mxu0 0.0
    %540 = vmatpush1.msra.mxu0 %v422
    %541 = vmatprep.subr.mxu0 0.0
    %542 = vmatpush1.msra.mxu0 %v421
    %543 = vmatprep.subr.mxu0 0.0
    %544 = vmatpush2.msra.mxu0 0.0
    %545 = vmatprep.subr.mxu0 0.0
    %546 = vmatpush2.msra.mxu0 0.0
    %547 = vmatprep.subr.mxu0 0.0
    %548 = vmatpush2.msra.mxu0 0.0
    %549 = vmatprep.subr.mxu0 0.0
    %550 = vmatpush2.msra.mxu0 0.0
    %551 = vmatprep.subr.mxu0 0.0
    %552 = vmatpush2.msra.mxu0 0.0
    %553 = vmatprep.subr.mxu0 0.0
    %554 = vmatpush2.msra.mxu0 0.0
    %555 = vmatprep.subr.mxu0 0.0
    %556 = vmatpush2.msra.mxu0 0.0
    %557 = vmatprep.subr.mxu0 0.0
    %558 = vmatpush2.msra.mxu0 0.0
    %559 = vmatprep.subr.mxu0 0.0
    %560 = vmatpush2.msra.mxu0 0.0
    %561 = vmatprep.subr.mxu0 0.0
    %562 = vmatpush2.msra.mxu0 0.0
    %563 = vmatprep.subr.mxu0 0.0
    %564 = vmatpush2.msra.mxu0 0.0
    %565 = vmatprep.subr.mxu0 0.0
    %566 = vmatpush2.msra.mxu0 0.0
    %567 = vmatprep.subr.mxu0 0.0
    %568 = vmatpush2.msra.mxu0 0.0
    %569 = vmatprep.subr.mxu0 0.0
    %570 = vmatpush2.msra.mxu0 0.0
    %571 = vmatprep.subr.mxu0 0.0
    %572 = vmatpush2.msra.mxu0 0.0
    %573 = vmatprep.subr.mxu0 0.0
    %574 = vmatpush2.msra.mxu0 0.0
    %575 = vmatprep.mubr.f32.mxu0 0.0
    %576 = vmatmul.mubr.f32.gmra.mxu0 %v509
    %v577 = vpop.f32.mrf.mxu0
    %v578 = vadd.f32 %v503, %v577
    %v579 = vpop.f32.mrf.mxu0
    %580 = vdwg.mxu0
    %vm583 = vcmask 1041409
    %v584 = vsel %vm583, %v69, %v62
    %v585 = vsel %vm154, %v584, 0
    %587 = vmatprep.subr.mxu0 0.0
    %588 = vmatpush1.msra.mxu0 0.0
    %589 = vmatprep.subr.mxu0 0.0
    %590 = vmatpush1.msra.mxu0 0.0
    %591 = vmatprep.subr.mxu0 0.0
    %592 = vmatpush1.msra.mxu0 0.0
    %593 = vmatprep.subr.mxu0 0.0
    %594 = vmatpush1.msra.mxu0 0.0
    %595 = vmatprep.subr.mxu0 0.0
    %596 = vmatpush1.msra.mxu0 0.0
    %597 = vmatprep.subr.mxu0 0.0
    %598 = vmatpush1.msra.mxu0 0.0
    %599 = vmatprep.subr.mxu0 0.0
    %600 = vmatpush1.msra.mxu0 0.0
    %601 = vmatprep.subr.mxu0 0.0
    %602 = vmatpush1.msra.mxu0 0.0
    %603 = vmatprep.subr.mxu0 0.0
    %604 = vmatpush1.msra.mxu0 0.0
    %605 = vmatprep.subr.mxu0 0.0
    %606 = vmatpush1.msra.mxu0 0.0
    %607 = vmatprep.subr.mxu0 0.0
    %608 = vmatpush1.msra.mxu0 0.0
    %609 = vmatprep.subr.mxu0 0.0
    %610 = vmatpush1.msra.mxu0 0.0
    %611 = vmatprep.subr.mxu0 0.0
    %612 = vmatpush1.msra.mxu0 0.0
    %613 = vmatprep.subr.mxu0 0.0
    %614 = vmatpush1.msra.mxu0 0.0
    %615 = vmatprep.subr.mxu0 0.0
    %616 = vmatpush1.msra.mxu0 %v430
    %617 = vmatprep.subr.mxu0 0.0
    %618 = vmatpush1.msra.mxu0 %v429
    %619 = vmatprep.subr.mxu0 0.0
    %620 = vmatpush2.msra.mxu0 0.0
    %621 = vmatprep.subr.mxu0 0.0
    %622 = vmatpush2.msra.mxu0 0.0
    %623 = vmatprep.subr.mxu0 0.0
    %624 = vmatpush2.msra.mxu0 0.0
    %625 = vmatprep.subr.mxu0 0.0
    %626 = vmatpush2.msra.mxu0 0.0
    %627 = vmatprep.subr.mxu0 0.0
    %628 = vmatpush2.msra.mxu0 0.0
    %629 = vmatprep.subr.mxu0 0.0
    %630 = vmatpush2.msra.mxu0 0.0
    %631 = vmatprep.subr.mxu0 0.0
    %632 = vmatpush2.msra.mxu0 0.0
    %633 = vmatprep.subr.mxu0 0.0
    %634 = vmatpush2.msra.mxu0 0.0
    %635 = vmatprep.subr.mxu0 0.0
    %636 = vmatpush2.msra.mxu0 0.0
    %637 = vmatprep.subr.mxu0 0.0
    %638 = vmatpush2.msra.mxu0 0.0
    %639 = vmatprep.subr.mxu0 0.0
    %640 = vmatpush2.msra.mxu0 0.0
    %641 = vmatprep.subr.mxu0 0.0
    %642 = vmatpush2.msra.mxu0 0.0
    %643 = vmatprep.subr.mxu0 0.0
    %644 = vmatpush2.msra.mxu0 0.0
    %645 = vmatprep.subr.mxu0 0.0
    %646 = vmatpush2.msra.mxu0 0.0
    %647 = vmatprep.subr.mxu0 0.0
    %648 = vmatpush2.msra.mxu0 0.0
    %649 = vmatprep.subr.mxu0 0.0
    %650 = vmatpush2.msra.mxu0 0.0
    %651 = vmatprep.mubr.f32.mxu0 0.0
    %652 = vmatmul.mubr.f32.gmra.mxu0 %v585
    %v653 = vpop.f32.mrf.mxu0
    %v654 = vadd.f32 0.0, %v653
    %v655 = vpop.f32.mrf.mxu0
    %656 = vdwg.mxu0
    %v657 = vadd.f32 %v578, %v654
    %v658 = vld [vmem:[#allocation2 + $0x50] sm:$0x1]
    %v659 = vlaneseq
    %v660 = vshrl.u32 %v659, 7
    %v661 = vsub.s32 0, %v660
    %v662 = vrot.slane %v658, %v661
    %v663 = vadd.f32 %v657, %v662
    %v664 = vld [vmem:[#allocation2 + $0x58] sm:$0xff]
    %v665 = vld [vmem:[#allocation2 + $0x60] sm:$0xff]
    %v666 = vld [vmem:[#allocation2 + $0x68] sm:$0xff]
    %v667 = vld [vmem:[#allocation2 + $0x70] sm:$0xff]
    %v668 = vld [vmem:[#allocation2 + $0x78] sm:$0xff]
    %v669 = vld [vmem:[#allocation2 + $0x80] sm:$0xff]
    %v670 = vld [vmem:[#allocation2 + $0x88] sm:$0xff]
    %v671 = vld [vmem:[#allocation2 + $0x90] sm:$0xff]
    %v672 = vld [vmem:[#allocation2 + $0x98] sm:$0x1]
    %v673 = vlaneseq
    %v674 = vshrl.u32 %v673, 7
    %v675 = vsub.s32 0, %v674
    %v676 = vrot.slane %v672, %v675
    %v678 = vsel %vm80, %v42, 0
    %v681 = vsel %vm80, %v43, 0
    %v684 = vsel %vm80, %v44, 0
    %686 = vmatprep.subr.mxu0 0.0
    %687 = vmatpush1.msra.mxu0 0.0
    %688 = vmatprep.subr.mxu0 0.0
    %689 = vmatpush1.msra.mxu0 0.0
    %690 = vmatprep.subr.mxu0 0.0
    %691 = vmatpush1.msra.mxu0 0.0
    %692 = vmatprep.subr.mxu0 0.0
    %693 = vmatpush1.msra.mxu0 0.0
    %694 = vmatprep.subr.mxu0 0.0
    %695 = vmatpush1.msra.mxu0 0.0
    %696 = vmatprep.subr.mxu0 0.0
    %697 = vmatpush1.msra.mxu0 0.0
    %698 = vmatprep.subr.mxu0 0.0
    %699 = vmatpush1.msra.mxu0 0.0
    %700 = vmatprep.subr.mxu0 0.0
    %701 = vmatpush1.msra.mxu0 0.0
    %702 = vmatprep.subr.mxu0 0.0
    %703 = vmatpush1.msra.mxu0 %v671
    %704 = vmatprep.subr.mxu0 0.0
    %705 = vmatpush1.msra.mxu0 %v670
    %706 = vmatprep.subr.mxu0 0.0
    %707 = vmatpush1.msra.mxu0 %v669
    %708 = vmatprep.subr.mxu0 0.0
    %709 = vmatpush1.msra.mxu0 %v668
    %710 = vmatprep.subr.mxu0 0.0
    %711 = vmatpush1.msra.mxu0 %v667
    %712 = vmatprep.subr.mxu0 0.0
    %713 = vmatpush1.msra.mxu0 %v666
    %714 = vmatprep.subr.mxu0 0.0
    %715 = vmatpush1.msra.mxu0 %v665
    %716 = vmatprep.subr.mxu0 0.0
    %717 = vmatpush1.msra.mxu0 %v664
    %718 = vmatprep.subr.mxu0 0.0
    %719 = vmatpush2.msra.mxu0 0.0
    %720 = vmatprep.subr.mxu0 0.0
    %721 = vmatpush2.msra.mxu0 0.0
    %722 = vmatprep.subr.mxu0 0.0
    %723 = vmatpush2.msra.mxu0 0.0
    %724 = vmatprep.subr.mxu0 0.0
    %725 = vmatpush2.msra.mxu0 0.0
    %726 = vmatprep.subr.mxu0 0.0
    %727 = vmatpush2.msra.mxu0 0.0
    %728 = vmatprep.subr.mxu0 0.0
    %729 = vmatpush2.msra.mxu0 0.0
    %730 = vmatprep.subr.mxu0 0.0
    %731 = vmatpush2.msra.mxu0 0.0
    %732 = vmatprep.subr.mxu0 0.0
    %733 = vmatpush2.msra.mxu0 0.0
    %734 = vmatprep.subr.mxu0 0.0
    %735 = vmatpush2.msra.mxu0 0.0
    %736 = vmatprep.subr.mxu0 0.0
    %737 = vmatpush2.msra.mxu0 0.0
    %738 = vmatprep.subr.mxu0 0.0
    %739 = vmatpush2.msra.mxu0 0.0
    %740 = vmatprep.subr.mxu0 0.0
    %741 = vmatpush2.msra.mxu0 0.0
    %742 = vmatprep.subr.mxu0 0.0
    %743 = vmatpush2.msra.mxu0 0.0
    %744 = vmatprep.subr.mxu0 0.0
    %745 = vmatpush2.msra.mxu0 0.0
    %746 = vmatprep.subr.mxu0 0.0
    %747 = vmatpush2.msra.mxu0 0.0
    %748 = vmatprep.subr.mxu0 0.0
    %749 = vmatpush2.msra.mxu0 0.0
    %750 = vmatprep.mubr.f32.mxu0 0.0
    %751 = vmatmul.mubr.f32.gmra.mxu0 %v678
    %v752 = vpop.f32.mrf.mxu0
    %v753 = vadd.f32 %v676, %v752
    %v754 = vpop.f32.mrf.mxu0
    %755 = vmatprep.mubr.f32.mxu0 0.0
    %756 = vmatmul.mubr.f32.gmra.mxu0 %v681
    %v757 = vpop.f32.mrf.mxu0
    %v758 = vadd.f32 %v676, %v757
    %v759 = vpop.f32.mrf.mxu0
    %760 = vmatprep.mubr.f32.mxu0 0.0
    %761 = vmatmul.mubr.f32.gmra.mxu0 %v684
    %v762 = vpop.f32.mrf.mxu0
    %v763 = vadd.f32 %v676, %v762
    %v764 = vpop.f32.mrf.mxu0
    %765 = vdwg.mxu0
    %v766 = vld [vmem:[#allocation2 + $0x2e0] sm:$0xff]
    %v767 = vld [vmem:[#allocation2 + $0x2e8] sm:$0xff]
    %v768 = vld [vmem:[#allocation2 + $0x2f0] sm:$0xff]
    %v769 = vld [vmem:[#allocation2 + $0x2f8] sm:$0xff]
    %v770 = vld [vmem:[#allocation2 + $0x300] sm:$0xff]
    %v771 = vld [vmem:[#allocation2 + $0x308] sm:$0xff]
    %v772 = vld [vmem:[#allocation2 + $0x310] sm:$0xff]
    %v773 = vld [vmem:[#allocation2 + $0x318] sm:$0xff]
    %v774 = vld [vmem:[#allocation2 + $0x320] sm:$0xf]
    %v778 = vcombine.high %v753, %v753
    %v779 = vcombine.high %v758, %v758
    %v780 = vcombine.high %v763, %v763
    %v784 = vunpack.c.l.s4 1966171168
    %v785 = vunpack.c.0.s8 %v784
    %v786 = vlaneseq
    %v787 = vshrl.u32 %v786, 7
    %v788 = vsub.s32 %v785, %v787
    %v789 = vrot.slane %v663, %v788
    %v790 = vcombine.high %v789, %v789
    %v792 = vunpack.c.l.s4 1966171168
    %v793 = vunpack.c.0.s8 %v792
    %v794 = vlaneseq
    %v795 = vshrl.u32 %v794, 7
    %v796 = vsub.s32 %v793, %v795
    %v797 = vrot.slane %v789, %v796
    %v799 = vunpack.c.l.s4 1966171168
    %v800 = vunpack.c.0.s8 %v799
    %v801 = vlaneseq
    %v802 = vshrl.u32 %v801, 7
    %v803 = vsub.s32 %v800, %v802
    %v804 = vrot.slane %v790, %v803
    %v805 = vlaneseq
    %v806 = vshrl.u32 %v805, 7
    %v807 = vsub.s32 0, %v806
    %v808 = vrot.slane %v797, %v807
    %v809 = vlaneseq
    %v810 = vshrl.u32 %v809, 7
    %v811 = vsub.s32 0, %v810
    %v812 = vrot.slane %v804, %v811
    %v815 = vcombine.low %v753, %v778
    %v816 = vcombine.low %v779, %v763
    %v819 = vmul.f32 %v808, %v815
    %v820 = vmul.f32 %v808, %v758
    %v821 = vmul.f32 %v812, %v816
    %v822 = vmul.f32 %v812, %v780
    %v827 = vcombine.high %v819, %v819
    %v828 = vcombine.high %v821, %v821
    %v829 = vcombine.low %v819, %v827
    %v830 = vcombine.low %v820, %v821
    %v831 = vcombine.low %v828, %v822
    %v832 = vsel %vm80, %v829, 0
    %v834 = vsel %vm80, %v830, 0
    %v836 = vsel %vm80, %v831, 0
    %838 = vmatprep.subr.mxu0 0.0
    %839 = vmatpush1.msra.mxu0 0.0
    %840 = vmatprep.subr.mxu0 0.0
    %841 = vmatpush1.msra.mxu0 0.0
    %842 = vmatprep.subr.mxu0 0.0
    %843 = vmatpush1.msra.mxu0 0.0
    %844 = vmatprep.subr.mxu0 0.0
    %845 = vmatpush1.msra.mxu0 0.0
    %846 = vmatprep.subr.mxu0 0.0
    %847 = vmatpush1.msra.mxu0 0.0
    %848 = vmatprep.subr.mxu0 0.0
    %849 = vmatpush1.msra.mxu0 0.0
    %850 = vmatprep.subr.mxu0 0.0
    %851 = vmatpush1.msra.mxu0 0.0
    %852 = vmatprep.subr.mxu0 0.0
    %853 = vmatpush1.msra.mxu0 0.0
    %854 = vmatprep.subr.mxu0 0.0
    %855 = vmatpush1.msra.mxu0 %v773
    %856 = vmatprep.subr.mxu0 0.0
    %857 = vmatpush1.msra.mxu0 %v772
    %858 = vmatprep.subr.mxu0 0.0
    %859 = vmatpush1.msra.mxu0 %v771
    %860 = vmatprep.subr.mxu0 0.0
    %861 = vmatpush1.msra.mxu0 %v770
    %862 = vmatprep.subr.mxu0 0.0
    %863 = vmatpush1.msra.mxu0 %v769
    %864 = vmatprep.subr.mxu0 0.0
    %865 = vmatpush1.msra.mxu0 %v768
    %866 = vmatprep.subr.mxu0 0.0
    %867 = vmatpush1.msra.mxu0 %v767
    %868 = vmatprep.subr.mxu0 0.0
    %869 = vmatpush1.msra.mxu0 %v766
    %870 = vmatprep.subr.mxu0 0.0
    %871 = vmatpush2.msra.mxu0 0.0
    %872 = vmatprep.subr.mxu0 0.0
    %873 = vmatpush2.msra.mxu0 0.0
    %874 = vmatprep.subr.mxu0 0.0
    %875 = vmatpush2.msra.mxu0 0.0
    %876 = vmatprep.subr.mxu0 0.0
    %877 = vmatpush2.msra.mxu0 0.0
    %878 = vmatprep.subr.mxu0 0.0
    %879 = vmatpush2.msra.mxu0 0.0
    %880 = vmatprep.subr.mxu0 0.0
    %881 = vmatpush2.msra.mxu0 0.0
    %882 = vmatprep.subr.mxu0 0.0
    %883 = vmatpush2.msra.mxu0 0.0
    %884 = vmatprep.subr.mxu0 0.0
    %885 = vmatpush2.msra.mxu0 0.0
    %886 = vmatprep.subr.mxu0 0.0
    %887 = vmatpush2.msra.mxu0 0.0
    %888 = vmatprep.subr.mxu0 0.0
    %889 = vmatpush2.msra.mxu0 0.0
    %890 = vmatprep.subr.mxu0 0.0
    %891 = vmatpush2.msra.mxu0 0.0
    %892 = vmatprep.subr.mxu0 0.0
    %893 = vmatpush2.msra.mxu0 0.0
    %894 = vmatprep.subr.mxu0 0.0
    %895 = vmatpush2.msra.mxu0 0.0
    %896 = vmatprep.subr.mxu0 0.0
    %897 = vmatpush2.msra.mxu0 0.0
    %898 = vmatprep.subr.mxu0 0.0
    %899 = vmatpush2.msra.mxu0 0.0
    %900 = vmatprep.subr.mxu0 0.0
    %901 = vmatpush2.msra.mxu0 0.0
    %902 = vmatprep.mubr.f32.mxu0 0.0
    %903 = vmatmul.mubr.f32.gmra.mxu0 %v832
    %v904 = vpop.f32.mrf.mxu0
    %v905 = vadd.f32 0.0, %v904
    %v906 = vpop.f32.mrf.mxu0
    %907 = vmatprep.mubr.f32.mxu0 0.0
    %908 = vmatmul.mubr.f32.gmra.mxu0 %v834
    %v909 = vpop.f32.mrf.mxu0
    %v910 = vadd.f32 0.0, %v909
    %v911 = vpop.f32.mrf.mxu0
    %912 = vmatprep.mubr.f32.mxu0 0.0
    %913 = vmatmul.mubr.f32.gmra.mxu0 %v836
    %v914 = vpop.f32.mrf.mxu0
    %v915 = vadd.f32 0.0, %v914
    %v916 = vpop.f32.mrf.mxu0
    %917 = vdwg.mxu0
    %v921 = vcombine.high %v905, %v905
    %v922 = vcombine.high %v910, %v910
    %v923 = vcombine.high %v915, %v915
    %v927 = vlaneseq
    %v928 = vshrl.u32 %v927, 7
    %v929 = vsub.s32 0, %v928
    %v930 = vrot.slane %v39, %v929
    %932 = vbcast.lane.b32.xlu0 %v930, 256
    %v933 = vpop.permute.xlu0 %932
    %s935 = sor.u32 256, 8
    %936 = vbcast.lane.b32.xlu0 %v930, %s935
    %v937 = vpop.permute.xlu0 %936
    %v938 = vlaneseq
    %v939 = vshrl.u32 %v938, 7
    %v940 = vsub.s32 1, %v939
    %v941 = vrot.slane %v39, %v940
    %943 = vbcast.lane.b32.xlu0 %v941, 256
    %v944 = vpop.permute.xlu0 %943
    %s946 = sor.u32 256, 8
    %947 = vbcast.lane.b32.xlu0 %v941, %s946
    %v948 = vpop.permute.xlu0 %947
    %v954 = vunpack.c.l.s4 839922192
    %v955 = vunpack.c.0.s8 %v954
    %v956 = vlaneseq
    %v957 = vshrl.u32 %v956, 7
    %v958 = vsub.s32 %v955, %v957
    %v959 = vrot.slane %v933, %v958
    %v961 = vunpack.c.l.s4 1985246804
    %v962 = vunpack.c.0.s8 %v961
    %v963 = vlaneseq
    %v964 = vshrl.u32 %v963, 7
    %v965 = vsub.s32 %v962, %v964
    %v966 = vrot.slane %v933, %v965
    %v968 = vunpack.c.l.s4 839922192
    %v969 = vunpack.c.0.s8 %v968
    %v970 = vlaneseq
    %v971 = vshrl.u32 %v970, 7
    %v972 = vsub.s32 %v969, %v971
    %v973 = vrot.slane %v937, %v972
    %v975 = vunpack.c.l.s4 839922192
    %v976 = vunpack.c.0.s8 %v975
    %v977 = vlaneseq
    %v978 = vshrl.u32 %v977, 7
    %v979 = vsub.s32 %v976, %v978
    %v980 = vrot.slane %v944, %v979
    %v982 = vunpack.c.l.s4 1985246804
    %v983 = vunpack.c.0.s8 %v982
    %v984 = vlaneseq
    %v985 = vshrl.u32 %v984, 7
    %v986 = vsub.s32 %v983, %v985
    %v987 = vrot.slane %v944, %v986
    %v989 = vunpack.c.l.s4 839922192
    %v990 = vunpack.c.0.s8 %v989
    %v991 = vlaneseq
    %v992 = vshrl.u32 %v991, 7
    %v993 = vsub.s32 %v990, %v992
    %v994 = vrot.slane %v948, %v993
    %v1001 = vadd.f32 %v905, %v959
    %v1002 = vadd.f32 %v921, %v966
    %v1003 = vadd.f32 %v910, %v973
    %v1004 = vadd.f32 %v922, %v980
    %v1005 = vadd.f32 %v915, %v987
    %v1006 = vadd.f32 %v923, %v994
    %v1011 = vcombine.low %v1001, %v1002
    %v1012 = vcombine.low %v1004, %v1005
    %vm1015 = vcmask 31744
    %v1016 = vsel %vm1015, %v1011, -inf
    %vm1017 = vcmask 27648
    %v1018 = vsel %vm1017, %v1003, -inf
    %v1019 = vmax.f32 %v1016, %v1018
    %v1020 = vrot.slane %v1019, 4
    %v1021 = vmax.f32 %v1019, %v1020
    %v1022 = vrot.slane %v1021, 2
    %v1023 = vmax.f32 %v1021, %v1022
    %v1024 = vrot.slane %v1023, 1
    %v1025 = vmax.f32 %v1023, %v1024
    %v1026 = vsel %vm1015, %v1012, -inf
    %v1027 = vsel %vm1017, %v1006, -inf
    %v1028 = vmax.f32 %v1026, %v1027
    %v1029 = vrot.slane %v1028, 4
    %v1030 = vmax.f32 %v1028, %v1029
    %v1031 = vrot.slane %v1030, 2
    %v1032 = vmax.f32 %v1030, %v1031
    %v1033 = vrot.slane %v1032, 1
    %v1034 = vmax.f32 %v1032, %v1033
    %v1037 = vcombine.high %v1025, %v1025
    %v1038 = vcombine.high %v1034, %v1034
    %v1041 = vsub.f32 %v1001, %v1025
    %v1042 = vsub.f32 %v1002, %v1037
    %v1043 = vsub.f32 %v1003, %v1025
    %v1044 = vsub.f32 %v1004, %v1034
    %v1045 = vsub.f32 %v1005, %v1038
    %v1046 = vsub.f32 %v1006, %v1034
    %v1047 = vmul.f32 %v1041, 1.442695
    %v1048 = vpow.pop %v1047
    %v1049 = vmul.f32 %v1042, 1.442695
    %v1050 = vpow.pop %v1049
    %v1051 = vmul.f32 %v1043, 1.442695
    %v1052 = vpow.pop %v1051
    %v1053 = vmul.f32 %v1044, 1.442695
    %v1054 = vpow.pop %v1053
    %v1055 = vmul.f32 %v1045, 1.442695
    %v1056 = vpow.pop %v1055
    %v1057 = vmul.f32 %v1046, 1.442695
    %v1058 = vpow.pop %v1057
    %v1063 = vcombine.low %v1048, %v1050
    %v1064 = vcombine.low %v1054, %v1056
    %v1067 = vsel %vm1015, %v1063, 0.0
    %v1068 = vsel %vm1017, %v1052, 0.0
    %v1069 = vadd.f32 %v1067, %v1068
    %v1070 = vrot.slane %v1069, 4
    %v1071 = vadd.f32 %v1069, %v1070
    %v1072 = vrot.slane %v1071, 2
    %v1073 = vadd.f32 %v1071, %v1072
    %v1074 = vrot.slane %v1073, 1
    %v1075 = vadd.f32 %v1073, %v1074
    %v1076 = vsel %vm1015, %v1064, 0.0
    %v1077 = vsel %vm1017, %v1058, 0.0
    %v1078 = vadd.f32 %v1076, %v1077
    %v1079 = vrot.slane %v1078, 4
    %v1080 = vadd.f32 %v1078, %v1079
    %v1081 = vrot.slane %v1080, 2
    %v1082 = vadd.f32 %v1080, %v1081
    %v1083 = vrot.slane %v1082, 1
    %v1084 = vadd.f32 %v1082, %v1083
    %v1087 = vcombine.high %v1075, %v1075
    %v1088 = vcombine.high %v1084, %v1084
    %v1091 = vrcp.pop %v1075
    %v1092 = vmul.f32 %v1048, %v1091
    %v1093 = vrcp.pop %v1087
    %v1094 = vmul.f32 %v1050, %v1093
    %v1095 = vmul.f32 %v1052, %v1091
    %v1096 = vrcp.pop %v1084
    %v1097 = vmul.f32 %v1054, %v1096
    %v1098 = vrcp.pop %v1088
    %v1099 = vmul.f32 %v1056, %v1098
    %v1100 = vmul.f32 %v1058, %v1096
    %v1107 = vcombine.low %v1092, %v1094
    %v1108 = vcombine.low %v1095, %v1097
    %v1109 = vcombine.low %v1099, %v1100
    %v1110 = vsel %vm1015, %v1107, 0
    %v1112 = vsel %vm1015, %v1108, 0
    %v1114 = vsel %vm1015, %v1109, 0
    %vm1116 = vcmask 1043456
    %v1118 = vsel %vm1116, %v774, 0
    %1120 = vmatprep.subr.mxu0 0.0
    %1121 = vmatpush1.msra.mxu0 0.0
    %1122 = vmatprep.subr.mxu0 0.0
    %1123 = vmatpush1.msra.mxu0 0.0
    %1124 = vmatprep.subr.mxu0 0.0
    %1125 = vmatpush1.msra.mxu0 0.0
    %1126 = vmatprep.subr.mxu0 0.0
    %1127 = vmatpush1.msra.mxu0 0.0
    %1128 = vmatprep.subr.mxu0 0.0
    %1129 = vmatpush1.msra.mxu0 0.0
    %1130 = vmatprep.subr.mxu0 0.0
    %1131 = vmatpush1.msra.mxu0 0.0
    %1132 = vmatprep.subr.mxu0 0.0
    %1133 = vmatpush1.msra.mxu0 0.0
    %1134 = vmatprep.subr.mxu0 0.0
    %1135 = vmatpush1.msra.mxu0 0.0
    %1136 = vmatprep.subr.mxu0 0.0
    %1137 = vmatpush1.msra.mxu0 0.0
    %1138 = vmatprep.subr.mxu0 0.0
    %1139 = vmatpush1.msra.mxu0 0.0
    %1140 = vmatprep.subr.mxu0 0.0
    %1141 = vmatpush1.msra.mxu0 0.0
    %1142 = vmatprep.subr.mxu0 0.0
    %1143 = vmatpush1.msra.mxu0 0.0
    %1144 = vmatprep.subr.mxu0 0.0
    %1145 = vmatpush1.msra.mxu0 0.0
    %1146 = vmatprep.subr.mxu0 0.0
    %1147 = vmatpush1.msra.mxu0 0.0
    %1148 = vmatprep.subr.mxu0 0.0
    %1149 = vmatpush1.msra.mxu0 0.0
    %1150 = vmatprep.subr.mxu0 0.0
    %1151 = vmatpush1.msra.mxu0 %v1118
    %1152 = vmatprep.subr.mxu0 0.0
    %1153 = vmatpush2.msra.mxu0 0.0
    %1154 = vmatprep.subr.mxu0 0.0
    %1155 = vmatpush2.msra.mxu0 0.0
    %1156 = vmatprep.subr.mxu0 0.0
    %1157 = vmatpush2.msra.mxu0 0.0
    %1158 = vmatprep.subr.mxu0 0.0
    %1159 = vmatpush2.msra.mxu0 0.0
    %1160 = vmatprep.subr.mxu0 0.0
    %1161 = vmatpush2.msra.mxu0 0.0
    %1162 = vmatprep.subr.mxu0 0.0
    %1163 = vmatpush2.msra.mxu0 0.0
    %1164 = vmatprep.subr.mxu0 0.0
    %1165 = vmatpush2.msra.mxu0 0.0
    %1166 = vmatprep.subr.mxu0 0.0
    %1167 = vmatpush2.msra.mxu0 0.0
    %1168 = vmatprep.subr.mxu0 0.0
    %1169 = vmatpush2.msra.mxu0 0.0
    %1170 = vmatprep.subr.mxu0 0.0
    %1171 = vmatpush2.msra.mxu0 0.0
    %1172 = vmatprep.subr.mxu0 0.0
    %1173 = vmatpush2.msra.mxu0 0.0
    %1174 = vmatprep.subr.mxu0 0.0
    %1175 = vmatpush2.msra.mxu0 0.0
    %1176 = vmatprep.subr.mxu0 0.0
    %1177 = vmatpush2.msra.mxu0 0.0
    %1178 = vmatprep.subr.mxu0 0.0
    %1179 = vmatpush2.msra.mxu0 0.0
    %1180 = vmatprep.subr.mxu0 0.0
    %1181 = vmatpush2.msra.mxu0 0.0
    %1182 = vmatprep.subr.mxu0 0.0
    %1183 = vmatpush2.msra.mxu0 0.0
    %1184 = vmatprep.mubr.f32.mxu0 0.0
    %1185 = vmatmul.mubr.f32.gmra.mxu0 %v1110
    %v1186 = vpop.f32.mrf.mxu0
    %v1187 = vadd.f32 0.0, %v1186
    %v1188 = vpop.f32.mrf.mxu0
    %1189 = vmatprep.mubr.f32.mxu0 0.0
    %1190 = vmatmul.mubr.f32.gmra.mxu0 %v1112
    %v1191 = vpop.f32.mrf.mxu0
    %v1192 = vadd.f32 0.0, %v1191
    %v1193 = vpop.f32.mrf.mxu0
    %1194 = vmatprep.mubr.f32.mxu0 0.0
    %1195 = vmatmul.mubr.f32.gmra.mxu0 %v1114
    %v1196 = vpop.f32.mrf.mxu0
    %v1197 = vadd.f32 0.0, %v1196
    %v1198 = vpop.f32.mrf.mxu0
    %1199 = vdwg.mxu0
    %v1203 = vcombine.high %v1187, %v1187
    %v1204 = vcombine.high %v1192, %v1192
    %v1205 = vcombine.high %v1197, %v1197
    %1209 = vrot.lane.b32.xlu0 %v753, 64
    %v1210 = vpop.permute.xlu0 %1209
    %1211 = vrot.lane.b32.xlu0 %v778, 64
    %v1212 = vpop.permute.xlu0 %1211
    %1213 = vrot.lane.b32.xlu0 %v758, 64
    %v1214 = vpop.permute.xlu0 %1213
    %1215 = vrot.lane.b32.xlu0 %v779, 64
    %v1216 = vpop.permute.xlu0 %1215
    %1217 = vrot.lane.b32.xlu0 %v763, 64
    %v1218 = vpop.permute.xlu0 %1217
    %1219 = vrot.lane.b32.xlu0 %v780, 64
    %v1220 = vpop.permute.xlu0 %1219
    %v1227 = vmul.f32 %v1187, %v1210
    %v1228 = vmul.f32 %v1203, %v1212
    %v1229 = vmul.f32 %v1192, %v1214
    %v1230 = vmul.f32 %v1204, %v1216
    %v1231 = vmul.f32 %v1197, %v1218
    %v1232 = vmul.f32 %v1205, %v1220
    %v1237 = vcombine.low %v1227, %v1228
    %v1238 = vcombine.low %v1230, %v1231
    %v1241 = vsel %vm80, %v1237, 0.0
    %vm1242 = vcmask 519168
    %v1243 = vsel %vm1242, %v1229, 0.0
    %v1244 = vadd.f32 %v1241, %v1243
    %v1245 = vrot.slane %v1244, 4
    %v1246 = vadd.f32 %v1244, %v1245
    %v1247 = vrot.slane %v1246, 2
    %v1248 = vadd.f32 %v1246, %v1247
    %v1249 = vrot.slane %v1248, 1
    %v1250 = vadd.f32 %v1248, %v1249
    %v1251 = vsel %vm80, %v1238, 0.0
    %v1252 = vsel %vm1242, %v1232, 0.0
    %v1253 = vadd.f32 %v1251, %v1252
    %v1254 = vrot.slane %v1253, 4
    %v1255 = vadd.f32 %v1253, %v1254
    %v1256 = vrot.slane %v1255, 2
    %v1257 = vadd.f32 %v1255, %v1256
    %v1258 = vrot.slane %v1257, 1
    %v1259 = vadd.f32 %v1257, %v1258
    %v1260 = vld [vmem:[#allocation2 + $0xa0] sm:$0xff]
    %v1261 = vld [vmem:[#allocation2 + $0xa8] sm:$0xff]
    %v1262 = vld [vmem:[#allocation2 + $0xb0] sm:$0xff]
    %v1263 = vld [vmem:[#allocation2 + $0xb8] sm:$0xff]
    %v1264 = vld [vmem:[#allocation2 + $0xc0] sm:$0xff]
    %v1265 = vld [vmem:[#allocation2 + $0xc8] sm:$0xff]
    %v1266 = vld [vmem:[#allocation2 + $0xd0] sm:$0xff]
    %v1267 = vld [vmem:[#allocation2 + $0xd8] sm:$0xff]
    %v1268 = vld [vmem:[#allocation2 + $0xe0] sm:$0x1]
    %v1269 = vlaneseq
    %v1270 = vshrl.u32 %v1269, 7
    %v1271 = vsub.s32 0, %v1270
    %v1272 = vrot.slane %v1268, %v1271
    %v1275 = vsel %vm583, %v1259, %v1250
    %v1276 = vsel %vm80, %v1275, 0
    %1278 = vmatprep.subr.mxu0 0.0
    %1279 = vmatpush1.msra.mxu0 0.0
    %1280 = vmatprep.subr.mxu0 0.0
    %1281 = vmatpush1.msra.mxu0 0.0
    %1282 = vmatprep.subr.mxu0 0.0
    %1283 = vmatpush1.msra.mxu0 0.0
    %1284 = vmatprep.subr.mxu0 0.0
    %1285 = vmatpush1.msra.mxu0 0.0
    %1286 = vmatprep.subr.mxu0 0.0
    %1287 = vmatpush1.msra.mxu0 0.0
    %1288 = vmatprep.subr.mxu0 0.0
    %1289 = vmatpush1.msra.mxu0 0.0
    %1290 = vmatprep.subr.mxu0 0.0
    %1291 = vmatpush1.msra.mxu0 0.0
    %1292 = vmatprep.subr.mxu0 0.0
    %1293 = vmatpush1.msra.mxu0 0.0
    %1294 = vmatprep.subr.mxu0 0.0
    %1295 = vmatpush1.msra.mxu0 %v1267
    %1296 = vmatprep.subr.mxu0 0.0
    %1297 = vmatpush1.msra.mxu0 %v1266
    %1298 = vmatprep.subr.mxu0 0.0
    %1299 = vmatpush1.msra.mxu0 %v1265
    %1300 = vmatprep.subr.mxu0 0.0
    %1301 = vmatpush1.msra.mxu0 %v1264
    %1302 = vmatprep.subr.mxu0 0.0
    %1303 = vmatpush1.msra.mxu0 %v1263
    %1304 = vmatprep.subr.mxu0 0.0
    %1305 = vmatpush1.msra.mxu0 %v1262
    %1306 = vmatprep.subr.mxu0 0.0
    %1307 = vmatpush1.msra.mxu0 %v1261
    %1308 = vmatprep.subr.mxu0 0.0
    %1309 = vmatpush1.msra.mxu0 %v1260
    %1310 = vmatprep.subr.mxu0 0.0
    %1311 = vmatpush2.msra.mxu0 0.0
    %1312 = vmatprep.subr.mxu0 0.0
    %1313 = vmatpush2.msra.mxu0 0.0
    %1314 = vmatprep.subr.mxu0 0.0
    %1315 = vmatpush2.msra.mxu0 0.0
    %1316 = vmatprep.subr.mxu0 0.0
    %1317 = vmatpush2.msra.mxu0 0.0
    %1318 = vmatprep.subr.mxu0 0.0
    %1319 = vmatpush2.msra.mxu0 0.0
    %1320 = vmatprep.subr.mxu0 0.0
    %1321 = vmatpush2.msra.mxu0 0.0
    %1322 = vmatprep.subr.mxu0 0.0
    %1323 = vmatpush2.msra.mxu0 0.0
    %1324 = vmatprep.subr.mxu0 0.0
    %1325 = vmatpush2.msra.mxu0 0.0
    %1326 = vmatprep.subr.mxu0 0.0
    %1327 = vmatpush2.msra.mxu0 0.0
    %1328 = vmatprep.subr.mxu0 0.0
    %1329 = vmatpush2.msra.mxu0 0.0
    %1330 = vmatprep.subr.mxu0 0.0
    %1331 = vmatpush2.msra.mxu0 0.0
    %1332 = vmatprep.subr.mxu0 0.0
    %1333 = vmatpush2.msra.mxu0 0.0
    %1334 = vmatprep.subr.mxu0 0.0
    %1335 = vmatpush2.msra.mxu0 0.0
    %1336 = vmatprep.subr.mxu0 0.0
    %1337 = vmatpush2.msra.mxu0 0.0
    %1338 = vmatprep.subr.mxu0 0.0
    %1339 = vmatpush2.msra.mxu0 0.0
    %1340 = vmatprep.subr.mxu0 0.0
    %1341 = vmatpush2.msra.mxu0 0.0
    %1342 = vmatprep.mubr.f32.mxu0 0.0
    %1343 = vmatmul.mubr.f32.gmra.mxu0 %v1276
    %v1344 = vpop.f32.mrf.mxu0
    %v1345 = vadd.f32 %v1272, %v1344
    %v1346 = vpop.f32.mrf.mxu0
    %1347 = vdwg.mxu0
    %v1348 = vld [vmem:[#allocation2 + $0xe8] sm:$0xff]
    %v1349 = vld [vmem:[#allocation2 + $0xf0] sm:$0xff]
    %v1350 = vld [vmem:[#allocation2 + $0xf8] sm:$0xff]
    %v1351 = vld [vmem:[#allocation2 + $0x100] sm:$0xff]
    %v1352 = vld [vmem:[#allocation2 + $0x108] sm:$0xff]
    %v1353 = vld [vmem:[#allocation2 + $0x110] sm:$0xff]
    %1354 = vmatprep.subr.mxu0 0.0
    %1355 = vmatpush1.msra.mxu0 0.0
    %1356 = vmatprep.subr.mxu0 0.0
    %1357 = vmatpush1.msra.mxu0 0.0
    %1358 = vmatprep.subr.mxu0 0.0
    %1359 = vmatpush1.msra.mxu0 0.0
    %1360 = vmatprep.subr.mxu0 0.0
    %1361 = vmatpush1.msra.mxu0 0.0
    %1362 = vmatprep.subr.mxu0 0.0
    %1363 = vmatpush1.msra.mxu0 0.0
    %1364 = vmatprep.subr.mxu0 0.0
    %1365 = vmatpush1.msra.mxu0 0.0
    %1366 = vmatprep.subr.mxu0 0.0
    %1367 = vmatpush1.msra.mxu0 0.0
    %1368 = vmatprep.subr.mxu0 0.0
    %1369 = vmatpush1.msra.mxu0 0.0
    %1370 = vmatprep.subr.mxu0 0.0
    %1371 = vmatpush1.msra.mxu0 0.0
    %1372 = vmatprep.subr.mxu0 0.0
    %1373 = vmatpush1.msra.mxu0 0.0
    %1374 = vmatprep.subr.mxu0 0.0
    %1375 = vmatpush1.msra.mxu0 0.0
    %1376 = vmatprep.subr.mxu0 0.0
    %1377 = vmatpush1.msra.mxu0 0.0
    %1378 = vmatprep.subr.mxu0 0.0
    %1379 = vmatpush1.msra.mxu0 0.0
    %1380 = vmatprep.subr.mxu0 0.0
    %1381 = vmatpush1.msra.mxu0 0.0
    %1382 = vmatprep.subr.mxu0 0.0
    %1383 = vmatpush1.msra.mxu0 %v1353
    %1384 = vmatprep.subr.mxu0 0.0
    %1385 = vmatpush1.msra.mxu0 %v1352
    %1386 = vmatprep.subr.mxu0 0.0
    %1387 = vmatpush2.msra.mxu0 0.0
    %1388 = vmatprep.subr.mxu0 0.0
    %1389 = vmatpush2.msra.mxu0 0.0
    %1390 = vmatprep.subr.mxu0 0.0
    %1391 = vmatpush2.msra.mxu0 0.0
    %1392 = vmatprep.subr.mxu0 0.0
    %1393 = vmatpush2.msra.mxu0 0.0
    %1394 = vmatprep.subr.mxu0 0.0
    %1395 = vmatpush2.msra.mxu0 0.0
    %1396 = vmatprep.subr.mxu0 0.0
    %1397 = vmatpush2.msra.mxu0 0.0
    %1398 = vmatprep.subr.mxu0 0.0
    %1399 = vmatpush2.msra.mxu0 0.0
    %1400 = vmatprep.subr.mxu0 0.0
    %1401 = vmatpush2.msra.mxu0 0.0
    %1402 = vmatprep.subr.mxu0 0.0
    %1403 = vmatpush2.msra.mxu0 0.0
    %1404 = vmatprep.subr.mxu0 0.0
    %1405 = vmatpush2.msra.mxu0 0.0
    %1406 = vmatprep.subr.mxu0 0.0
    %1407 = vmatpush2.msra.mxu0 0.0
    %1408 = vmatprep.subr.mxu0 0.0
    %1409 = vmatpush2.msra.mxu0 0.0
    %1410 = vmatprep.subr.mxu0 0.0
    %1411 = vmatpush2.msra.mxu0 0.0
    %1412 = vmatprep.subr.mxu0 0.0
    %1413 = vmatpush2.msra.mxu0 0.0
    %1414 = vmatprep.subr.mxu0 0.0
    %1415 = vmatpush2.msra.mxu0 0.0
    %1416 = vmatprep.subr.mxu0 0.0
    %1417 = vmatpush2.msra.mxu0 0.0
    %1418 = vmatprep.mubr.f32.mxu0 0.0
    %1419 = vmatmul.mubr.f32.gmra.mxu0 %v585
    %v1420 = vpop.f32.mrf.mxu0
    %v1421 = vadd.f32 0.0, %v1420
    %v1422 = vpop.f32.mrf.mxu0
    %1423 = vdwg.mxu0
    %1424 = vmatprep.subr.mxu0 0.0
    %1425 = vmatpush1.msra.mxu0 0.0
    %1426 = vmatprep.subr.mxu0 0.0
    %1427 = vmatpush1.msra.mxu0 0.0
    %1428 = vmatprep.subr.mxu0 0.0
    %1429 = vmatpush1.msra.mxu0 0.0
    %1430 = vmatprep.subr.mxu0 0.0
    %1431 = vmatpush1.msra.mxu0 0.0
    %1432 = vmatprep.subr.mxu0 0.0
    %1433 = vmatpush1.msra.mxu0 0.0
    %1434 = vmatprep.subr.mxu0 0.0
    %1435 = vmatpush1.msra.mxu0 0.0
    %1436 = vmatprep.subr.mxu0 0.0
    %1437 = vmatpush1.msra.mxu0 0.0
    %1438 = vmatprep.subr.mxu0 0.0
    %1439 = vmatpush1.msra.mxu0 0.0
    %1440 = vmatprep.subr.mxu0 0.0
    %1441 = vmatpush1.msra.mxu0 0.0
    %1442 = vmatprep.subr.mxu0 0.0
    %1443 = vmatpush1.msra.mxu0 0.0
    %1444 = vmatprep.subr.mxu0 0.0
    %1445 = vmatpush1.msra.mxu0 0.0
    %1446 = vmatprep.subr.mxu0 0.0
    %1447 = vmatpush1.msra.mxu0 0.0
    %1448 = vmatprep.subr.mxu0 0.0
    %1449 = vmatpush1.msra.mxu0 %v1351
    %1450 = vmatprep.subr.mxu0 0.0
    %1451 = vmatpush1.msra.mxu0 %v1350
    %1452 = vmatprep.subr.mxu0 0.0
    %1453 = vmatpush1.msra.mxu0 %v1349
    %1454 = vmatprep.subr.mxu0 0.0
    %1455 = vmatpush1.msra.mxu0 %v1348
    %1456 = vmatprep.subr.mxu0 0.0
    %1457 = vmatpush2.msra.mxu0 0.0
    %1458 = vmatprep.subr.mxu0 0.0
    %1459 = vmatpush2.msra.mxu0 0.0
    %1460 = vmatprep.subr.mxu0 0.0
    %1461 = vmatpush2.msra.mxu0 0.0
    %1462 = vmatprep.subr.mxu0 0.0
    %1463 = vmatpush2.msra.mxu0 0.0
    %1464 = vmatprep.subr.mxu0 0.0
    %1465 = vmatpush2.msra.mxu0 0.0
    %1466 = vmatprep.subr.mxu0 0.0
    %1467 = vmatpush2.msra.mxu0 0.0
    %1468 = vmatprep.subr.mxu0 0.0
    %1469 = vmatpush2.msra.mxu0 0.0
    %1470 = vmatprep.subr.mxu0 0.0
    %1471 = vmatpush2.msra.mxu0 0.0
    %1472 = vmatprep.subr.mxu0 0.0
    %1473 = vmatpush2.msra.mxu0 0.0
    %1474 = vmatprep.subr.mxu0 0.0
    %1475 = vmatpush2.msra.mxu0 0.0
    %1476 = vmatprep.subr.mxu0 0.0
    %1477 = vmatpush2.msra.mxu0 0.0
    %1478 = vmatprep.subr.mxu0 0.0
    %1479 = vmatpush2.msra.mxu0 0.0
    %1480 = vmatprep.subr.mxu0 0.0
    %1481 = vmatpush2.msra.mxu0 0.0
    %1482 = vmatprep.subr.mxu0 0.0
    %1483 = vmatpush2.msra.mxu0 0.0
    %1484 = vmatprep.subr.mxu0 0.0
    %1485 = vmatpush2.msra.mxu0 0.0
    %1486 = vmatprep.subr.mxu0 0.0
    %1487 = vmatpush2.msra.mxu0 0.0
    %1488 = vmatprep.mubr.f32.mxu0 0.0
    %1489 = vmatmul.mubr.f32.gmra.mxu0 %v509
    %v1490 = vpop.f32.mrf.mxu0
    %v1491 = vadd.f32 %v1421, %v1490
    %v1492 = vpop.f32.mrf.mxu0
    %1493 = vdwg.mxu0
    %v1494 = vld [vmem:[#allocation2 + $0x118] sm:$0x1]
    %v1495 = vlaneseq
    %v1496 = vshrl.u32 %v1495, 7
    %v1497 = vsub.s32 0, %v1496
    %v1498 = vrot.slane %v1494, %v1497
    %v1499 = vadd.f32 %v1491, %v1498
    %v1500 = vld [vmem:[#allocation2 + $0x120] sm:$0xff]
    %v1501 = vld [vmem:[#allocation2 + $0x128] sm:$0xff]
    %v1502 = vld [vmem:[#allocation2 + $0x130] sm:$0xff]
    %v1503 = vld [vmem:[#allocation2 + $0x138] sm:$0xff]
    %v1504 = vld [vmem:[#allocation2 + $0x140] sm:$0x1]
    %v1505 = vlaneseq
    %v1506 = vshrl.u32 %v1505, 7
    %v1507 = vsub.s32 0, %v1506
    %v1508 = vrot.slane %v1504, %v1507
    %v1510 = vsel %vm240, %v1499, 0
    %1512 = vmatprep.subr.mxu0 0.0
    %1513 = vmatpush1.msra.mxu0 0.0
    %1514 = vmatprep.subr.mxu0 0.0
    %1515 = vmatpush1.msra.mxu0 0.0
    %1516 = vmatprep.subr.mxu0 0.0
    %1517 = vmatpush1.msra.mxu0 0.0
    %1518 = vmatprep.subr.mxu0 0.0
    %1519 = vmatpush1.msra.mxu0 0.0
    %1520 = vmatprep.subr.mxu0 0.0
    %1521 = vmatpush1.msra.mxu0 0.0
    %1522 = vmatprep.subr.mxu0 0.0
    %1523 = vmatpush1.msra.mxu0 0.0
    %1524 = vmatprep.subr.mxu0 0.0
    %1525 = vmatpush1.msra.mxu0 0.0
    %1526 = vmatprep.subr.mxu0 0.0
    %1527 = vmatpush1.msra.mxu0 0.0
    %1528 = vmatprep.subr.mxu0 0.0
    %1529 = vmatpush1.msra.mxu0 0.0
    %1530 = vmatprep.subr.mxu0 0.0
    %1531 = vmatpush1.msra.mxu0 0.0
    %1532 = vmatprep.subr.mxu0 0.0
    %1533 = vmatpush1.msra.mxu0 0.0
    %1534 = vmatprep.subr.mxu0 0.0
    %1535 = vmatpush1.msra.mxu0 0.0
    %1536 = vmatprep.subr.mxu0 0.0
    %1537 = vmatpush1.msra.mxu0 %v1503
    %1538 = vmatprep.subr.mxu0 0.0
    %1539 = vmatpush1.msra.mxu0 %v1502
    %1540 = vmatprep.subr.mxu0 0.0
    %1541 = vmatpush1.msra.mxu0 %v1501
    %1542 = vmatprep.subr.mxu0 0.0
    %1543 = vmatpush1.msra.mxu0 %v1500
    %1544 = vmatprep.subr.mxu0 0.0
    %1545 = vmatpush2.msra.mxu0 0.0
    %1546 = vmatprep.subr.mxu0 0.0
    %1547 = vmatpush2.msra.mxu0 0.0
    %1548 = vmatprep.subr.mxu0 0.0
    %1549 = vmatpush2.msra.mxu0 0.0
    %1550 = vmatprep.subr.mxu0 0.0
    %1551 = vmatpush2.msra.mxu0 0.0
    %1552 = vmatprep.subr.mxu0 0.0
    %1553 = vmatpush2.msra.mxu0 0.0
    %1554 = vmatprep.subr.mxu0 0.0
    %1555 = vmatpush2.msra.mxu0 0.0
    %1556 = vmatprep.subr.mxu0 0.0
    %1557 = vmatpush2.msra.mxu0 0.0
    %1558 = vmatprep.subr.mxu0 0.0
    %1559 = vmatpush2.msra.mxu0 0.0
    %1560 = vmatprep.subr.mxu0 0.0
    %1561 = vmatpush2.msra.mxu0 0.0
    %1562 = vmatprep.subr.mxu0 0.0
    %1563 = vmatpush2.msra.mxu0 0.0
    %1564 = vmatprep.subr.mxu0 0.0
    %1565 = vmatpush2.msra.mxu0 0.0
    %1566 = vmatprep.subr.mxu0 0.0
    %1567 = vmatpush2.msra.mxu0 0.0
    %1568 = vmatprep.subr.mxu0 0.0
    %1569 = vmatpush2.msra.mxu0 0.0
    %1570 = vmatprep.subr.mxu0 0.0
    %1571 = vmatpush2.msra.mxu0 0.0
    %1572 = vmatprep.subr.mxu0 0.0
    %1573 = vmatpush2.msra.mxu0 0.0
    %1574 = vmatprep.subr.mxu0 0.0
    %1575 = vmatpush2.msra.mxu0 0.0
    %1576 = vmatprep.mubr.f32.mxu0 0.0
    %1577 = vmatmul.mubr.f32.gmra.mxu0 %v1510
    %v1578 = vpop.f32.mrf.mxu0
    %v1579 = vadd.f32 %v1508, %v1578
    %v1580 = vpop.f32.mrf.mxu0
    %1581 = vdwg.mxu0
    %v1582 = vld [vmem:[#allocation2 + $0x148] sm:$0xff]
    %v1583 = vld [vmem:[#allocation2 + $0x150] sm:$0xff]
    %v1584 = vld [vmem:[#allocation2 + $0x158] sm:$0xff]
    %v1585 = vld [vmem:[#allocation2 + $0x160] sm:$0xff]
    %v1586 = vld [vmem:[#allocation2 + $0x168] sm:$0x1]
    %v1587 = vlaneseq
    %v1588 = vshrl.u32 %v1587, 7
    %v1589 = vsub.s32 0, %v1588
    %v1590 = vrot.slane %v1586, %v1589
    %v1592 = vsel %vm240, %v45, 0
    %1594 = vmatprep.subr.mxu0 0.0
    %1595 = vmatpush1.msra.mxu0 0.0
    %1596 = vmatprep.subr.mxu0 0.0
    %1597 = vmatpush1.msra.mxu0 0.0
    %1598 = vmatprep.subr.mxu0 0.0
    %1599 = vmatpush1.msra.mxu0 0.0
    %1600 = vmatprep.subr.mxu0 0.0
    %1601 = vmatpush1.msra.mxu0 0.0
    %1602 = vmatprep.subr.mxu0 0.0
    %1603 = vmatpush1.msra.mxu0 0.0
    %1604 = vmatprep.subr.mxu0 0.0
    %1605 = vmatpush1.msra.mxu0 0.0
    %1606 = vmatprep.subr.mxu0 0.0
    %1607 = vmatpush1.msra.mxu0 0.0
    %1608 = vmatprep.subr.mxu0 0.0
    %1609 = vmatpush1.msra.mxu0 0.0
    %1610 = vmatprep.subr.mxu0 0.0
    %1611 = vmatpush1.msra.mxu0 0.0
    %1612 = vmatprep.subr.mxu0 0.0
    %1613 = vmatpush1.msra.mxu0 0.0
    %1614 = vmatprep.subr.mxu0 0.0
    %1615 = vmatpush1.msra.mxu0 0.0
    %1616 = vmatprep.subr.mxu0 0.0
    %1617 = vmatpush1.msra.mxu0 0.0
    %1618 = vmatprep.subr.mxu0 0.0
    %1619 = vmatpush1.msra.mxu0 %v1585
    %1620 = vmatprep.subr.mxu0 0.0
    %1621 = vmatpush1.msra.mxu0 %v1584
    %1622 = vmatprep.subr.mxu0 0.0
    %1623 = vmatpush1.msra.mxu0 %v1583
    %1624 = vmatprep.subr.mxu0 0.0
    %1625 = vmatpush1.msra.mxu0 %v1582
    %1626 = vmatprep.subr.mxu0 0.0
    %1627 = vmatpush2.msra.mxu0 0.0
    %1628 = vmatprep.subr.mxu0 0.0
    %1629 = vmatpush2.msra.mxu0 0.0
    %1630 = vmatprep.subr.mxu0 0.0
    %1631 = vmatpush2.msra.mxu0 0.0
    %1632 = vmatprep.subr.mxu0 0.0
    %1633 = vmatpush2.msra.mxu0 0.0
    %1634 = vmatprep.subr.mxu0 0.0
    %1635 = vmatpush2.msra.mxu0 0.0
    %1636 = vmatprep.subr.mxu0 0.0
    %1637 = vmatpush2.msra.mxu0 0.0
    %1638 = vmatprep.subr.mxu0 0.0
    %1639 = vmatpush2.msra.mxu0 0.0
    %1640 = vmatprep.subr.mxu0 0.0
    %1641 = vmatpush2.msra.mxu0 0.0
    %1642 = vmatprep.subr.mxu0 0.0
    %1643 = vmatpush2.msra.mxu0 0.0
    %1644 = vmatprep.subr.mxu0 0.0
    %1645 = vmatpush2.msra.mxu0 0.0
    %1646 = vmatprep.subr.mxu0 0.0
    %1647 = vmatpush2.msra.mxu0 0.0
    %1648 = vmatprep.subr.mxu0 0.0
    %1649 = vmatpush2.msra.mxu0 0.0
    %1650 = vmatprep.subr.mxu0 0.0
    %1651 = vmatpush2.msra.mxu0 0.0
    %1652 = vmatprep.subr.mxu0 0.0
    %1653 = vmatpush2.msra.mxu0 0.0
    %1654 = vmatprep.subr.mxu0 0.0
    %1655 = vmatpush2.msra.mxu0 0.0
    %1656 = vmatprep.subr.mxu0 0.0
    %1657 = vmatpush2.msra.mxu0 0.0
    %1658 = vmatprep.mubr.f32.mxu0 0.0
    %1659 = vmatmul.mubr.f32.gmra.mxu0 %v1592
    %v1660 = vpop.f32.mrf.mxu0
    %v1661 = vadd.f32 %v1590, %v1660
    %v1662 = vpop.f32.mrf.mxu0
    %1663 = vdwg.mxu0
    %v1664 = vld [vmem:[#allocation2 + $0x328] sm:$0xff]
    %v1665 = vld [vmem:[#allocation2 + $0x330] sm:$0xff]
    %v1666 = vld [vmem:[#allocation2 + $0x338] sm:$0xff]
    %v1667 = vld [vmem:[#allocation2 + $0x340] sm:$0xff]
    %v1668 = vld [vmem:[#allocation2 + $0x348] sm:$0xf]
    %v1670 = vcombine.high %v1661, %v1661
    %v1672 = vunpack.c.l.s4 1966171168
    %v1673 = vunpack.c.0.s8 %v1672
    %v1674 = vlaneseq
    %v1675 = vshrl.u32 %v1674, 7
    %v1676 = vsub.s32 %v1673, %v1675
    %v1677 = vrot.slane %v1661, %v1676
    %v1679 = vunpack.c.l.s4 1966171168
    %v1680 = vunpack.c.0.s8 %v1679
    %v1681 = vlaneseq
    %v1682 = vshrl.u32 %v1681, 7
    %v1683 = vsub.s32 %v1680, %v1682
    %v1684 = vrot.slane %v1670, %v1683
    %v1685 = vcombine.high %v1677, %v1677
    %v1686 = vcombine.high %v1684, %v1684
    %v1688 = vunpack.c.l.s4 1966171168
    %v1689 = vunpack.c.0.s8 %v1688
    %v1690 = vlaneseq
    %v1691 = vshrl.u32 %v1690, 7
    %v1692 = vsub.s32 %v1689, %v1691
    %v1693 = vrot.slane %v1677, %v1692
    %v1695 = vunpack.c.l.s4 1966171168
    %v1696 = vunpack.c.0.s8 %v1695
    %v1697 = vlaneseq
    %v1698 = vshrl.u32 %v1697, 7
    %v1699 = vsub.s32 %v1696, %v1698
    %v1700 = vrot.slane %v1684, %v1699
    %v1702 = vunpack.c.l.s4 1966171168
    %v1703 = vunpack.c.0.s8 %v1702
    %v1704 = vlaneseq
    %v1705 = vshrl.u32 %v1704, 7
    %v1706 = vsub.s32 %v1703, %v1705
    %v1707 = vrot.slane %v1685, %v1706
    %v1709 = vunpack.c.l.s4 1966171168
    %v1710 = vunpack.c.0.s8 %v1709
    %v1711 = vlaneseq
    %v1712 = vshrl.u32 %v1711, 7
    %v1713 = vsub.s32 %v1710, %v1712
    %v1714 = vrot.slane %v1686, %v1713
    %v1715 = vcombine.high %v1693, %v1693
    %v1716 = vcombine.high %v1707, %v1707
    %v1719 = vunpack.c.l.s4 1966171168
    %v1720 = vunpack.c.0.s8 %v1719
    %v1721 = vlaneseq
    %v1722 = vshrl.u32 %v1721, 7
    %v1723 = vsub.s32 %v1720, %v1722
    %v1724 = vrot.slane %v1579, %v1723
    %v1725 = vcombine.high %v1724, %v1724
    %v1727 = vunpack.c.l.s4 1966171168
    %v1728 = vunpack.c.0.s8 %v1727
    %v1729 = vlaneseq
    %v1730 = vshrl.u32 %v1729, 7
    %v1731 = vsub.s32 %v1728, %v1730
    %v1732 = vrot.slane %v1724, %v1731
    %v1734 = vunpack.c.l.s4 1966171168
    %v1735 = vunpack.c.0.s8 %v1734
    %v1736 = vlaneseq
    %v1737 = vshrl.u32 %v1736, 7
    %v1738 = vsub.s32 %v1735, %v1737
    %v1739 = vrot.slane %v1725, %v1738
    %v1740 = vlaneseq
    %v1741 = vshrl.u32 %v1740, 7
    %v1742 = vsub.s32 0, %v1741
    %v1743 = vrot.slane %v1732, %v1742
    %v1744 = vlaneseq
    %v1745 = vshrl.u32 %v1744, 7
    %v1746 = vsub.s32 0, %v1745
    %v1747 = vrot.slane %v1739, %v1746
    %v1750 = vcombine.low %v1693, %v1707
    %v1752 = vunpack.c.l.s4 1966171168
    %v1753 = vunpack.c.0.s8 %v1752
    %v1754 = vlaneseq
    %v1755 = vshrl.u32 %v1754, 7
    %v1756 = vsub.s32 %v1753, %v1755
    %v1757 = vrot.slane %v1750, %v1756
    %v1759 = vunpack.c.l.s4 1966171168
    %v1760 = vunpack.c.0.s8 %v1759
    %v1761 = vlaneseq
    %v1762 = vshrl.u32 %v1761, 7
    %v1763 = vsub.s32 %v1760, %v1762
    %v1764 = vrot.slane %v1715, %v1763
    %v1765 = vcombine.low %v1757, %v1764
    %v1767 = vunpack.c.l.s4 1966171168
    %v1768 = vunpack.c.0.s8 %v1767
    %v1769 = vlaneseq
    %v1770 = vshrl.u32 %v1769, 7
    %v1771 = vsub.s32 %v1768, %v1770
    %v1772 = vrot.slane %v1765, %v1771
    %v1773 = vcombine.low %v1716, %v1700
    %v1775 = vunpack.c.l.s4 1966171168
    %v1776 = vunpack.c.0.s8 %v1775
    %v1777 = vlaneseq
    %v1778 = vshrl.u32 %v1777, 7
    %v1779 = vsub.s32 %v1776, %v1778
    %v1780 = vrot.slane %v1773, %v1779
    %v1782 = vunpack.c.l.s4 1966171168
    %v1783 = vunpack.c.0.s8 %v1782
    %v1784 = vlaneseq
    %v1785 = vshrl.u32 %v1784, 7
    %v1786 = vsub.s32 %v1783, %v1785
    %v1787 = vrot.slane %v1714, %v1786
    %v1788 = vcombine.low %v1780, %v1787
    %v1790 = vunpack.c.l.s4 1966171168
    %v1791 = vunpack.c.0.s8 %v1790
    %v1792 = vlaneseq
    %v1793 = vshrl.u32 %v1792, 7
    %v1794 = vsub.s32 %v1791, %v1793
    %v1795 = vrot.slane %v1788, %v1794
    %v1798 = vmul.f32 %v1743, %v1772
    %v1799 = vmul.f32 %v1747, %v1795
    %v1803 = vunpack.c.l.s4 1966171168
    %v1804 = vunpack.c.0.s8 %v1803
    %v1805 = vlaneseq
    %v1806 = vshrl.u32 %v1805, 7
    %v1807 = vsub.s32 %v1804, %v1806
    %v1808 = vrot.slane %v1798, %v1807
    %v1809 = vcombine.high %v1808, %v1808
    %v1811 = vunpack.c.l.s4 1966171168
    %v1812 = vunpack.c.0.s8 %v1811
    %v1813 = vlaneseq
    %v1814 = vshrl.u32 %v1813, 7
    %v1815 = vsub.s32 %v1812, %v1814
    %v1816 = vrot.slane %v1808, %v1815
    %v1818 = vunpack.c.l.s4 1966171168
    %v1819 = vunpack.c.0.s8 %v1818
    %v1820 = vlaneseq
    %v1821 = vshrl.u32 %v1820, 7
    %v1822 = vsub.s32 %v1819, %v1821
    %v1823 = vrot.slane %v1809, %v1822
    %v1824 = vcombine.high %v1816, %v1816
    %v1826 = vunpack.c.l.s4 1966171168
    %v1827 = vunpack.c.0.s8 %v1826
    %v1828 = vlaneseq
    %v1829 = vshrl.u32 %v1828, 7
    %v1830 = vsub.s32 %v1827, %v1829
    %v1831 = vrot.slane %v1799, %v1830
    %v1832 = vcombine.high %v1831, %v1831
    %v1834 = vunpack.c.l.s4 1966171168
    %v1835 = vunpack.c.0.s8 %v1834
    %v1836 = vlaneseq
    %v1837 = vshrl.u32 %v1836, 7
    %v1838 = vsub.s32 %v1835, %v1837
    %v1839 = vrot.slane %v1831, %v1838
    %v1841 = vunpack.c.l.s4 1966171168
    %v1842 = vunpack.c.0.s8 %v1841
    %v1843 = vlaneseq
    %v1844 = vshrl.u32 %v1843, 7
    %v1845 = vsub.s32 %v1842, %v1844
    %v1846 = vrot.slane %v1832, %v1845
    %v1847 = vcombine.high %v1839, %v1839
    %v1848 = vcombine.low %v1816, %v1823
    %v1849 = vcombine.low %v1824, %v1839
    %v1850 = vcombine.low %v1846, %v1847
    %v1852 = vunpack.c.l.s4 1966171168
    %v1853 = vunpack.c.0.s8 %v1852
    %v1854 = vlaneseq
    %v1855 = vshrl.u32 %v1854, 7
    %v1856 = vsub.s32 %v1853, %v1855
    %v1857 = vrot.slane %v1848, %v1856
    %v1859 = vunpack.c.l.s4 1966171168
    %v1860 = vunpack.c.0.s8 %v1859
    %v1861 = vlaneseq
    %v1862 = vshrl.u32 %v1861, 7
    %v1863 = vsub.s32 %v1860, %v1862
    %v1864 = vrot.slane %v1849, %v1863
    %v1866 = vunpack.c.l.s4 1966171168
    %v1867 = vunpack.c.0.s8 %v1866
    %v1868 = vlaneseq
    %v1869 = vshrl.u32 %v1868, 7
    %v1870 = vsub.s32 %v1867, %v1869
    %v1871 = vrot.slane %v1850, %v1870
    %v1872 = vcombine.low %v1857, %v1864
    %v1874 = vunpack.c.l.s4 1966171168
    %v1875 = vunpack.c.0.s8 %v1874
    %v1876 = vlaneseq
    %v1877 = vshrl.u32 %v1876, 7
    %v1878 = vsub.s32 %v1875, %v1877
    %v1879 = vrot.slane %v1872, %v1878
    %v1881 = vunpack.c.l.s4 1966171168
    %v1882 = vunpack.c.0.s8 %v1881
    %v1883 = vlaneseq
    %v1884 = vshrl.u32 %v1883, 7
    %v1885 = vsub.s32 %v1882, %v1884
    %v1886 = vrot.slane %v1871, %v1885
    %v1887 = vcombine.low %v1879, %v1886
    %v1888 = vsel %vm240, %v1887, 0
    %1890 = vmatprep.subr.mxu0 0.0
    %1891 = vmatpush1.msra.mxu0 0.0
    %1892 = vmatprep.subr.mxu0 0.0
    %1893 = vmatpush1.msra.mxu0 0.0
    %1894 = vmatprep.subr.mxu0 0.0
    %1895 = vmatpush1.msra.mxu0 0.0
    %1896 = vmatprep.subr.mxu0 0.0
    %1897 = vmatpush1.msra.mxu0 0.0
    %1898 = vmatprep.subr.mxu0 0.0
    %1899 = vmatpush1.msra.mxu0 0.0
    %1900 = vmatprep.subr.mxu0 0.0
    %1901 = vmatpush1.msra.mxu0 0.0
    %1902 = vmatprep.subr.mxu0 0.0
    %1903 = vmatpush1.msra.mxu0 0.0
    %1904 = vmatprep.subr.mxu0 0.0
    %1905 = vmatpush1.msra.mxu0 0.0
    %1906 = vmatprep.subr.mxu0 0.0
    %1907 = vmatpush1.msra.mxu0 0.0
    %1908 = vmatprep.subr.mxu0 0.0
    %1909 = vmatpush1.msra.mxu0 0.0
    %1910 = vmatprep.subr.mxu0 0.0
    %1911 = vmatpush1.msra.mxu0 0.0
    %1912 = vmatprep.subr.mxu0 0.0
    %1913 = vmatpush1.msra.mxu0 0.0
    %1914 = vmatprep.subr.mxu0 0.0
    %1915 = vmatpush1.msra.mxu0 %v1667
    %1916 = vmatprep.subr.mxu0 0.0
    %1917 = vmatpush1.msra.mxu0 %v1666
    %1918 = vmatprep.subr.mxu0 0.0
    %1919 = vmatpush1.msra.mxu0 %v1665
    %1920 = vmatprep.subr.mxu0 0.0
    %1921 = vmatpush1.msra.mxu0 %v1664
    %1922 = vmatprep.subr.mxu0 0.0
    %1923 = vmatpush2.msra.mxu0 0.0
    %1924 = vmatprep.subr.mxu0 0.0
    %1925 = vmatpush2.msra.mxu0 0.0
    %1926 = vmatprep.subr.mxu0 0.0
    %1927 = vmatpush2.msra.mxu0 0.0
    %1928 = vmatprep.subr.mxu0 0.0
    %1929 = vmatpush2.msra.mxu0 0.0
    %1930 = vmatprep.subr.mxu0 0.0
    %1931 = vmatpush2.msra.mxu0 0.0
    %1932 = vmatprep.subr.mxu0 0.0
    %1933 = vmatpush2.msra.mxu0 0.0
    %1934 = vmatprep.subr.mxu0 0.0
    %1935 = vmatpush2.msra.mxu0 0.0
    %1936 = vmatprep.subr.mxu0 0.0
    %1937 = vmatpush2.msra.mxu0 0.0
    %1938 = vmatprep.subr.mxu0 0.0
    %1939 = vmatpush2.msra.mxu0 0.0
    %1940 = vmatprep.subr.mxu0 0.0
    %1941 = vmatpush2.msra.mxu0 0.0
    %1942 = vmatprep.subr.mxu0 0.0
    %1943 = vmatpush2.msra.mxu0 0.0
    %1944 = vmatprep.subr.mxu0 0.0
    %1945 = vmatpush2.msra.mxu0 0.0
    %1946 = vmatprep.subr.mxu0 0.0
    %1947 = vmatpush2.msra.mxu0 0.0
    %1948 = vmatprep.subr.mxu0 0.0
    %1949 = vmatpush2.msra.mxu0 0.0
    %1950 = vmatprep.subr.mxu0 0.0
    %1951 = vmatpush2.msra.mxu0 0.0
    %1952 = vmatprep.subr.mxu0 0.0
    %1953 = vmatpush2.msra.mxu0 0.0
    %1954 = vmatprep.mubr.f32.mxu0 0.0
    %1955 = vmatmul.mubr.f32.gmra.mxu0 %v1888
    %v1956 = vpop.f32.mrf.mxu0
    %v1957 = vadd.f32 0.0, %v1956
    %v1958 = vpop.f32.mrf.mxu0
    %1959 = vdwg.mxu0
    %v1961 = vcombine.high %v1957, %v1957
    %v1963 = vunpack.c.l.s4 1966171168
    %v1964 = vunpack.c.0.s8 %v1963
    %v1965 = vlaneseq
    %v1966 = vshrl.u32 %v1965, 7
    %v1967 = vsub.s32 %v1964, %v1966
    %v1968 = vrot.slane %v1957, %v1967
    %v1970 = vunpack.c.l.s4 1966171168
    %v1971 = vunpack.c.0.s8 %v1970
    %v1972 = vlaneseq
    %v1973 = vshrl.u32 %v1972, 7
    %v1974 = vsub.s32 %v1971, %v1973
    %v1975 = vrot.slane %v1961, %v1974
    %v1976 = vcombine.high %v1968, %v1968
    %v1977 = vcombine.high %v1975, %v1975
    %v1979 = vunpack.c.l.s4 1966171168
    %v1980 = vunpack.c.0.s8 %v1979
    %v1981 = vlaneseq
    %v1982 = vshrl.u32 %v1981, 7
    %v1983 = vsub.s32 %v1980, %v1982
    %v1984 = vrot.slane %v1968, %v1983
    %v1986 = vunpack.c.l.s4 1966171168
    %v1987 = vunpack.c.0.s8 %v1986
    %v1988 = vlaneseq
    %v1989 = vshrl.u32 %v1988, 7
    %v1990 = vsub.s32 %v1987, %v1989
    %v1991 = vrot.slane %v1975, %v1990
    %v1993 = vunpack.c.l.s4 1966171168
    %v1994 = vunpack.c.0.s8 %v1993
    %v1995 = vlaneseq
    %v1996 = vshrl.u32 %v1995, 7
    %v1997 = vsub.s32 %v1994, %v1996
    %v1998 = vrot.slane %v1976, %v1997
    %v2000 = vunpack.c.l.s4 1966171168
    %v2001 = vunpack.c.0.s8 %v2000
    %v2002 = vlaneseq
    %v2003 = vshrl.u32 %v2002, 7
    %v2004 = vsub.s32 %v2001, %v2003
    %v2005 = vrot.slane %v1977, %v2004
    %v2006 = vcombine.high %v1984, %v1984
    %v2007 = vcombine.high %v1998, %v1998
    %v2014 = vcombine.low %v1984, %v1998
    %v2016 = vunpack.c.l.s4 1966171168
    %v2017 = vunpack.c.0.s8 %v2016
    %v2018 = vlaneseq
    %v2019 = vshrl.u32 %v2018, 7
    %v2020 = vsub.s32 %v2017, %v2019
    %v2021 = vrot.slane %v2014, %v2020
    %v2023 = vunpack.c.l.s4 1966171168
    %v2024 = vunpack.c.0.s8 %v2023
    %v2025 = vlaneseq
    %v2026 = vshrl.u32 %v2025, 7
    %v2027 = vsub.s32 %v2024, %v2026
    %v2028 = vrot.slane %v2006, %v2027
    %v2029 = vcombine.low %v2021, %v2028
    %v2031 = vunpack.c.l.s4 1966171168
    %v2032 = vunpack.c.0.s8 %v2031
    %v2033 = vlaneseq
    %v2034 = vshrl.u32 %v2033, 7
    %v2035 = vsub.s32 %v2032, %v2034
    %v2036 = vrot.slane %v2029, %v2035
    %v2037 = vcombine.low %v2007, %v1991
    %v2039 = vunpack.c.l.s4 1966171168
    %v2040 = vunpack.c.0.s8 %v2039
    %v2041 = vlaneseq
    %v2042 = vshrl.u32 %v2041, 7
    %v2043 = vsub.s32 %v2040, %v2042
    %v2044 = vrot.slane %v2037, %v2043
    %v2046 = vunpack.c.l.s4 1966171168
    %v2047 = vunpack.c.0.s8 %v2046
    %v2048 = vlaneseq
    %v2049 = vshrl.u32 %v2048, 7
    %v2050 = vsub.s32 %v2047, %v2049
    %v2051 = vrot.slane %v2005, %v2050
    %v2052 = vcombine.low %v2044, %v2051
    %v2054 = vunpack.c.l.s4 1966171168
    %v2055 = vunpack.c.0.s8 %v2054
    %v2056 = vlaneseq
    %v2057 = vshrl.u32 %v2056, 7
    %v2058 = vsub.s32 %v2055, %v2057
    %v2059 = vrot.slane %v2052, %v2058
    %vm2062 = vcmask 26624
    %v2063 = vsel %vm2062, %v2036, -inf
    %v2064 = vrot.slane %v2063, 4
    %v2065 = vmax.f32 %v2063, %v2064
    %v2066 = vrot.slane %v2065, 2
    %v2067 = vmax.f32 %v2065, %v2066
    %v2068 = vrot.slane %v2067, 1
    %v2069 = vmax.f32 %v2067, %v2068
    %v2070 = vsel %vm2062, %v2059, -inf
    %v2071 = vrot.slane %v2070, 4
    %v2072 = vmax.f32 %v2070, %v2071
    %v2073 = vrot.slane %v2072, 2
    %v2074 = vmax.f32 %v2072, %v2073
    %v2075 = vrot.slane %v2074, 1
    %v2076 = vmax.f32 %v2074, %v2075
    %v2080 = vunpack.c.l.s4 1966171168
    %v2081 = vunpack.c.0.s8 %v2080
    %v2082 = vlaneseq
    %v2083 = vshrl.u32 %v2082, 7
    %v2084 = vsub.s32 %v2081, %v2083
    %v2085 = vrot.slane %v2069, %v2084
    %v2086 = vcombine.high %v2085, %v2085
    %v2088 = vunpack.c.l.s4 1966171168
    %v2089 = vunpack.c.0.s8 %v2088
    %v2090 = vlaneseq
    %v2091 = vshrl.u32 %v2090, 7
    %v2092 = vsub.s32 %v2089, %v2091
    %v2093 = vrot.slane %v2085, %v2092
    %v2095 = vunpack.c.l.s4 1966171168
    %v2096 = vunpack.c.0.s8 %v2095
    %v2097 = vlaneseq
    %v2098 = vshrl.u32 %v2097, 7
    %v2099 = vsub.s32 %v2096, %v2098
    %v2100 = vrot.slane %v2086, %v2099
    %v2101 = vcombine.high %v2093, %v2093
    %v2103 = vunpack.c.l.s4 1966171168
    %v2104 = vunpack.c.0.s8 %v2103
    %v2105 = vlaneseq
    %v2106 = vshrl.u32 %v2105, 7
    %v2107 = vsub.s32 %v2104, %v2106
    %v2108 = vrot.slane %v2076, %v2107
    %v2109 = vcombine.high %v2108, %v2108
    %v2111 = vunpack.c.l.s4 1966171168
    %v2112 = vunpack.c.0.s8 %v2111
    %v2113 = vlaneseq
    %v2114 = vshrl.u32 %v2113, 7
    %v2115 = vsub.s32 %v2112, %v2114
    %v2116 = vrot.slane %v2108, %v2115
    %v2118 = vunpack.c.l.s4 1966171168
    %v2119 = vunpack.c.0.s8 %v2118
    %v2120 = vlaneseq
    %v2121 = vshrl.u32 %v2120, 7
    %v2122 = vsub.s32 %v2119, %v2121
    %v2123 = vrot.slane %v2109, %v2122
    %v2124 = vcombine.high %v2116, %v2116
    %v2131 = vsub.f32 %v1984, %v2093
    %v2132 = vsub.f32 %v1998, %v2100
    %v2133 = vsub.f32 %v2006, %v2101
    %v2134 = vsub.f32 %v2007, %v2116
    %v2135 = vsub.f32 %v1991, %v2123
    %v2136 = vsub.f32 %v2005, %v2124
    %v2137 = vmul.f32 %v2131, 1.442695
    %v2138 = vpow.pop %v2137
    %v2139 = vmul.f32 %v2132, 1.442695
    %v2140 = vpow.pop %v2139
    %v2141 = vmul.f32 %v2133, 1.442695
    %v2142 = vpow.pop %v2141
    %v2143 = vmul.f32 %v2134, 1.442695
    %v2144 = vpow.pop %v2143
    %v2145 = vmul.f32 %v2135, 1.442695
    %v2146 = vpow.pop %v2145
    %v2147 = vmul.f32 %v2136, 1.442695
    %v2148 = vpow.pop %v2147
    %v2155 = vcombine.low %v2138, %v2140
    %v2157 = vunpack.c.l.s4 1966171168
    %v2158 = vunpack.c.0.s8 %v2157
    %v2159 = vlaneseq
    %v2160 = vshrl.u32 %v2159, 7
    %v2161 = vsub.s32 %v2158, %v2160
    %v2162 = vrot.slane %v2155, %v2161
    %v2164 = vunpack.c.l.s4 1966171168
    %v2165 = vunpack.c.0.s8 %v2164
    %v2166 = vlaneseq
    %v2167 = vshrl.u32 %v2166, 7
    %v2168 = vsub.s32 %v2165, %v2167
    %v2169 = vrot.slane %v2142, %v2168
    %v2170 = vcombine.low %v2162, %v2169
    %v2172 = vunpack.c.l.s4 1966171168
    %v2173 = vunpack.c.0.s8 %v2172
    %v2174 = vlaneseq
    %v2175 = vshrl.u32 %v2174, 7
    %v2176 = vsub.s32 %v2173, %v2175
    %v2177 = vrot.slane %v2170, %v2176
    %v2178 = vcombine.low %v2144, %v2146
    %v2180 = vunpack.c.l.s4 1966171168
    %v2181 = vunpack.c.0.s8 %v2180
    %v2182 = vlaneseq
    %v2183 = vshrl.u32 %v2182, 7
    %v2184 = vsub.s32 %v2181, %v2183
    %v2185 = vrot.slane %v2178, %v2184
    %v2187 = vunpack.c.l.s4 1966171168
    %v2188 = vunpack.c.0.s8 %v2187
    %v2189 = vlaneseq
    %v2190 = vshrl.u32 %v2189, 7
    %v2191 = vsub.s32 %v2188, %v2190
    %v2192 = vrot.slane %v2148, %v2191
    %v2193 = vcombine.low %v2185, %v2192
    %v2195 = vunpack.c.l.s4 1966171168
    %v2196 = vunpack.c.0.s8 %v2195
    %v2197 = vlaneseq
    %v2198 = vshrl.u32 %v2197, 7
    %v2199 = vsub.s32 %v2196, %v2198
    %v2200 = vrot.slane %v2193, %v2199
    %v2203 = vsel %vm2062, %v2177, 0.0
    %v2204 = vrot.slane %v2203, 4
    %v2205 = vadd.f32 %v2203, %v2204
    %v2206 = vrot.slane %v2205, 2
    %v2207 = vadd.f32 %v2205, %v2206
    %v2208 = vrot.slane %v2207, 1
    %v2209 = vadd.f32 %v2207, %v2208
    %v2210 = vsel %vm2062, %v2200, 0.0
    %v2211 = vrot.slane %v2210, 4
    %v2212 = vadd.f32 %v2210, %v2211
    %v2213 = vrot.slane %v2212, 2
    %v2214 = vadd.f32 %v2212, %v2213
    %v2215 = vrot.slane %v2214, 1
    %v2216 = vadd.f32 %v2214, %v2215
    %v2220 = vunpack.c.l.s4 1966171168
    %v2221 = vunpack.c.0.s8 %v2220
    %v2222 = vlaneseq
    %v2223 = vshrl.u32 %v2222, 7
    %v2224 = vsub.s32 %v2221, %v2223
    %v2225 = vrot.slane %v2209, %v2224
    %v2226 = vcombine.high %v2225, %v2225
    %v2228 = vunpack.c.l.s4 1966171168
    %v2229 = vunpack.c.0.s8 %v2228
    %v2230 = vlaneseq
    %v2231 = vshrl.u32 %v2230, 7
    %v2232 = vsub.s32 %v2229, %v2231
    %v2233 = vrot.slane %v2225, %v2232
    %v2235 = vunpack.c.l.s4 1966171168
    %v2236 = vunpack.c.0.s8 %v2235
    %v2237 = vlaneseq
    %v2238 = vshrl.u32 %v2237, 7
    %v2239 = vsub.s32 %v2236, %v2238
    %v2240 = vrot.slane %v2226, %v2239
    %v2241 = vcombine.high %v2233, %v2233
    %v2243 = vunpack.c.l.s4 1966171168
    %v2244 = vunpack.c.0.s8 %v2243
    %v2245 = vlaneseq
    %v2246 = vshrl.u32 %v2245, 7
    %v2247 = vsub.s32 %v2244, %v2246
    %v2248 = vrot.slane %v2216, %v2247
    %v2249 = vcombine.high %v2248, %v2248
    %v2251 = vunpack.c.l.s4 1966171168
    %v2252 = vunpack.c.0.s8 %v2251
    %v2253 = vlaneseq
    %v2254 = vshrl.u32 %v2253, 7
    %v2255 = vsub.s32 %v2252, %v2254
    %v2256 = vrot.slane %v2248, %v2255
    %v2258 = vunpack.c.l.s4 1966171168
    %v2259 = vunpack.c.0.s8 %v2258
    %v2260 = vlaneseq
    %v2261 = vshrl.u32 %v2260, 7
    %v2262 = vsub.s32 %v2259, %v2261
    %v2263 = vrot.slane %v2249, %v2262
    %v2264 = vcombine.high %v2256, %v2256
    %v2271 = vrcp.pop %v2233
    %v2272 = vmul.f32 %v2138, %v2271
    %v2273 = vrcp.pop %v2240
    %v2274 = vmul.f32 %v2140, %v2273
    %v2275 = vrcp.pop %v2241
    %v2276 = vmul.f32 %v2142, %v2275
    %v2277 = vrcp.pop %v2256
    %v2278 = vmul.f32 %v2144, %v2277
    %v2279 = vrcp.pop %v2263
    %v2280 = vmul.f32 %v2146, %v2279
    %v2281 = vrcp.pop %v2264
    %v2282 = vmul.f32 %v2148, %v2281
    %v2289 = vcombine.low %v2272, %v2274
    %v2290 = vcombine.low %v2276, %v2278
    %v2291 = vcombine.low %v2280, %v2282
    %v2293 = vunpack.c.l.s4 1966171168
    %v2294 = vunpack.c.0.s8 %v2293
    %v2295 = vlaneseq
    %v2296 = vshrl.u32 %v2295, 7
    %v2297 = vsub.s32 %v2294, %v2296
    %v2298 = vrot.slane %v2289, %v2297
    %v2300 = vunpack.c.l.s4 1966171168
    %v2301 = vunpack.c.0.s8 %v2300
    %v2302 = vlaneseq
    %v2303 = vshrl.u32 %v2302, 7
    %v2304 = vsub.s32 %v2301, %v2303
    %v2305 = vrot.slane %v2290, %v2304
    %v2307 = vunpack.c.l.s4 1966171168
    %v2308 = vunpack.c.0.s8 %v2307
    %v2309 = vlaneseq
    %v2310 = vshrl.u32 %v2309, 7
    %v2311 = vsub.s32 %v2308, %v2310
    %v2312 = vrot.slane %v2291, %v2311
    %v2313 = vcombine.low %v2298, %v2305
    %v2315 = vunpack.c.l.s4 1966171168
    %v2316 = vunpack.c.0.s8 %v2315
    %v2317 = vlaneseq
    %v2318 = vshrl.u32 %v2317, 7
    %v2319 = vsub.s32 %v2316, %v2318
    %v2320 = vrot.slane %v2313, %v2319
    %v2322 = vunpack.c.l.s4 1966171168
    %v2323 = vunpack.c.0.s8 %v2322
    %v2324 = vlaneseq
    %v2325 = vshrl.u32 %v2324, 7
    %v2326 = vsub.s32 %v2323, %v2325
    %v2327 = vrot.slane %v2312, %v2326
    %v2328 = vcombine.low %v2320, %v2327
    %v2329 = vsel %vm1015, %v2328, 0
    %v2332 = vsel %vm1116, %v1668, 0
    %2334 = vmatprep.subr.mxu0 0.0
    %2335 = vmatpush1.msra.mxu0 0.0
    %2336 = vmatprep.subr.mxu0 0.0
    %2337 = vmatpush1.msra.mxu0 0.0
    %2338 = vmatprep.subr.mxu0 0.0
    %2339 = vmatpush1.msra.mxu0 0.0
    %2340 = vmatprep.subr.mxu0 0.0
    %2341 = vmatpush1.msra.mxu0 0.0
    %2342 = vmatprep.subr.mxu0 0.0
    %2343 = vmatpush1.msra.mxu0 0.0
    %2344 = vmatprep.subr.mxu0 0.0
    %2345 = vmatpush1.msra.mxu0 0.0
    %2346 = vmatprep.subr.mxu0 0.0
    %2347 = vmatpush1.msra.mxu0 0.0
    %2348 = vmatprep.subr.mxu0 0.0
    %2349 = vmatpush1.msra.mxu0 0.0
    %2350 = vmatprep.subr.mxu0 0.0
    %2351 = vmatpush1.msra.mxu0 0.0
    %2352 = vmatprep.subr.mxu0 0.0
    %2353 = vmatpush1.msra.mxu0 0.0
    %2354 = vmatprep.subr.mxu0 0.0
    %2355 = vmatpush1.msra.mxu0 0.0
    %2356 = vmatprep.subr.mxu0 0.0
    %2357 = vmatpush1.msra.mxu0 0.0
    %2358 = vmatprep.subr.mxu0 0.0
    %2359 = vmatpush1.msra.mxu0 0.0
    %2360 = vmatprep.subr.mxu0 0.0
    %2361 = vmatpush1.msra.mxu0 0.0
    %2362 = vmatprep.subr.mxu0 0.0
    %2363 = vmatpush1.msra.mxu0 0.0
    %2364 = vmatprep.subr.mxu0 0.0
    %2365 = vmatpush1.msra.mxu0 %v2332
    %2366 = vmatprep.subr.mxu0 0.0
    %2367 = vmatpush2.msra.mxu0 0.0
    %2368 = vmatprep.subr.mxu0 0.0
    %2369 = vmatpush2.msra.mxu0 0.0
    %2370 = vmatprep.subr.mxu0 0.0
    %2371 = vmatpush2.msra.mxu0 0.0
    %2372 = vmatprep.subr.mxu0 0.0
    %2373 = vmatpush2.msra.mxu0 0.0
    %2374 = vmatprep.subr.mxu0 0.0
    %2375 = vmatpush2.msra.mxu0 0.0
    %2376 = vmatprep.subr.mxu0 0.0
    %2377 = vmatpush2.msra.mxu0 0.0
    %2378 = vmatprep.subr.mxu0 0.0
    %2379 = vmatpush2.msra.mxu0 0.0
    %2380 = vmatprep.subr.mxu0 0.0
    %2381 = vmatpush2.msra.mxu0 0.0
    %2382 = vmatprep.subr.mxu0 0.0
    %2383 = vmatpush2.msra.mxu0 0.0
    %2384 = vmatprep.subr.mxu0 0.0
    %2385 = vmatpush2.msra.mxu0 0.0
    %2386 = vmatprep.subr.mxu0 0.0
    %2387 = vmatpush2.msra.mxu0 0.0
    %2388 = vmatprep.subr.mxu0 0.0
    %2389 = vmatpush2.msra.mxu0 0.0
    %2390 = vmatprep.subr.mxu0 0.0
    %2391 = vmatpush2.msra.mxu0 0.0
    %2392 = vmatprep.subr.mxu0 0.0
    %2393 = vmatpush2.msra.mxu0 0.0
    %2394 = vmatprep.subr.mxu0 0.0
    %2395 = vmatpush2.msra.mxu0 0.0
    %2396 = vmatprep.subr.mxu0 0.0
    %2397 = vmatpush2.msra.mxu0 0.0
    %2398 = vmatprep.mubr.f32.mxu0 0.0
    %2399 = vmatmul.mubr.f32.gmra.mxu0 %v2329
    %v2400 = vpop.f32.mrf.mxu0
    %v2401 = vadd.f32 0.0, %v2400
    %v2402 = vpop.f32.mrf.mxu0
    %2403 = vdwg.mxu0
    %v2405 = vcombine.high %v2401, %v2401
    %v2407 = vunpack.c.l.s4 1966171168
    %v2408 = vunpack.c.0.s8 %v2407
    %v2409 = vlaneseq
    %v2410 = vshrl.u32 %v2409, 7
    %v2411 = vsub.s32 %v2408, %v2410
    %v2412 = vrot.slane %v2401, %v2411
    %v2414 = vunpack.c.l.s4 1966171168
    %v2415 = vunpack.c.0.s8 %v2414
    %v2416 = vlaneseq
    %v2417 = vshrl.u32 %v2416, 7
    %v2418 = vsub.s32 %v2415, %v2417
    %v2419 = vrot.slane %v2405, %v2418
    %v2420 = vcombine.high %v2412, %v2412
    %v2421 = vcombine.high %v2419, %v2419
    %v2423 = vunpack.c.l.s4 1966171168
    %v2424 = vunpack.c.0.s8 %v2423
    %v2425 = vlaneseq
    %v2426 = vshrl.u32 %v2425, 7
    %v2427 = vsub.s32 %v2424, %v2426
    %v2428 = vrot.slane %v2412, %v2427
    %v2430 = vunpack.c.l.s4 1966171168
    %v2431 = vunpack.c.0.s8 %v2430
    %v2432 = vlaneseq
    %v2433 = vshrl.u32 %v2432, 7
    %v2434 = vsub.s32 %v2431, %v2433
    %v2435 = vrot.slane %v2419, %v2434
    %v2437 = vunpack.c.l.s4 1966171168
    %v2438 = vunpack.c.0.s8 %v2437
    %v2439 = vlaneseq
    %v2440 = vshrl.u32 %v2439, 7
    %v2441 = vsub.s32 %v2438, %v2440
    %v2442 = vrot.slane %v2420, %v2441
    %v2444 = vunpack.c.l.s4 1966171168
    %v2445 = vunpack.c.0.s8 %v2444
    %v2446 = vlaneseq
    %v2447 = vshrl.u32 %v2446, 7
    %v2448 = vsub.s32 %v2445, %v2447
    %v2449 = vrot.slane %v2421, %v2448
    %v2450 = vcombine.high %v2428, %v2428
    %v2451 = vcombine.high %v2442, %v2442
    %2458 = vrot.lane.b32.xlu0 %v1693, 96
    %v2459 = vpop.permute.xlu0 %2458
    %2460 = vrot.lane.b32.xlu0 %v1707, 96
    %v2461 = vpop.permute.xlu0 %2460
    %2462 = vrot.lane.b32.xlu0 %v1715, 96
    %v2463 = vpop.permute.xlu0 %2462
    %2464 = vrot.lane.b32.xlu0 %v1716, 96
    %v2465 = vpop.permute.xlu0 %2464
    %2466 = vrot.lane.b32.xlu0 %v1700, 96
    %v2467 = vpop.permute.xlu0 %2466
    %2468 = vrot.lane.b32.xlu0 %v1714, 96
    %v2469 = vpop.permute.xlu0 %2468
    %v2476 = vmul.f32 %v2428, %v2459
    %v2477 = vmul.f32 %v2442, %v2461
    %v2478 = vmul.f32 %v2450, %v2463
    %v2479 = vmul.f32 %v2451, %v2465
    %v2480 = vmul.f32 %v2435, %v2467
    %v2481 = vmul.f32 %v2449, %v2469
    %v2488 = vcombine.low %v2476, %v2477
    %v2490 = vunpack.c.l.s4 1966171168
    %v2491 = vunpack.c.0.s8 %v2490
    %v2492 = vlaneseq
    %v2493 = vshrl.u32 %v2492, 7
    %v2494 = vsub.s32 %v2491, %v2493
    %v2495 = vrot.slane %v2488, %v2494
    %v2497 = vunpack.c.l.s4 1966171168
    %v2498 = vunpack.c.0.s8 %v2497
    %v2499 = vlaneseq
    %v2500 = vshrl.u32 %v2499, 7
    %v2501 = vsub.s32 %v2498, %v2500
    %v2502 = vrot.slane %v2478, %v2501
    %v2503 = vcombine.low %v2495, %v2502
    %v2505 = vunpack.c.l.s4 1966171168
    %v2506 = vunpack.c.0.s8 %v2505
    %v2507 = vlaneseq
    %v2508 = vshrl.u32 %v2507, 7
    %v2509 = vsub.s32 %v2506, %v2508
    %v2510 = vrot.slane %v2503, %v2509
    %v2511 = vcombine.low %v2479, %v2480
    %v2513 = vunpack.c.l.s4 1966171168
    %v2514 = vunpack.c.0.s8 %v2513
    %v2515 = vlaneseq
    %v2516 = vshrl.u32 %v2515, 7
    %v2517 = vsub.s32 %v2514, %v2516
    %v2518 = vrot.slane %v2511, %v2517
    %v2520 = vunpack.c.l.s4 1966171168
    %v2521 = vunpack.c.0.s8 %v2520
    %v2522 = vlaneseq
    %v2523 = vshrl.u32 %v2522, 7
    %v2524 = vsub.s32 %v2521, %v2523
    %v2525 = vrot.slane %v2481, %v2524
    %v2526 = vcombine.low %v2518, %v2525
    %v2528 = vunpack.c.l.s4 1966171168
    %v2529 = vunpack.c.0.s8 %v2528
    %v2530 = vlaneseq
    %v2531 = vshrl.u32 %v2530, 7
    %v2532 = vsub.s32 %v2529, %v2531
    %v2533 = vrot.slane %v2526, %v2532
    %vm2536 = vcmask 256000
    %v2537 = vsel %vm2536, %v2510, 0.0
    %v2538 = vrot.slane %v2537, 4
    %v2539 = vadd.f32 %v2537, %v2538
    %v2540 = vrot.slane %v2539, 2
    %v2541 = vadd.f32 %v2539, %v2540
    %v2542 = vrot.slane %v2541, 1
    %v2543 = vadd.f32 %v2541, %v2542
    %v2544 = vsel %vm2536, %v2533, 0.0
    %v2545 = vrot.slane %v2544, 4
    %v2546 = vadd.f32 %v2544, %v2545
    %v2547 = vrot.slane %v2546, 2
    %v2548 = vadd.f32 %v2546, %v2547
    %v2549 = vrot.slane %v2548, 1
    %v2550 = vadd.f32 %v2548, %v2549
    %v2551 = vld [vmem:[#allocation2 + $0x170] sm:$0xff]
    %v2552 = vld [vmem:[#allocation2 + $0x178] sm:$0xff]
    %v2553 = vld [vmem:[#allocation2 + $0x180] sm:$0xff]
    %v2554 = vld [vmem:[#allocation2 + $0x188] sm:$0xff]
    %v2555 = vld [vmem:[#allocation2 + $0x190] sm:$0x1]
    %v2556 = vlaneseq
    %v2557 = vshrl.u32 %v2556, 7
    %v2558 = vsub.s32 0, %v2557
    %v2559 = vrot.slane %v2555, %v2558
    %v2562 = vsel %vm583, %v2550, %v2543
    %v2563 = vsel %vm240, %v2562, 0
    %2565 = vmatprep.subr.mxu0 0.0
    %2566 = vmatpush1.msra.mxu0 0.0
    %2567 = vmatprep.subr.mxu0 0.0
    %2568 = vmatpush1.msra.mxu0 0.0
    %2569 = vmatprep.subr.mxu0 0.0
    %2570 = vmatpush1.msra.mxu0 0.0
    %2571 = vmatprep.subr.mxu0 0.0
    %2572 = vmatpush1.msra.mxu0 0.0
    %2573 = vmatprep.subr.mxu0 0.0
    %2574 = vmatpush1.msra.mxu0 0.0
    %2575 = vmatprep.subr.mxu0 0.0
    %2576 = vmatpush1.msra.mxu0 0.0
    %2577 = vmatprep.subr.mxu0 0.0
    %2578 = vmatpush1.msra.mxu0 0.0
    %2579 = vmatprep.subr.mxu0 0.0
    %2580 = vmatpush1.msra.mxu0 0.0
    %2581 = vmatprep.subr.mxu0 0.0
    %2582 = vmatpush1.msra.mxu0 0.0
    %2583 = vmatprep.subr.mxu0 0.0
    %2584 = vmatpush1.msra.mxu0 0.0
    %2585 = vmatprep.subr.mxu0 0.0
    %2586 = vmatpush1.msra.mxu0 0.0
    %2587 = vmatprep.subr.mxu0 0.0
    %2588 = vmatpush1.msra.mxu0 0.0
    %2589 = vmatprep.subr.mxu0 0.0
    %2590 = vmatpush1.msra.mxu0 %v2554
    %2591 = vmatprep.subr.mxu0 0.0
    %2592 = vmatpush1.msra.mxu0 %v2553
    %2593 = vmatprep.subr.mxu0 0.0
    %2594 = vmatpush1.msra.mxu0 %v2552
    %2595 = vmatprep.subr.mxu0 0.0
    %2596 = vmatpush1.msra.mxu0 %v2551
    %2597 = vmatprep.subr.mxu0 0.0
    %2598 = vmatpush2.msra.mxu0 0.0
    %2599 = vmatprep.subr.mxu0 0.0
    %2600 = vmatpush2.msra.mxu0 0.0
    %2601 = vmatprep.subr.mxu0 0.0
    %2602 = vmatpush2.msra.mxu0 0.0
    %2603 = vmatprep.subr.mxu0 0.0
    %2604 = vmatpush2.msra.mxu0 0.0
    %2605 = vmatprep.subr.mxu0 0.0
    %2606 = vmatpush2.msra.mxu0 0.0
    %2607 = vmatprep.subr.mxu0 0.0
    %2608 = vmatpush2.msra.mxu0 0.0
    %2609 = vmatprep.subr.mxu0 0.0
    %2610 = vmatpush2.msra.mxu0 0.0
    %2611 = vmatprep.subr.mxu0 0.0
    %2612 = vmatpush2.msra.mxu0 0.0
    %2613 = vmatprep.subr.mxu0 0.0
    %2614 = vmatpush2.msra.mxu0 0.0
    %2615 = vmatprep.subr.mxu0 0.0
    %2616 = vmatpush2.msra.mxu0 0.0
    %2617 = vmatprep.subr.mxu0 0.0
    %2618 = vmatpush2.msra.mxu0 0.0
    %2619 = vmatprep.subr.mxu0 0.0
    %2620 = vmatpush2.msra.mxu0 0.0
    %2621 = vmatprep.subr.mxu0 0.0
    %2622 = vmatpush2.msra.mxu0 0.0
    %2623 = vmatprep.subr.mxu0 0.0
    %2624 = vmatpush2.msra.mxu0 0.0
    %2625 = vmatprep.subr.mxu0 0.0
    %2626 = vmatpush2.msra.mxu0 0.0
    %2627 = vmatprep.subr.mxu0 0.0
    %2628 = vmatpush2.msra.mxu0 0.0
    %2629 = vmatprep.mubr.f32.mxu0 0.0
    %2630 = vmatmul.mubr.f32.gmra.mxu0 %v2563
    %v2631 = vpop.f32.mrf.mxu0
    %v2632 = vadd.f32 %v2559, %v2631
    %v2633 = vpop.f32.mrf.mxu0
    %2634 = vdwg.mxu0
    %v2635 = vld [vmem:[#allocation2 + $0x228] sm:$0x1]
    %v2636 = vlaneseq
    %v2637 = vshrl.u32 %v2636, 7
    %v2638 = vsub.s32 0, %v2637
    %v2639 = vrot.slane %v2635, %v2638
    %v2640 = vmul.f32 %v1345, %v2639
    %vm2641 = vcmask 517120
    %v2642 = vsel %vm2641, %v2640, 0.0
    %2643 = vadd.xlane.f32.xlu0 %v2642
    %v2644 = vpop.xlane.xlu0 %2643
    %v2645 = vld [vmem:[#allocation2 + $0x230] sm:$0x1]
    %v2646 = vlaneseq
    %v2647 = vshrl.u32 %v2646, 7
    %v2648 = vsub.s32 0, %v2647
    %v2649 = vrot.slane %v2645, %v2648
    %v2650 = vmul.f32 %v2632, %v2649
    %vm2651 = vcmask 254976
    %v2652 = vsel %vm2651, %v2650, 0.0
    %2653 = vadd.xlane.f32.xlu0 %v2652
    %v2654 = vpop.xlane.xlu0 %2653
    %v2655 = vadd.f32 %v2644, %v2654
    %v2656 = vld [vmem:[#allocation2 + $0x238] sm:$0x1]
    %v2657 = vlaneseq
    %v2658 = vshrl.u32 %v2657, 7
    %v2659 = vsub.s32 0, %v2658
    %v2660 = vrot.slane %v2656, %v2659
    %2662 = vrot.lane.b32.xlu0 %v2660, 96
    %v2663 = vpop.permute.xlu0 %2662
    %v2665 = vmul.f32 %v420, %v2663
    %2667 = vrot.lane.b32.xlu0 %v2665, 32
    %v2668 = vpop.permute.xlu0 %2667
    %v2670 = vsel %vm2651, %v2668, 0.0
    %2671 = vadd.xlane.f32.xlu0 %v2670
    %v2672 = vpop.xlane.xlu0 %2671
    %v2673 = vadd.f32 %v2655, %v2672
    %v2674 = vld [vmem:[#allocation2 + $0x240] sm:$0x1]
    %v2675 = vlaneseq
    %v2676 = vshrl.u32 %v2675, 7
    %v2677 = vsub.s32 0, %v2676
    %v2678 = vrot.slane %v2674, %v2677
    %2680 = vrot.lane.b32.xlu0 %v2678, 32
    %v2681 = vpop.permute.xlu0 %2680
    %v2683 = vmul.f32 %v414, %v2681
    %2685 = vrot.lane.b32.xlu0 %v2683, 96
    %v2686 = vpop.permute.xlu0 %2685
    %v2688 = vsel %vm2651, %v2686, 0.0
    %2689 = vadd.xlane.f32.xlu0 %v2688
    %v2690 = vpop.xlane.xlu0 %2689
    %v2691 = vadd.f32 %v2673, %v2690
    %v2692 = vld [vmem:[#allocation2 + $0x248] sm:$0x1]
    %v2693 = vlaneseq
    %v2694 = vshrl.u32 %v2693, 7
    %v2695 = vsub.s32 0, %v2694
    %v2696 = vrot.slane %v2692, %v2695
    %v2697 = vmul.f32 %v233, %v2696
    %vm2698 = vcmask 123904
    %v2699 = vsel %vm2698, %v2697, 0.0
    %2700 = vadd.xlane.f32.xlu0 %v2699
    %v2701 = vpop.xlane.xlu0 %2700
    %v2702 = vadd.f32 %v2691, %v2701
    %v2703 = vld [vmem:[#allocation2 + $0x250] sm:$0x1]
    %v2704 = vlaneseq
    %v2705 = vshrl.u32 %v2704, 7
    %v2706 = vsub.s32 0, %v2705
    %v2707 = vrot.slane %v2703, %v2706
    %v2708 = vadd.f32 %v2702, %v2707
    %v2709 = vsub.f32 0.0, %v2708
    %v2710 = vmul.f32 %v2709, 1.442695
    %v2711 = vpow.pop %v2710
    %v2712 = vadd.f32 %v2711, 1.0
    %v2713 = vrcp.pop %v2712
    %v2714 = vmul.f32 1.0, %v2713
    %v2715 = vld [vmem:[#allocation2 + $0x258] sm:$0xff]
    %v2716 = vld [vmem:[#allocation2 + $0x260] sm:$0xff]
    %v2717 = vld [vmem:[#allocation2 + $0x268] sm:$0xff]
    %v2718 = vld [vmem:[#allocation2 + $0x270] sm:$0xff]
    %v2719 = vld [vmem:[#allocation2 + $0x278] sm:$0xff]
    %v2720 = vld [vmem:[#allocation2 + $0x280] sm:$0xff]
    %v2721 = vld [vmem:[#allocation2 + $0x288] sm:$0xff]
    %v2722 = vld [vmem:[#allocation2 + $0x290] sm:$0xff]
    %v2723 = vld [vmem:[#allocation2 + $0x298] sm:$0xff]
    %v2724 = vld [vmem:[#allocation2 + $0x2a0] sm:$0xff]
    %v2725 = vld [vmem:[#allocation2 + $0x2a8] sm:$0xff]
    %v2726 = vld [vmem:[#allocation2 + $0x2b0] sm:$0xff]
    %v2727 = vld [vmem:[#allocation2 + $0x2b8] sm:$0xff]
    %v2728 = vld [vmem:[#allocation2 + $0x2c0] sm:$0xff]
    %v2729 = vld [vmem:[#allocation2 + $0x2c8] sm:$0xff]
    %v2730 = vld [vmem:[#allocation2 + $0x2d0] sm:$0xff]
    %v2732 = vsel %vm80, %v1345, 0
    %2734 = vmatprep.subr.mxu0 0.0
    %2735 = vmatpush1.msra.mxu0 0.0
    %2736 = vmatprep.subr.mxu0 0.0
    %2737 = vmatpush1.msra.mxu0 0.0
    %2738 = vmatprep.subr.mxu0 0.0
    %2739 = vmatpush1.msra.mxu0 0.0
    %2740 = vmatprep.subr.mxu0 0.0
    %2741 = vmatpush1.msra.mxu0 0.0
    %2742 = vmatprep.subr.mxu0 0.0
    %2743 = vmatpush1.msra.mxu0 0.0
    %2744 = vmatprep.subr.mxu0 0.0
    %2745 = vmatpush1.msra.mxu0 0.0
    %2746 = vmatprep.subr.mxu0 0.0
    %2747 = vmatpush1.msra.mxu0 0.0
    %2748 = vmatprep.subr.mxu0 0.0
    %2749 = vmatpush1.msra.mxu0 0.0
    %2750 = vmatprep.subr.mxu0 0.0
    %2751 = vmatpush1.msra.mxu0 %v2726
    %2752 = vmatprep.subr.mxu0 0.0
    %2753 = vmatpush1.msra.mxu0 %v2725
    %2754 = vmatprep.subr.mxu0 0.0
    %2755 = vmatpush1.msra.mxu0 %v2724
    %2756 = vmatprep.subr.mxu0 0.0
    %2757 = vmatpush1.msra.mxu0 %v2723
    %2758 = vmatprep.subr.mxu0 0.0
    %2759 = vmatpush1.msra.mxu0 %v2722
    %2760 = vmatprep.subr.mxu0 0.0
    %2761 = vmatpush1.msra.mxu0 %v2721
    %2762 = vmatprep.subr.mxu0 0.0
    %2763 = vmatpush1.msra.mxu0 %v2720
    %2764 = vmatprep.subr.mxu0 0.0
    %2765 = vmatpush1.msra.mxu0 %v2719
    %2766 = vmatprep.subr.mxu0 0.0
    %2767 = vmatpush2.msra.mxu0 0.0
    %2768 = vmatprep.subr.mxu0 0.0
    %2769 = vmatpush2.msra.mxu0 0.0
    %2770 = vmatprep.subr.mxu0 0.0
    %2771 = vmatpush2.msra.mxu0 0.0
    %2772 = vmatprep.subr.mxu0 0.0
    %2773 = vmatpush2.msra.mxu0 0.0
    %2774 = vmatprep.subr.mxu0 0.0
    %2775 = vmatpush2.msra.mxu0 0.0
    %2776 = vmatprep.subr.mxu0 0.0
    %2777 = vmatpush2.msra.mxu0 0.0
    %2778 = vmatprep.subr.mxu0 0.0
    %2779 = vmatpush2.msra.mxu0 0.0
    %2780 = vmatprep.subr.mxu0 0.0
    %2781 = vmatpush2.msra.mxu0 0.0
    %2782 = vmatprep.subr.mxu0 0.0
    %2783 = vmatpush2.msra.mxu0 0.0
    %2784 = vmatprep.subr.mxu0 0.0
    %2785 = vmatpush2.msra.mxu0 0.0
    %2786 = vmatprep.subr.mxu0 0.0
    %2787 = vmatpush2.msra.mxu0 0.0
    %2788 = vmatprep.subr.mxu0 0.0
    %2789 = vmatpush2.msra.mxu0 0.0
    %2790 = vmatprep.subr.mxu0 0.0
    %2791 = vmatpush2.msra.mxu0 0.0
    %2792 = vmatprep.subr.mxu0 0.0
    %2793 = vmatpush2.msra.mxu0 0.0
    %2794 = vmatprep.subr.mxu0 0.0
    %2795 = vmatpush2.msra.mxu0 0.0
    %2796 = vmatprep.subr.mxu0 0.0
    %2797 = vmatpush2.msra.mxu0 0.0
    %2798 = vmatprep.mubr.f32.mxu0 0.0
    %2799 = vmatmul.mubr.f32.gmra.mxu0 %v2732
    %v2800 = vpop.f32.mrf.mxu0
    %v2801 = vadd.f32 0.0, %v2800
    %v2802 = vpop.f32.mrf.mxu0
    %2803 = vdwg.mxu0
    %2804 = vmatprep.subr.mxu0 0.0
    %2805 = vmatpush1.msra.mxu0 0.0
    %2806 = vmatprep.subr.mxu0 0.0
    %2807 = vmatpush1.msra.mxu0 0.0
    %2808 = vmatprep.subr.mxu0 0.0
    %2809 = vmatpush1.msra.mxu0 0.0
    %2810 = vmatprep.subr.mxu0 0.0
    %2811 = vmatpush1.msra.mxu0 0.0
    %2812 = vmatprep.subr.mxu0 0.0
    %2813 = vmatpush1.msra.mxu0 0.0
    %2814 = vmatprep.subr.mxu0 0.0
    %2815 = vmatpush1.msra.mxu0 0.0
    %2816 = vmatprep.subr.mxu0 0.0
    %2817 = vmatpush1.msra.mxu0 0.0
    %2818 = vmatprep.subr.mxu0 0.0
    %2819 = vmatpush1.msra.mxu0 0.0
    %2820 = vmatprep.subr.mxu0 0.0
    %2821 = vmatpush1.msra.mxu0 0.0
    %2822 = vmatprep.subr.mxu0 0.0
    %2823 = vmatpush1.msra.mxu0 0.0
    %2824 = vmatprep.subr.mxu0 0.0
    %2825 = vmatpush1.msra.mxu0 0.0
    %2826 = vmatprep.subr.mxu0 0.0
    %2827 = vmatpush1.msra.mxu0 0.0
    %2828 = vmatprep.subr.mxu0 0.0
    %2829 = vmatpush1.msra.mxu0 %v2718
    %2830 = vmatprep.subr.mxu0 0.0
    %2831 = vmatpush1.msra.mxu0 %v2717
    %2832 = vmatprep.subr.mxu0 0.0
    %2833 = vmatpush1.msra.mxu0 %v2716
    %2834 = vmatprep.subr.mxu0 0.0
    %2835 = vmatpush1.msra.mxu0 %v2715
    %2836 = vmatprep.subr.mxu0 0.0
    %2837 = vmatpush2.msra.mxu0 0.0
    %2838 = vmatprep.subr.mxu0 0.0
    %2839 = vmatpush2.msra.mxu0 0.0
    %2840 = vmatprep.subr.mxu0 0.0
    %2841 = vmatpush2.msra.mxu0 0.0
    %2842 = vmatprep.subr.mxu0 0.0
    %2843 = vmatpush2.msra.mxu0 0.0
    %2844 = vmatprep.subr.mxu0 0.0
    %2845 = vmatpush2.msra.mxu0 0.0
    %2846 = vmatprep.subr.mxu0 0.0
    %2847 = vmatpush2.msra.mxu0 0.0
    %2848 = vmatprep.subr.mxu0 0.0
    %2849 = vmatpush2.msra.mxu0 0.0
    %2850 = vmatprep.subr.mxu0 0.0
    %2851 = vmatpush2.msra.mxu0 0.0
    %2852 = vmatprep.subr.mxu0 0.0
    %2853 = vmatpush2.msra.mxu0 0.0
    %2854 = vmatprep.subr.mxu0 0.0
    %2855 = vmatpush2.msra.mxu0 0.0
    %2856 = vmatprep.subr.mxu0 0.0
    %2857 = vmatpush2.msra.mxu0 0.0
    %2858 = vmatprep.subr.mxu0 0.0
    %2859 = vmatpush2.msra.mxu0 0.0
    %2860 = vmatprep.subr.mxu0 0.0
    %2861 = vmatpush2.msra.mxu0 0.0
    %2862 = vmatprep.subr.mxu0 0.0
    %2863 = vmatpush2.msra.mxu0 0.0
    %2864 = vmatprep.subr.mxu0 0.0
    %2865 = vmatpush2.msra.mxu0 0.0
    %2866 = vmatprep.subr.mxu0 0.0
    %2867 = vmatpush2.msra.mxu0 0.0
    %2868 = vmatprep.mubr.f32.mxu0 0.0
    %2869 = vmatmul.mubr.f32.gmra.mxu0 %v509
    %v2870 = vpop.f32.mrf.mxu0
    %v2871 = vadd.f32 %v2801, %v2870
    %v2872 = vpop.f32.mrf.mxu0
    %2873 = vdwg.mxu0
    %v2875 = vsel %vm240, %v2632, 0
    %2877 = vmatprep.subr.mxu0 0.0
    %2878 = vmatpush1.msra.mxu0 0.0
    %2879 = vmatprep.subr.mxu0 0.0
    %2880 = vmatpush1.msra.mxu0 0.0
    %2881 = vmatprep.subr.mxu0 0.0
    %2882 = vmatpush1.msra.mxu0 0.0
    %2883 = vmatprep.subr.mxu0 0.0
    %2884 = vmatpush1.msra.mxu0 0.0
    %2885 = vmatprep.subr.mxu0 0.0
    %2886 = vmatpush1.msra.mxu0 0.0
    %2887 = vmatprep.subr.mxu0 0.0
    %2888 = vmatpush1.msra.mxu0 0.0
    %2889 = vmatprep.subr.mxu0 0.0
    %2890 = vmatpush1.msra.mxu0 0.0
    %2891 = vmatprep.subr.mxu0 0.0
    %2892 = vmatpush1.msra.mxu0 0.0
    %2893 = vmatprep.subr.mxu0 0.0
    %2894 = vmatpush1.msra.mxu0 0.0
    %2895 = vmatprep.subr.mxu0 0.0
    %2896 = vmatpush1.msra.mxu0 0.0
    %2897 = vmatprep.subr.mxu0 0.0
    %2898 = vmatpush1.msra.mxu0 0.0
    %2899 = vmatprep.subr.mxu0 0.0
    %2900 = vmatpush1.msra.mxu0 0.0
    %2901 = vmatprep.subr.mxu0 0.0
    %2902 = vmatpush1.msra.mxu0 %v2730
    %2903 = vmatprep.subr.mxu0 0.0
    %2904 = vmatpush1.msra.mxu0 %v2729
    %2905 = vmatprep.subr.mxu0 0.0
    %2906 = vmatpush1.msra.mxu0 %v2728
    %2907 = vmatprep.subr.mxu0 0.0
    %2908 = vmatpush1.msra.mxu0 %v2727
    %2909 = vmatprep.subr.mxu0 0.0
    %2910 = vmatpush2.msra.mxu0 0.0
    %2911 = vmatprep.subr.mxu0 0.0
    %2912 = vmatpush2.msra.mxu0 0.0
    %2913 = vmatprep.subr.mxu0 0.0
    %2914 = vmatpush2.msra.mxu0 0.0
    %2915 = vmatprep.subr.mxu0 0.0
    %2916 = vmatpush2.msra.mxu0 0.0
    %2917 = vmatprep.subr.mxu0 0.0
    %2918 = vmatpush2.msra.mxu0 0.0
    %2919 = vmatprep.subr.mxu0 0.0
    %2920 = vmatpush2.msra.mxu0 0.0
    %2921 = vmatprep.subr.mxu0 0.0
    %2922 = vmatpush2.msra.mxu0 0.0
    %2923 = vmatprep.subr.mxu0 0.0
    %2924 = vmatpush2.msra.mxu0 0.0
    %2925 = vmatprep.subr.mxu0 0.0
    %2926 = vmatpush2.msra.mxu0 0.0
    %2927 = vmatprep.subr.mxu0 0.0
    %2928 = vmatpush2.msra.mxu0 0.0
    %2929 = vmatprep.subr.mxu0 0.0
    %2930 = vmatpush2.msra.mxu0 0.0
    %2931 = vmatprep.subr.mxu0 0.0
    %2932 = vmatpush2.msra.mxu0 0.0
    %2933 = vmatprep.subr.mxu0 0.0
    %2934 = vmatpush2.msra.mxu0 0.0
    %2935 = vmatprep.subr.mxu0 0.0
    %2936 = vmatpush2.msra.mxu0 0.0
    %2937 = vmatprep.subr.mxu0 0.0
    %2938 = vmatpush2.msra.mxu0 0.0
    %2939 = vmatprep.subr.mxu0 0.0
    %2940 = vmatpush2.msra.mxu0 0.0
    %2941 = vmatprep.mubr.f32.mxu0 0.0
    %2942 = vmatmul.mubr.f32.gmra.mxu0 %v2875
    %v2943 = vpop.f32.mrf.mxu0
    %v2944 = vadd.f32 0.0, %v2943
    %v2945 = vpop.f32.mrf.mxu0
    %2946 = vdwg.mxu0
    %v2947 = vadd.f32 %v2871, %v2944
    %v2948 = vld [vmem:[#allocation2 + $0x2d8] sm:$0x1]
    %v2949 = vlaneseq
    %v2950 = vshrl.u32 %v2949, 7
    %v2951 = vsub.s32 0, %v2950
    %v2952 = vrot.slane %v2948, %v2951
    %v2953 = vadd.f32 %v2947, %v2952
    %vm2954 = vcmask 402432
    %v2955 = vsel %vm2954, %v2953, -inf
    %2956 = vmax.xlane.f32.xlu0 %v2955
    %v2957 = vpop.xlane.xlu0 %2956
    %v2958 = vsub.f32 %v2953, %v2957
    %v2959 = vmul.f32 %v2958, 1.442695
    %v2960 = vpow.pop %v2959
    %v2961 = vsel %vm2954, %v2960, 0.0
    %2962 = vadd.xlane.f32.xlu0 %v2961
    %v2963 = vpop.xlane.xlu0 %2962
    %v2964 = vrcp.pop %v2963
    %v2965 = vmul.f32 %v2960, %v2964
    %2967 = vset.pattern.permute.xlu0 0
    %2968 = vperm.xlu0 %2967, %v2714
    %v2969 = vpop.permute.xlu0 %2968
    %v2971 = vmul.f32 %v2969, %v2965
    %2973 = vrot.lane.b32.xlu0 %v38, 50
    %v2974 = vpop.permute.xlu0 %2973
    %vm2976 = vcmask 408576
    %v2977 = vsel %vm2976, %v2971, %v2974
    %v2978 = vld [vmem:[%s0 + $0x30] sm:$0xff]
    %v2979 = vld [vmem:[%s0 + $0x38] sm:$0xff]
    %v2980 = vld [vmem:[%s0 + $0x40] sm:$0xff]
    %v2981 = vcvt.f32.s32.to.zero.pseudo %v2978
    %v2982 = vcvt.f32.s32.to.zero.pseudo %v2979
    %v2983 = vcvt.f32.s32.to.zero.pseudo %v2980
    %v2984 = vlaneseq
    %v2985 = vand.u32 %v2984, 127
    %2986 = vset.pattern.permute.xlu0 0
    %2987 = vperm.xlu0 %2986, %v2981
    %v2988 = vpop.permute.xlu0 %2987
    %2989 = vset.pattern.permute.xlu0 0
    %2990 = vperm.xlu0 %2989, %v2982
    %v2991 = vpop.permute.xlu0 %2990
    %2992 = vset.pattern.permute.xlu0 0
    %2993 = vperm.xlu0 %2992, %v2983
    %v2994 = vpop.permute.xlu0 %2993
    %vm2995 = vcmp.eq.s32.totalorder %v2988, %v2985
    %vm2996 = vcmp.eq.s32.totalorder %v2991, %v2985
    %vm2997 = vcmp.eq.s32.totalorder %v2994, %v2985
    %v2998 = vsel %vm2995, 1, 0
    %v2999 = vsel %vm2996, 1, 0
    %v3000 = vsel %vm2997, 1, 0
    %v3001 = vcvt.s32.f32 %v2998
    %v3002 = vcvt.s32.f32 %v2999
    %v3003 = vcvt.s32.f32 %v3000
    %v3004 = vld [vmem:[#allocation2 + $0x350] sm:$0x3]
    %3005 = vset.pattern.permute.xlu0 0
    %3006 = vperm.xlu0 %3005, %v1092
    %v3007 = vpop.permute.xlu0 %3006
    %v3010 = vunpack.c.l.s4 839922192
    %v3011 = vunpack.c.0.s8 %v3010
    %v3012 = vlaneseq
    %v3013 = vshrl.u32 %v3012, 7
    %v3014 = vsub.s32 %v3011, %v3013
    %v3015 = vrot.slane %v3007, %v3014
    %3016 = vset.pattern.permute.xlu0 0
    %3017 = vperm.xlu0 %3016, %v1094
    %v3018 = vpop.permute.xlu0 %3017
    %v3021 = vunpack.c.l.s4 839922192
    %v3022 = vunpack.c.0.s8 %v3021
    %v3023 = vlaneseq
    %v3024 = vshrl.u32 %v3023, 7
    %v3025 = vsub.s32 %v3022, %v3024
    %v3026 = vrot.slane %v3018, %v3025
    %3027 = vset.pattern.permute.xlu0 0
    %3028 = vperm.xlu0 %3027, %v1095
    %v3029 = vpop.permute.xlu0 %3028
    %v3032 = vunpack.c.l.s4 839922192
    %v3033 = vunpack.c.0.s8 %v3032
    %v3034 = vlaneseq
    %v3035 = vshrl.u32 %v3034, 7
    %v3036 = vsub.s32 %v3033, %v3035
    %v3037 = vrot.slane %v3029, %v3036
    %3038 = vset.pattern.permute.xlu0 0
    %3039 = vperm.xlu0 %3038, %v1097
    %v3040 = vpop.permute.xlu0 %3039
    %v3043 = vunpack.c.l.s4 839922192
    %v3044 = vunpack.c.0.s8 %v3043
    %v3045 = vlaneseq
    %v3046 = vshrl.u32 %v3045, 7
    %v3047 = vsub.s32 %v3044, %v3046
    %v3048 = vrot.slane %v3040, %v3047
    %3049 = vset.pattern.permute.xlu0 0
    %3050 = vperm.xlu0 %3049, %v1099
    %v3051 = vpop.permute.xlu0 %3050
    %v3054 = vunpack.c.l.s4 839922192
    %v3055 = vunpack.c.0.s8 %v3054
    %v3056 = vlaneseq
    %v3057 = vshrl.u32 %v3056, 7
    %v3058 = vsub.s32 %v3055, %v3057
    %v3059 = vrot.slane %v3051, %v3058
    %3060 = vset.pattern.permute.xlu0 0
    %3061 = vperm.xlu0 %3060, %v1100
    %v3062 = vpop.permute.xlu0 %3061
    %v3065 = vunpack.c.l.s4 839922192
    %v3066 = vunpack.c.0.s8 %v3065
    %v3067 = vlaneseq
    %v3068 = vshrl.u32 %v3067, 7
    %v3069 = vsub.s32 %v3066, %v3068
    %v3070 = vrot.slane %v3062, %v3069
    %v3074 = vcombine.high %v3001, %v3001
    %v3075 = vcombine.high %v3002, %v3002
    %v3076 = vcombine.high %v3003, %v3003
    %v3080 = vmul.f32 %v3015, %v3001
    %v3081 = vmul.f32 %v3026, %v3074
    %v3082 = vmul.f32 %v3037, %v3002
    %v3083 = vmul.f32 %v3048, %v3075
    %v3084 = vmul.f32 %v3059, %v3003
    %v3085 = vmul.f32 %v3070, %v3076
    %v3092 = vcombine.low %v3080, %v3081
    %v3093 = vcombine.low %v3082, %v3083
    %v3094 = vcombine.low %v3084, %v3085
    %vm3098 = vcmask 195584
    %v3100 = vsel %vm3098, %v3004, 0
    %3102 = vmatprep.subr.mxu0 0.0
    %3103 = vmatpush1.msra.mxu0 0.0
    %3104 = vmatprep.subr.mxu0 0.0
    %3105 = vmatpush1.msra.mxu0 0.0
    %3106 = vmatprep.subr.mxu0 0.0
    %3107 = vmatpush1.msra.mxu0 0.0
    %3108 = vmatprep.subr.mxu0 0.0
    %3109 = vmatpush1.msra.mxu0 0.0
    %3110 = vmatprep.subr.mxu0 0.0
    %3111 = vmatpush1.msra.mxu0 0.0
    %3112 = vmatprep.subr.mxu0 0.0
    %3113 = vmatpush1.msra.mxu0 0.0
    %3114 = vmatprep.subr.mxu0 0.0
    %3115 = vmatpush1.msra.mxu0 0.0
    %3116 = vmatprep.subr.mxu0 0.0
    %3117 = vmatpush1.msra.mxu0 0.0
    %3118 = vmatprep.subr.mxu0 0.0
    %3119 = vmatpush1.msra.mxu0 0.0
    %3120 = vmatprep.subr.mxu0 0.0
    %3121 = vmatpush1.msra.mxu0 0.0
    %3122 = vmatprep.subr.mxu0 0.0
    %3123 = vmatpush1.msra.mxu0 0.0
    %3124 = vmatprep.subr.mxu0 0.0
    %3125 = vmatpush1.msra.mxu0 0.0
    %3126 = vmatprep.subr.mxu0 0.0
    %3127 = vmatpush1.msra.mxu0 0.0
    %3128 = vmatprep.subr.mxu0 0.0
    %3129 = vmatpush1.msra.mxu0 %v3094
    %3130 = vmatprep.subr.mxu0 0.0
    %3131 = vmatpush1.msra.mxu0 %v3093
    %3132 = vmatprep.subr.mxu0 0.0
    %3133 = vmatpush1.msra.mxu0 %v3092
    %3134 = vmatprep.subr.mxu0 0.0
    %3135 = vmatpush2.msra.mxu0 0.0
    %3136 = vmatprep.subr.mxu0 0.0
    %3137 = vmatpush2.msra.mxu0 0.0
    %3138 = vmatprep.subr.mxu0 0.0
    %3139 = vmatpush2.msra.mxu0 0.0
    %3140 = vmatprep.subr.mxu0 0.0
    %3141 = vmatpush2.msra.mxu0 0.0
    %3142 = vmatprep.subr.mxu0 0.0
    %3143 = vmatpush2.msra.mxu0 0.0
    %3144 = vmatprep.subr.mxu0 0.0
    %3145 = vmatpush2.msra.mxu0 0.0
    %3146 = vmatprep.subr.mxu0 0.0
    %3147 = vmatpush2.msra.mxu0 0.0
    %3148 = vmatprep.subr.mxu0 0.0
    %3149 = vmatpush2.msra.mxu0 0.0
    %3150 = vmatprep.subr.mxu0 0.0
    %3151 = vmatpush2.msra.mxu0 0.0
    %3152 = vmatprep.subr.mxu0 0.0
    %3153 = vmatpush2.msra.mxu0 0.0
    %3154 = vmatprep.subr.mxu0 0.0
    %3155 = vmatpush2.msra.mxu0 0.0
    %3156 = vmatprep.subr.mxu0 0.0
    %3157 = vmatpush2.msra.mxu0 0.0
    %3158 = vmatprep.subr.mxu0 0.0
    %3159 = vmatpush2.msra.mxu0 0.0
    %3160 = vmatprep.subr.mxu0 0.0
    %3161 = vmatpush2.msra.mxu0 0.0
    %3162 = vmatprep.subr.mxu0 0.0
    %3163 = vmatpush2.msra.mxu0 0.0
    %3164 = vmatprep.subr.mxu0 0.0
    %3165 = vmatpush2.msra.mxu0 0.0
    %3166 = vmatprep.mubr.f32.mxu0 0.0
    %3167 = vmatmul.mubr.f32.gmra.mxu0 %v3100
    %v3168 = vpop.f32.mrf.mxu0
    %v3169 = vadd.f32 0.0, %v3168
    %v3170 = vpop.f32.mrf.mxu0
    %3171 = vdwg.mxu0
    %v3172 = vsub.f32 1.0, %v2714
    %3174 = vset.pattern.permute.xlu0 0
    %3175 = vperm.xlu0 %3174, %v3172
    %v3176 = vpop.permute.xlu0 %3175
    %v3178 = vmul.f32 %v3176, %v3169
    %v3179 = vadd.f32 %v2977, %v3178
    %vm3180 = vcmask 451584
    %3181 = vst.msk [vmem:[%s2] sm:$0x3] %vm3180, %v3179
    %3183 = vst.msk [vmem:[%s2 + $0x8] sm:$0x3] %vm2651, %v508
    %3185 = vst.msk [vmem:[%s2 + $0x10] sm:$0x3] %vm2651, %v433
    %3186 = vst.msk [vmem:[%s2 + $0x18] sm:$0x3] %vm2641, %v1345
    %3187 = vst.msk [vmem:[%s2 + $0x20] sm:$0x3] %vm2651, %v1499
    %3191 = vst.msk [vmem:[%s2 + $0x28] sm:$0xff] %vm1015, %v1107
    %3192 = vst.msk [vmem:[%s2 + $0x30] sm:$0xff] %vm1015, %v1108
    %3193 = vst.msk [vmem:[%s2 + $0x38] sm:$0xff] %vm1015, %v1109
    %vm3195 = vcmask 29696
    %3196 = vst.msk [vmem:[%s2 + $0x40] sm:$0x3f] %vm3195, %v2328
    // Predicated region
    $region14: #{_decoder_step.1} parent=1 // pred_check
      _
    $region15: #{_decoder_step.1} parent=1 // pred_check_branch
      %3198 = sbr.rel (0) target = $region17
    $region16: #{_decoder_step.1} parent=1 // pred_region
      _
    $region17: #{_decoder_step.1} parent=1 // pred_fallthru
      _
    // Predicated region
    $region18: #{_decoder_step.1} parent=1 // pred_check
      _
    $region19: #{_decoder_step.1} parent=1 // pred_check_branch
      %3200 = sbr.rel (0) target = $region21
    $region20: #{_decoder_step.1} parent=1 // pred_region
      _
    $region21: #{_decoder_step.1} parent=1 // pred_fallthru
      _
    %3201 = vsyncpa [#allocation3], 1

</llo_original>
